<compile_context>
chip_gen: v7x
topology: tpu7x:2x2x1
jax: 0.10.0
libtpu: 0.0.40
codegen_flags: <defaults>
</compile_context>

<pallas_src>
import functools

import jax
import jax.numpy as jnp
from jax.experimental import pallas as pl
from jax.experimental.pallas import tpu as pltpu

STATUS_PAD = 128          # lane-dense padded width for the num_status axis


def _vmem_specs(n):
    return [pl.BlockSpec(memory_space=pltpu.MemorySpace.VMEM) for _ in range(n)]


# ----------------------------- fused kernel --------------------------------

def _edge_gnn_fused_kernel(
        # graph operands (bf16 0/1 adjacencies)
        s2e_ref, e2t_ref, nb_ref,
        # raw inputs
        edge_feat_in_ref, node_prob_ref, node_seed_ref,
        # node_emb (row-split for VPU FMA) + edge_emb
        w_np_ref, w_ns_ref, b_ne_ref, w_ee_ref, b_ee_ref,
        # init_lin (row-split for the concat), aggr_lin, node_lin (status-padded)
        init_wa_ref, init_wb_ref, init_b_ref,
        aggr_w_ref, aggr_b_ref,
        node_wa_ref, node_wb_ref, node_b_ref,
        # message_edge_lin (row-split), message_pass_lin
        me_wa_ref, me_wb_ref, me_b_ref,
        mp_w_ref, mp_b_ref,
        # GRUCell, gates packed r|z|n -> [H, 3H]
        gru_wi_ref, gru_wh_ref, gru_bi_ref, gru_bh_ref,
        # output: [num_layers + 1, N, STATUS_PAD] log-marginals
        marg_ref,
        *, num_status, hidden, num_layers):
    f32 = jnp.float32

    # ---- hoist all weights/biases (read once, reused across the layer loop) ----
    s2e = s2e_ref[...]                         # [E, N]  bf16
    e2t = e2t_ref[...]                         # [N, E]  bf16
    nb = nb_ref[...]                           # [E, E]  bf16
    init_wa = init_wa_ref[...]; init_wb = init_wb_ref[...]; init_b = init_b_ref[...]
    aggr_w = aggr_w_ref[...]; aggr_b = aggr_b_ref[...]
    node_wa = node_wa_ref[...]; node_wb = node_wb_ref[...]; node_b = node_b_ref[...]
    me_wa = me_wa_ref[...]; me_wb = me_wb_ref[...]; me_b = me_b_ref[...]
    mp_w = mp_w_ref[...]; mp_b = mp_b_ref[...]
    gru_wi = gru_wi_ref[...]; gru_wh = gru_wh_ref[...]
    gru_bi = gru_bi_ref[...]; gru_bh = gru_bh_ref[...]

    # node_emb: relu([node_prob, node_seed] @ W + b) as two VPU broadcast FMAs (K=2)
    node_feat = jnp.maximum(
        node_prob_ref[...] * w_np_ref[...]
        + node_seed_ref[...] * w_ns_ref[...] + b_ne_ref[...], 0.0)        # [N, Fn]

    # edge_emb: relu(edge_feat_in @ W + b) as a VPU outer product (K=1)
    edge_feat = jnp.maximum(
        edge_feat_in_ref[...] * w_ee_ref[...] + b_ee_ref[...], 0.0)       # [E, Fe]

    # snode_feat = snode2edge @ node_feat  (bf16 MXU, f32 accumulate)
    snode_feat = jnp.dot(s2e, node_feat.astype(jnp.bfloat16),
                         preferred_element_type=f32)                      # [E, Fn]

    # init message: relu(cat([snode_feat, edge_feat]) @ W + b), W row-split
    message = jnp.maximum(
        jnp.dot(snode_feat, init_wa, preferred_element_type=f32)
        + jnp.dot(edge_feat, init_wb, preferred_element_type=f32)
        + init_b, 0.0)                                                    # [E, H]

    status_mask = jax.lax.broadcasted_iota(
        jnp.int32, (1, STATUS_PAD), 1) < num_status

    def nodes_out(msg):
        # node_agg = edge2tnode @ msg -> aggr_lin -> node_lin(cat) -> log_softmax
        agg = jnp.dot(e2t, msg.astype(jnp.bfloat16), preferred_element_type=f32)
        agg = jnp.maximum(
            jnp.dot(agg, aggr_w, preferred_element_type=f32) + aggr_b, 0.0)
        logits = jnp.maximum(
            jnp.dot(agg, node_wa, preferred_element_type=f32)
            + jnp.dot(node_feat, node_wb, preferred_element_type=f32)
            + node_b, 0.0)                                                # [N, SP]
        logits = jnp.where(status_mask, logits, -1e30)  # mask padded lanes
        m = jnp.max(logits, axis=-1, keepdims=True)
        lse = jnp.log(jnp.sum(jnp.exp(logits - m), axis=-1, keepdims=True)) + m
        return logits - lse

    marg_ref[0] = nodes_out(message)

    def layer(l, msg):
        # message_edge_lin on cat([message_old, edge_feat])   (W row-split)
        m_edge = jnp.maximum(
            jnp.dot(msg, me_wa, preferred_element_type=f32)
            + jnp.dot(edge_feat, me_wb, preferred_element_type=f32) + me_b, 0.0)
        # non-backtracking propagation + message_pass_lin
        m_pass = jnp.dot(nb, m_edge.astype(jnp.bfloat16),
                         preferred_element_type=f32)
        m_pass = jnp.maximum(
            jnp.dot(m_pass, mp_w, preferred_element_type=f32) + mp_b, 0.0)
        # GRUCell(m_pass, msg) with packed r|z|n gates (2 dots instead of 6)
        gi = jnp.dot(m_pass, gru_wi, preferred_element_type=f32) + gru_bi
        gh = jnp.dot(msg, gru_wh, preferred_element_type=f32) + gru_bh
        h = hidden
        r = jax.nn.sigmoid(gi[:, 0:h] + gh[:, 0:h])
        z = jax.nn.sigmoid(gi[:, h:2 * h] + gh[:, h:2 * h])
        n = jnp.tanh(gi[:, 2 * h:3 * h] + r * gh[:, 2 * h:3 * h])
        new_msg = (1.0 - z) * n + z * msg
        marg_ref[l + 1] = nodes_out(new_msg)
        return new_msg

    jax.lax.fori_loop(0, num_layers, layer, message, unroll=True)


# ------------------------------ parameters ---------------------------------

def _xavier(key, fan_in, fan_out):
    std = (2.0 / (fan_in + fan_out)) ** 0.5
    return std * jax.random.normal(key, (fan_in, fan_out), jnp.float32)


def _bias(key, out):
    return jax.random.uniform(key, (1, out), jnp.float32, -0.1, 0.1)


def init_params(key, node_feat_dim, edge_feat_dim, message_dim, num_status):
    ks = list(jax.random.split(key, 20))
    p = {}
    p['node_emb_w'] = _xavier(ks[0], 2, node_feat_dim)
    p['node_emb_b'] = _bias(ks[1], node_feat_dim)
    p['edge_emb_w'] = _xavier(ks[2], 1, edge_feat_dim)
    p['edge_emb_b'] = _bias(ks[3], edge_feat_dim)
    w = _xavier(ks[4], node_feat_dim + edge_feat_dim, message_dim)
    p['init_wa'], p['init_wb'] = w[:node_feat_dim], w[node_feat_dim:]
    p['init_b'] = _bias(ks[5], message_dim)
    p['aggr_w'] = _xavier(ks[6], message_dim, message_dim)
    p['aggr_b'] = _bias(ks[7], message_dim)
    w = _xavier(ks[8], message_dim + node_feat_dim, num_status)
    p['node_lin_wa'], p['node_lin_wb'] = w[:message_dim], w[message_dim:]
    p['node_lin_b'] = _bias(ks[9], num_status)
    # message_edge_lin applied to cat([message_old, edge_feat]); row-split accordingly
    w = _xavier(ks[10], message_dim + edge_feat_dim, message_dim)
    p['me_wa'], p['me_wb'] = w[:message_dim], w[message_dim:]
    p['me_b'] = _bias(ks[11], message_dim)
    p['mp_w'] = _xavier(ks[12], message_dim, message_dim)
    p['mp_b'] = _bias(ks[13], message_dim)
    # GRUCell(message_dim, message_dim): packed [H, 3H] weights, gate order r|z|n
    h = message_dim
    bound = 1.0 / (h ** 0.5)
    p['gru_wi'] = jax.random.uniform(ks[14], (h, 3 * h), jnp.float32, -bound, bound)
    p['gru_wh'] = jax.random.uniform(ks[15], (h, 3 * h), jnp.float32, -bound, bound)
    p['gru_bi'] = jax.random.uniform(ks[16], (1, 3 * h), jnp.float32, -bound, bound)
    p['gru_bh'] = jax.random.uniform(ks[17], (1, 3 * h), jnp.float32, -bound, bound)
    return p


# ------------------------------- forward -----------------------------------

def edge_gnn_forward(params, inputs, number_layers):
    (snode2edge, tnode2edge, edge2tnode, nb_matrix,
     edge_feat_in, node_prob, node_seed) = inputs
    del tnode2edge  # tnode_feat is dead in the reference module; skip the spmm

    num_status = params['node_lin_b'].shape[1]
    hidden = params['mp_w'].shape[0]
    n_nodes = node_prob.shape[0]

    # 0/1 adjacencies are exact in bf16 -> bf16 MXU path, half the VMEM footprint.
    s2e = snode2edge.astype(jnp.bfloat16)
    e2t = edge2tnode.astype(jnp.bfloat16)
    nb = nb_matrix.astype(jnp.bfloat16)

    # Pad the status axis of node_lin to a lane-dense width (zeros are masked in-kernel).
    pad = STATUS_PAD - num_status
    node_wa = jnp.pad(params['node_lin_wa'], ((0, 0), (0, pad)))
    node_wb = jnp.pad(params['node_lin_wb'], ((0, 0), (0, pad)))
    node_b = jnp.pad(params['node_lin_b'], ((0, 0), (0, pad)))

    # node_emb weight split by input column for the VPU broadcast FMA (K=2).
    w_np = params['node_emb_w'][0:1, :]
    w_ns = params['node_emb_w'][1:2, :]

    kernel = functools.partial(_edge_gnn_fused_kernel,
                               num_status=num_status, hidden=hidden,
                               num_layers=number_layers)
    operands = (
        s2e, e2t, nb, edge_feat_in, node_prob, node_seed,
        w_np, w_ns, params['node_emb_b'], params['edge_emb_w'], params['edge_emb_b'],
        params['init_wa'], params['init_wb'], params['init_b'],
        params['aggr_w'], params['aggr_b'],
        node_wa, node_wb, node_b,
        params['me_wa'], params['me_wb'], params['me_b'],
        params['mp_w'], params['mp_b'],
        params['gru_wi'], params['gru_wh'], params['gru_bi'], params['gru_bh'])

    marg_pad = pl.pallas_call(
        kernel,
        out_shape=jax.ShapeDtypeStruct(
            (number_layers + 1, n_nodes, STATUS_PAD), jnp.float32),
        in_specs=_vmem_specs(len(operands)),
        out_specs=pl.BlockSpec(memory_space=pltpu.MemorySpace.VMEM),
    )(*operands)

    marginal_all = marg_pad[:, :, :num_status]                    # [L+1, N, S]

    # Convergence deltas computed on device (no per-layer host round trip).
    p_last = jnp.exp(marginal_all[:, :, -1])                      # [L+1, N]
    deltas_all = jnp.max(jnp.abs(p_last[:-1] - p_last[1:]), axis=1)   # [L]

    # Single host sync: replicate the torch early-break by truncating the stack
    # (layers at/before the break point are independent of later layers).
    deltas_host = jax.device_get(deltas_all)
    keep = number_layers
    for i in range(number_layers):
        if float(deltas_host[i]) < 5e-05:
            keep = i + 1
            break
    marginal = marginal_all[:keep + 1]
    message_delta = [float(deltas_host[i]) for i in range(keep)]
    return marginal, message_delta


# --------------------------------- main -------------------------------------

if __name__ == "__main__":
    # Small, module-consistent shapes.
    N = 16                      # nodes
    node_feat_dim = 16
    edge_feat_dim = 8
    message_dim = 32
    num_status = 3
    number_layers = 3

    key = jax.random.PRNGKey(0)
    k_param, k_edge, k_prob, k_seed = jax.random.split(key, 4)
    params = init_params(k_param, node_feat_dim, edge_feat_dim, message_dim, num_status)

    # Deterministic bidirectional ring graph: E = 2N directed edges.
    idx = jnp.arange(N)
    src = jnp.concatenate([idx, (idx + 1) % N])
    dst = jnp.concatenate([(idx + 1) % N, idx])
    E = 2 * N
    eidx = jnp.arange(E)
    snode2edge = jnp.zeros((E, N), jnp.float32).at[eidx, src].set(1.0)
    tnode2edge = jnp.zeros((E, N), jnp.float32).at[eidx, dst].set(1.0)
    edge2tnode = jnp.zeros((N, E), jnp.float32).at[dst, eidx].set(1.0)
    # non-backtracking edge-neighbourhood matrix: nb[e, e'] = 1 iff dst(e') == src(e)
    # and e' is not the reverse of e.
    nb_matrix = ((dst[None, :] == src[:, None]) &
                 (src[None, :] != dst[:, None])).astype(jnp.float32)

    edge_feat_in = jax.random.uniform(k_edge, (E, 1), jnp.float32)
    node_prob = jax.random.uniform(k_prob, (N, 1), jnp.float32)
    node_seed = (jax.random.uniform(k_seed, (N, 1), jnp.float32) > 0.8).astype(jnp.float32)

    inputs = (snode2edge, tnode2edge, edge2tnode, nb_matrix,
              edge_feat_in, node_prob, node_seed)

    marginal, message_delta = edge_gnn_forward(params, inputs, number_layers)
    jax.block_until_ready(marginal)

    assert marginal.ndim == 3 and marginal.shape[1:] == (N, num_status)
    assert bool(jnp.all(jnp.isfinite(marginal)))
    # log_softmax rows must (log-)sum to ~0
    assert bool(jnp.all(jnp.abs(jnp.sum(jnp.exp(marginal), axis=-1) - 1.0) < 1e-4))
    print("KERNEL_OK")
</pallas_src>

<mosaic_0001>
module attributes {stable_mosaic.version = 11 : i64} {
  func.func @_edge_gnn_fused_kernel(%arg0: memref<32x16xbf16, #tpu.memory_space<vmem>>, %arg1: memref<16x32xbf16, #tpu.memory_space<vmem>>, %arg2: memref<32x32xbf16, #tpu.memory_space<vmem>>, %arg3: memref<32x1xf32, #tpu.memory_space<vmem>>, %arg4: memref<16x1xf32, #tpu.memory_space<vmem>>, %arg5: memref<16x1xf32, #tpu.memory_space<vmem>>, %arg6: memref<1x16xf32, #tpu.memory_space<vmem>>, %arg7: memref<1x16xf32, #tpu.memory_space<vmem>>, %arg8: memref<1x16xf32, #tpu.memory_space<vmem>>, %arg9: memref<1x8xf32, #tpu.memory_space<vmem>>, %arg10: memref<1x8xf32, #tpu.memory_space<vmem>>, %arg11: memref<16x32xf32, #tpu.memory_space<vmem>>, %arg12: memref<8x32xf32, #tpu.memory_space<vmem>>, %arg13: memref<1x32xf32, #tpu.memory_space<vmem>>, %arg14: memref<32x32xf32, #tpu.memory_space<vmem>>, %arg15: memref<1x32xf32, #tpu.memory_space<vmem>>, %arg16: memref<32x128xf32, #tpu.memory_space<vmem>>, %arg17: memref<16x128xf32, #tpu.memory_space<vmem>>, %arg18: memref<1x128xf32, #tpu.memory_space<vmem>>, %arg19: memref<32x32xf32, #tpu.memory_space<vmem>>, %arg20: memref<8x32xf32, #tpu.memory_space<vmem>>, %arg21: memref<1x32xf32, #tpu.memory_space<vmem>>, %arg22: memref<32x32xf32, #tpu.memory_space<vmem>>, %arg23: memref<1x32xf32, #tpu.memory_space<vmem>>, %arg24: memref<32x96xf32, #tpu.memory_space<vmem>>, %arg25: memref<32x96xf32, #tpu.memory_space<vmem>>, %arg26: memref<1x96xf32, #tpu.memory_space<vmem>>, %arg27: memref<1x96xf32, #tpu.memory_space<vmem>>, %arg28: memref<4x16x128xf32, #tpu.memory_space<vmem>>) attributes {dimension_semantics = [], scalar_prefetch = 0 : i64, scratch_operands = 0 : i64, tpu.core_type = #tpu.core_type<tc>} {
    %c0 = arith.constant 0 : index
    %c0_0 = arith.constant 0 : index
    %0 = vector.load %arg0[%c0, %c0_0] : memref<32x16xbf16, #tpu.memory_space<vmem>>, vector<32x16xbf16>
    %c0_1 = arith.constant 0 : index
    %c0_2 = arith.constant 0 : index
    %1 = vector.load %arg1[%c0_1, %c0_2] : memref<16x32xbf16, #tpu.memory_space<vmem>>, vector<16x32xbf16>
    %c0_3 = arith.constant 0 : index
    %c0_4 = arith.constant 0 : index
    %2 = vector.load %arg2[%c0_3, %c0_4] : memref<32x32xbf16, #tpu.memory_space<vmem>>, vector<32x32xbf16>
    %c0_5 = arith.constant 0 : index
    %c0_6 = arith.constant 0 : index
    %3 = vector.load %arg11[%c0_5, %c0_6] : memref<16x32xf32, #tpu.memory_space<vmem>>, vector<16x32xf32>
    %c0_7 = arith.constant 0 : index
    %c0_8 = arith.constant 0 : index
    %4 = vector.load %arg12[%c0_7, %c0_8] : memref<8x32xf32, #tpu.memory_space<vmem>>, vector<8x32xf32>
    %c0_9 = arith.constant 0 : index
    %c0_10 = arith.constant 0 : index
    %5 = vector.load %arg13[%c0_9, %c0_10] : memref<1x32xf32, #tpu.memory_space<vmem>>, vector<1x32xf32>
    %c0_11 = arith.constant 0 : index
    %c0_12 = arith.constant 0 : index
    %6 = vector.load %arg14[%c0_11, %c0_12] : memref<32x32xf32, #tpu.memory_space<vmem>>, vector<32x32xf32>
    %c0_13 = arith.constant 0 : index
    %c0_14 = arith.constant 0 : index
    %7 = vector.load %arg15[%c0_13, %c0_14] : memref<1x32xf32, #tpu.memory_space<vmem>>, vector<1x32xf32>
    %c0_15 = arith.constant 0 : index
    %c0_16 = arith.constant 0 : index
    %8 = vector.load %arg16[%c0_15, %c0_16] : memref<32x128xf32, #tpu.memory_space<vmem>>, vector<32x128xf32>
    %c0_17 = arith.constant 0 : index
    %c0_18 = arith.constant 0 : index
    %9 = vector.load %arg17[%c0_17, %c0_18] : memref<16x128xf32, #tpu.memory_space<vmem>>, vector<16x128xf32>
    %c0_19 = arith.constant 0 : index
    %c0_20 = arith.constant 0 : index
    %10 = vector.load %arg18[%c0_19, %c0_20] : memref<1x128xf32, #tpu.memory_space<vmem>>, vector<1x128xf32>
    %c0_21 = arith.constant 0 : index
    %c0_22 = arith.constant 0 : index
    %11 = vector.load %arg19[%c0_21, %c0_22] : memref<32x32xf32, #tpu.memory_space<vmem>>, vector<32x32xf32>
    %c0_23 = arith.constant 0 : index
    %c0_24 = arith.constant 0 : index
    %12 = vector.load %arg20[%c0_23, %c0_24] : memref<8x32xf32, #tpu.memory_space<vmem>>, vector<8x32xf32>
    %c0_25 = arith.constant 0 : index
    %c0_26 = arith.constant 0 : index
    %13 = vector.load %arg21[%c0_25, %c0_26] : memref<1x32xf32, #tpu.memory_space<vmem>>, vector<1x32xf32>
    %c0_27 = arith.constant 0 : index
    %c0_28 = arith.constant 0 : index
    %14 = vector.load %arg22[%c0_27, %c0_28] : memref<32x32xf32, #tpu.memory_space<vmem>>, vector<32x32xf32>
    %c0_29 = arith.constant 0 : index
    %c0_30 = arith.constant 0 : index
    %15 = vector.load %arg23[%c0_29, %c0_30] : memref<1x32xf32, #tpu.memory_space<vmem>>, vector<1x32xf32>
    %c0_31 = arith.constant 0 : index
    %c0_32 = arith.constant 0 : index
    %16 = vector.load %arg24[%c0_31, %c0_32] : memref<32x96xf32, #tpu.memory_space<vmem>>, vector<32x96xf32>
    %c0_33 = arith.constant 0 : index
    %c0_34 = arith.constant 0 : index
    %17 = vector.load %arg25[%c0_33, %c0_34] : memref<32x96xf32, #tpu.memory_space<vmem>>, vector<32x96xf32>
    %c0_35 = arith.constant 0 : index
    %c0_36 = arith.constant 0 : index
    %18 = vector.load %arg26[%c0_35, %c0_36] : memref<1x96xf32, #tpu.memory_space<vmem>>, vector<1x96xf32>
    %c0_37 = arith.constant 0 : index
    %c0_38 = arith.constant 0 : index
    %19 = vector.load %arg27[%c0_37, %c0_38] : memref<1x96xf32, #tpu.memory_space<vmem>>, vector<1x96xf32>
    %c0_39 = arith.constant 0 : index
    %c0_40 = arith.constant 0 : index
    %20 = vector.load %arg4[%c0_39, %c0_40] : memref<16x1xf32, #tpu.memory_space<vmem>>, vector<16x1xf32>
    %c0_41 = arith.constant 0 : index
    %c0_42 = arith.constant 0 : index
    %21 = vector.load %arg6[%c0_41, %c0_42] : memref<1x16xf32, #tpu.memory_space<vmem>>, vector<1x16xf32>
    %22 = vector.broadcast %20 : vector<16x1xf32> to vector<16x16xf32>
    %23 = vector.broadcast %21 : vector<1x16xf32> to vector<16x16xf32>
    %24 = arith.mulf %22, %23 : vector<16x16xf32>
    %c0_43 = arith.constant 0 : index
    %c0_44 = arith.constant 0 : index
    %25 = vector.load %arg5[%c0_43, %c0_44] : memref<16x1xf32, #tpu.memory_space<vmem>>, vector<16x1xf32>
    %c0_45 = arith.constant 0 : index
    %c0_46 = arith.constant 0 : index
    %26 = vector.load %arg7[%c0_45, %c0_46] : memref<1x16xf32, #tpu.memory_space<vmem>>, vector<1x16xf32>
    %27 = vector.broadcast %25 : vector<16x1xf32> to vector<16x16xf32>
    %28 = vector.broadcast %26 : vector<1x16xf32> to vector<16x16xf32>
    %29 = arith.mulf %27, %28 : vector<16x16xf32>
    %30 = arith.addf %24, %29 : vector<16x16xf32>
    %c0_47 = arith.constant 0 : index
    %c0_48 = arith.constant 0 : index
    %31 = vector.load %arg8[%c0_47, %c0_48] : memref<1x16xf32, #tpu.memory_space<vmem>>, vector<1x16xf32>
    %32 = vector.broadcast %31 : vector<1x16xf32> to vector<16x16xf32>
    %33 = arith.addf %30, %32 : vector<16x16xf32>
    %cst = arith.constant 0.000000e+00 : f32
    %34 = vector.broadcast %cst : f32 to vector<16x16xf32>
    %35 = arith.maximumf %33, %34 : vector<16x16xf32>
    %c0_49 = arith.constant 0 : index
    %c0_50 = arith.constant 0 : index
    %36 = vector.load %arg3[%c0_49, %c0_50] : memref<32x1xf32, #tpu.memory_space<vmem>>, vector<32x1xf32>
    %c0_51 = arith.constant 0 : index
    %c0_52 = arith.constant 0 : index
    %37 = vector.load %arg9[%c0_51, %c0_52] : memref<1x8xf32, #tpu.memory_space<vmem>>, vector<1x8xf32>
    %38 = vector.broadcast %36 : vector<32x1xf32> to vector<32x8xf32>
    %39 = vector.broadcast %37 : vector<1x8xf32> to vector<32x8xf32>
    %40 = arith.mulf %38, %39 : vector<32x8xf32>
    %c0_53 = arith.constant 0 : index
    %c0_54 = arith.constant 0 : index
    %41 = vector.load %arg10[%c0_53, %c0_54] : memref<1x8xf32, #tpu.memory_space<vmem>>, vector<1x8xf32>
    %42 = vector.broadcast %41 : vector<1x8xf32> to vector<32x8xf32>
    %43 = arith.addf %40, %42 : vector<32x8xf32>
    %cst_55 = arith.constant 0.000000e+00 : f32
    %44 = vector.broadcast %cst_55 : f32 to vector<32x8xf32>
    %45 = arith.maximumf %43, %44 : vector<32x8xf32>
    %46 = arith.truncf %35 : vector<16x16xf32> to vector<16x16xbf16>
    %cst_56 = arith.constant dense<0.000000e+00> : vector<32x16xf32>
    %47 = tpu.matmul %0, %46, %cst_56 {dimension_numbers = #tpu.dot_dimension_numbers<[1], [0], [0], [1], [0, 0, 1, 1], [], []>} : vector<32x16xbf16>, vector<16x16xbf16>, vector<32x16xf32> -> vector<32x16xf32>
    %cst_57 = arith.constant dense<0.000000e+00> : vector<32x32xf32>
    %48 = tpu.matmul %47, %3, %cst_57 {dimension_numbers = #tpu.dot_dimension_numbers<[1], [0], [0], [1], [0, 0, 1, 1], [], []>} : vector<32x16xf32>, vector<16x32xf32>, vector<32x32xf32> -> vector<32x32xf32>
    %cst_58 = arith.constant dense<0.000000e+00> : vector<32x32xf32>
    %49 = tpu.matmul %45, %4, %cst_58 {dimension_numbers = #tpu.dot_dimension_numbers<[1], [0], [0], [1], [0, 0, 1, 1], [], []>} : vector<32x8xf32>, vector<8x32xf32>, vector<32x32xf32> -> vector<32x32xf32>
    %50 = arith.addf %48, %49 : vector<32x32xf32>
    %51 = vector.broadcast %5 : vector<1x32xf32> to vector<32x32xf32>
    %52 = arith.addf %50, %51 : vector<32x32xf32>
    %cst_59 = arith.constant 0.000000e+00 : f32
    %53 = vector.broadcast %cst_59 : f32 to vector<32x32xf32>
    %54 = arith.maximumf %52, %53 : vector<32x32xf32>
    %55 = tpu.iota {dimensions = array<i32: 1>} : vector<1x128xi32>
    %c3_i32 = arith.constant 3 : i32
    %56 = vector.broadcast %c3_i32 : i32 to vector<1x128xi32>
    %57 = arith.cmpi slt, %55, %56 : vector<1x128xi32>
    %58 = arith.truncf %54 : vector<32x32xf32> to vector<32x32xbf16>
    %cst_60 = arith.constant dense<0.000000e+00> : vector<16x32xf32>
    %59 = tpu.matmul %1, %58, %cst_60 {dimension_numbers = #tpu.dot_dimension_numbers<[1], [0], [0], [1], [0, 0, 1, 1], [], []>} : vector<16x32xbf16>, vector<32x32xbf16>, vector<16x32xf32> -> vector<16x32xf32>
    %cst_61 = arith.constant dense<0.000000e+00> : vector<16x32xf32>
    %60 = tpu.matmul %59, %6, %cst_61 {dimension_numbers = #tpu.dot_dimension_numbers<[1], [0], [0], [1], [0, 0, 1, 1], [], []>} : vector<16x32xf32>, vector<32x32xf32>, vector<16x32xf32> -> vector<16x32xf32>
    %61 = vector.broadcast %7 : vector<1x32xf32> to vector<16x32xf32>
    %62 = arith.addf %60, %61 : vector<16x32xf32>
    %cst_62 = arith.constant 0.000000e+00 : f32
    %63 = vector.broadcast %cst_62 : f32 to vector<16x32xf32>
    %64 = arith.maximumf %62, %63 : vector<16x32xf32>
    %cst_63 = arith.constant dense<0.000000e+00> : vector<16x128xf32>
    %65 = tpu.matmul %64, %8, %cst_63 {dimension_numbers = #tpu.dot_dimension_numbers<[1], [0], [0], [1], [0, 0, 1, 1], [], []>} : vector<16x32xf32>, vector<32x128xf32>, vector<16x128xf32> -> vector<16x128xf32>
    %cst_64 = arith.constant dense<0.000000e+00> : vector<16x128xf32>
    %66 = tpu.matmul %35, %9, %cst_64 {dimension_numbers = #tpu.dot_dimension_numbers<[1], [0], [0], [1], [0, 0, 1, 1], [], []>} : vector<16x16xf32>, vector<16x128xf32>, vector<16x128xf32> -> vector<16x128xf32>
    %67 = arith.addf %65, %66 : vector<16x128xf32>
    %68 = vector.broadcast %10 : vector<1x128xf32> to vector<16x128xf32>
    %69 = arith.addf %67, %68 : vector<16x128xf32>
    %cst_65 = arith.constant 0.000000e+00 : f32
    %70 = vector.broadcast %cst_65 : f32 to vector<16x128xf32>
    %71 = arith.maximumf %69, %70 : vector<16x128xf32>
    %cst_66 = arith.constant -1.000000e+30 : f32
    %72 = vector.shape_cast %57 : vector<1x128xi1> to vector<1x128xi1>
    %73 = vector.broadcast %72 : vector<1x128xi1> to vector<16x128xi1>
    %74 = vector.broadcast %cst_66 : f32 to vector<16x128xf32>
    %75 = arith.select %73, %71, %74 : vector<16x128xi1>, vector<16x128xf32>
    %cst_67 = arith.constant dense<0xFF800000> : vector<16xf32>
    %76 = vector.multi_reduction <maximumf>, %75, %cst_67 [1] : vector<16x128xf32> to vector<16xf32>
    %77 = vector.shape_cast %76 : vector<16xf32> to vector<16x1xf32>
    %78 = vector.broadcast %77 : vector<16x1xf32> to vector<16x128xf32>
    %79 = arith.subf %75, %78 : vector<16x128xf32>
    %80 = math.exp %79 : vector<16x128xf32>
    %cst_68 = arith.constant dense<0.000000e+00> : vector<16xf32>
    %81 = vector.multi_reduction <add>, %80, %cst_68 [1] : vector<16x128xf32> to vector<16xf32>
    %82 = vector.shape_cast %81 : vector<16xf32> to vector<16x1xf32>
    %83 = math.log %82 : vector<16x1xf32>
    %84 = arith.addf %83, %77 : vector<16x1xf32>
    %85 = vector.broadcast %84 : vector<16x1xf32> to vector<16x128xf32>
    %86 = arith.subf %75, %85 : vector<16x128xf32>
    %c0_69 = arith.constant 0 : index
    %c0_70 = arith.constant 0 : index
    %c0_71 = arith.constant 0 : index
    %87 = vector.load %arg28[%c0_69, %c0_70, %c0_71] : memref<4x16x128xf32, #tpu.memory_space<vmem>>, vector<1x16x128xf32>
    %88 = vector.shape_cast %87 : vector<1x16x128xf32> to vector<16x128xf32>
    %89 = vector.shape_cast %86 : vector<16x128xf32> to vector<1x16x128xf32>
    tpu.vector_store %arg28[%c0_69, %c0_70, %c0_71], %89 {strides = array<i32>} : memref<4x16x128xf32, #tpu.memory_space<vmem>>, vector<1x16x128xf32>,
    %c0_i32 = arith.constant 0 : i32
    %cst_72 = arith.constant dense<0.000000e+00> : vector<32x32xf32>
    %90 = tpu.matmul %54, %11, %cst_72 {dimension_numbers = #tpu.dot_dimension_numbers<[1], [0], [0], [1], [0, 0, 1, 1], [], []>} : vector<32x32xf32>, vector<32x32xf32>, vector<32x32xf32> -> vector<32x32xf32>
    %cst_73 = arith.constant dense<0.000000e+00> : vector<32x32xf32>
    %91 = tpu.matmul %45, %12, %cst_73 {dimension_numbers = #tpu.dot_dimension_numbers<[1], [0], [0], [1], [0, 0, 1, 1], [], []>} : vector<32x8xf32>, vector<8x32xf32>, vector<32x32xf32> -> vector<32x32xf32>
    %92 = arith.addf %90, %91 : vector<32x32xf32>
    %93 = vector.broadcast %13 : vector<1x32xf32> to vector<32x32xf32>
    %94 = arith.addf %92, %93 : vector<32x32xf32>
    %cst_74 = arith.constant 0.000000e+00 : f32
    %95 = vector.broadcast %cst_74 : f32 to vector<32x32xf32>
    %96 = arith.maximumf %94, %95 : vector<32x32xf32>
    %97 = arith.truncf %96 : vector<32x32xf32> to vector<32x32xbf16>
    %cst_75 = arith.constant dense<0.000000e+00> : vector<32x32xf32>
    %98 = tpu.matmul %2, %97, %cst_75 {dimension_numbers = #tpu.dot_dimension_numbers<[1], [0], [0], [1], [0, 0, 1, 1], [], []>} : vector<32x32xbf16>, vector<32x32xbf16>, vector<32x32xf32> -> vector<32x32xf32>
    %cst_76 = arith.constant dense<0.000000e+00> : vector<32x32xf32>
    %99 = tpu.matmul %98, %14, %cst_76 {dimension_numbers = #tpu.dot_dimension_numbers<[1], [0], [0], [1], [0, 0, 1, 1], [], []>} : vector<32x32xf32>, vector<32x32xf32>, vector<32x32xf32> -> vector<32x32xf32>
    %100 = vector.broadcast %15 : vector<1x32xf32> to vector<32x32xf32>
    %101 = arith.addf %99, %100 : vector<32x32xf32>
    %cst_77 = arith.constant 0.000000e+00 : f32
    %102 = vector.broadcast %cst_77 : f32 to vector<32x32xf32>
    %103 = arith.maximumf %101, %102 : vector<32x32xf32>
    %cst_78 = arith.constant dense<0.000000e+00> : vector<32x96xf32>
    %104 = tpu.matmul %103, %16, %cst_78 {dimension_numbers = #tpu.dot_dimension_numbers<[1], [0], [0], [1], [0, 0, 1, 1], [], []>} : vector<32x32xf32>, vector<32x96xf32>, vector<32x96xf32> -> vector<32x96xf32>
    %105 = vector.broadcast %18 : vector<1x96xf32> to vector<32x96xf32>
    %106 = arith.addf %104, %105 : vector<32x96xf32>
    %cst_79 = arith.constant dense<0.000000e+00> : vector<32x96xf32>
    %107 = tpu.matmul %54, %17, %cst_79 {dimension_numbers = #tpu.dot_dimension_numbers<[1], [0], [0], [1], [0, 0, 1, 1], [], []>} : vector<32x32xf32>, vector<32x96xf32>, vector<32x96xf32> -> vector<32x96xf32>
    %108 = vector.broadcast %19 : vector<1x96xf32> to vector<32x96xf32>
    %109 = arith.addf %107, %108 : vector<32x96xf32>
    %110 = vector.extract_strided_slice %106 {offsets = [0, 0], sizes = [32, 32], strides = [1, 1]} : vector<32x96xf32> to vector<32x32xf32>
    %111 = vector.extract_strided_slice %109 {offsets = [0, 0], sizes = [32, 32], strides = [1, 1]} : vector<32x96xf32> to vector<32x32xf32>
    %112 = arith.addf %110, %111 : vector<32x32xf32>
    %113 = arith.negf %112 : vector<32x32xf32>
    %114 = math.exp %113 : vector<32x32xf32>
    %cst_80 = arith.constant 1.000000e+00 : f32
    %115 = vector.broadcast %cst_80 : f32 to vector<32x32xf32>
    %116 = arith.addf %115, %114 : vector<32x32xf32>
    %117 = arith.divf %115, %116 : vector<32x32xf32>
    %118 = vector.extract_strided_slice %106 {offsets = [0, 32], sizes = [32, 32], strides = [1, 1]} : vector<32x96xf32> to vector<32x32xf32>
    %119 = vector.extract_strided_slice %109 {offsets = [0, 32], sizes = [32, 32], strides = [1, 1]} : vector<32x96xf32> to vector<32x32xf32>
    %120 = arith.addf %118, %119 : vector<32x32xf32>
    %121 = arith.negf %120 : vector<32x32xf32>
    %122 = math.exp %121 : vector<32x32xf32>
    %cst_81 = arith.constant 1.000000e+00 : f32
    %123 = vector.broadcast %cst_81 : f32 to vector<32x32xf32>
    %124 = arith.addf %123, %122 : vector<32x32xf32>
    %125 = arith.divf %123, %124 : vector<32x32xf32>
    %126 = vector.extract_strided_slice %106 {offsets = [0, 64], sizes = [32, 32], strides = [1, 1]} : vector<32x96xf32> to vector<32x32xf32>
    %127 = vector.extract_strided_slice %109 {offsets = [0, 64], sizes = [32, 32], strides = [1, 1]} : vector<32x96xf32> to vector<32x32xf32>
    %128 = arith.mulf %117, %127 : vector<32x32xf32>
    %129 = arith.addf %126, %128 : vector<32x32xf32>
    %130 = math.tanh %129 : vector<32x32xf32>
    %cst_82 = arith.constant 1.000000e+00 : f32
    %131 = vector.broadcast %cst_82 : f32 to vector<32x32xf32>
    %132 = arith.subf %131, %125 : vector<32x32xf32>
    %133 = arith.mulf %132, %130 : vector<32x32xf32>
    %134 = arith.mulf %125, %54 : vector<32x32xf32>
    %135 = arith.addf %133, %134 : vector<32x32xf32>
    %136 = arith.truncf %135 : vector<32x32xf32> to vector<32x32xbf16>
    %cst_83 = arith.constant dense<0.000000e+00> : vector<16x32xf32>
    %137 = tpu.matmul %1, %136, %cst_83 {dimension_numbers = #tpu.dot_dimension_numbers<[1], [0], [0], [1], [0, 0, 1, 1], [], []>} : vector<16x32xbf16>, vector<32x32xbf16>, vector<16x32xf32> -> vector<16x32xf32>
    %cst_84 = arith.constant dense<0.000000e+00> : vector<16x32xf32>
    %138 = tpu.matmul %137, %6, %cst_84 {dimension_numbers = #tpu.dot_dimension_numbers<[1], [0], [0], [1], [0, 0, 1, 1], [], []>} : vector<16x32xf32>, vector<32x32xf32>, vector<16x32xf32> -> vector<16x32xf32>
    %139 = vector.broadcast %7 : vector<1x32xf32> to vector<16x32xf32>
    %140 = arith.addf %138, %139 : vector<16x32xf32>
    %cst_85 = arith.constant 0.000000e+00 : f32
    %141 = vector.broadcast %cst_85 : f32 to vector<16x32xf32>
    %142 = arith.maximumf %140, %141 : vector<16x32xf32>
    %cst_86 = arith.constant dense<0.000000e+00> : vector<16x128xf32>
    %143 = tpu.matmul %142, %8, %cst_86 {dimension_numbers = #tpu.dot_dimension_numbers<[1], [0], [0], [1], [0, 0, 1, 1], [], []>} : vector<16x32xf32>, vector<32x128xf32>, vector<16x128xf32> -> vector<16x128xf32>
    %cst_87 = arith.constant dense<0.000000e+00> : vector<16x128xf32>
    %144 = tpu.matmul %35, %9, %cst_87 {dimension_numbers = #tpu.dot_dimension_numbers<[1], [0], [0], [1], [0, 0, 1, 1], [], []>} : vector<16x16xf32>, vector<16x128xf32>, vector<16x128xf32> -> vector<16x128xf32>
    %145 = arith.addf %143, %144 : vector<16x128xf32>
    %146 = vector.broadcast %10 : vector<1x128xf32> to vector<16x128xf32>
    %147 = arith.addf %145, %146 : vector<16x128xf32>
    %cst_88 = arith.constant 0.000000e+00 : f32
    %148 = vector.broadcast %cst_88 : f32 to vector<16x128xf32>
    %149 = arith.maximumf %147, %148 : vector<16x128xf32>
    %cst_89 = arith.constant -1.000000e+30 : f32
    %150 = vector.shape_cast %57 : vector<1x128xi1> to vector<1x128xi1>
    %151 = vector.broadcast %150 : vector<1x128xi1> to vector<16x128xi1>
    %152 = vector.broadcast %cst_89 : f32 to vector<16x128xf32>
    %153 = arith.select %151, %149, %152 : vector<16x128xi1>, vector<16x128xf32>
    %cst_90 = arith.constant dense<0xFF800000> : vector<16xf32>
    %154 = vector.multi_reduction <maximumf>, %153, %cst_90 [1] : vector<16x128xf32> to vector<16xf32>
    %155 = vector.shape_cast %154 : vector<16xf32> to vector<16x1xf32>
    %156 = vector.broadcast %155 : vector<16x1xf32> to vector<16x128xf32>
    %157 = arith.subf %153, %156 : vector<16x128xf32>
    %158 = math.exp %157 : vector<16x128xf32>
    %cst_91 = arith.constant dense<0.000000e+00> : vector<16xf32>
    %159 = vector.multi_reduction <add>, %158, %cst_91 [1] : vector<16x128xf32> to vector<16xf32>
    %160 = vector.shape_cast %159 : vector<16xf32> to vector<16x1xf32>
    %161 = math.log %160 : vector<16x1xf32>
    %162 = arith.addf %161, %155 : vector<16x1xf32>
    %163 = vector.broadcast %162 : vector<16x1xf32> to vector<16x128xf32>
    %164 = arith.subf %153, %163 : vector<16x128xf32>
    %c1_i32 = arith.constant 1 : i32
    %165 = arith.addi %c0_i32, %c1_i32 : i32
    %166 = arith.index_cast %165 : i32 to index
    %c0_92 = arith.constant 0 : index
    %c0_93 = arith.constant 0 : index
    %167 = vector.load %arg28[%166, %c0_92, %c0_93] : memref<4x16x128xf32, #tpu.memory_space<vmem>>, vector<1x16x128xf32>
    %168 = vector.shape_cast %167 : vector<1x16x128xf32> to vector<16x128xf32>
    %169 = vector.shape_cast %164 : vector<16x128xf32> to vector<1x16x128xf32>
    tpu.vector_store %arg28[%166, %c0_92, %c0_93], %169 {strides = array<i32>} : memref<4x16x128xf32, #tpu.memory_space<vmem>>, vector<1x16x128xf32>,
    %c1_i32_94 = arith.constant 1 : i32
    %cst_95 = arith.constant dense<0.000000e+00> : vector<32x32xf32>
    %170 = tpu.matmul %135, %11, %cst_95 {dimension_numbers = #tpu.dot_dimension_numbers<[1], [0], [0], [1], [0, 0, 1, 1], [], []>} : vector<32x32xf32>, vector<32x32xf32>, vector<32x32xf32> -> vector<32x32xf32>
    %cst_96 = arith.constant dense<0.000000e+00> : vector<32x32xf32>
    %171 = tpu.matmul %45, %12, %cst_96 {dimension_numbers = #tpu.dot_dimension_numbers<[1], [0], [0], [1], [0, 0, 1, 1], [], []>} : vector<32x8xf32>, vector<8x32xf32>, vector<32x32xf32> -> vector<32x32xf32>
    %172 = arith.addf %170, %171 : vector<32x32xf32>
    %173 = vector.broadcast %13 : vector<1x32xf32> to vector<32x32xf32>
    %174 = arith.addf %172, %173 : vector<32x32xf32>
    %cst_97 = arith.constant 0.000000e+00 : f32
    %175 = vector.broadcast %cst_97 : f32 to vector<32x32xf32>
    %176 = arith.maximumf %174, %175 : vector<32x32xf32>
    %177 = arith.truncf %176 : vector<32x32xf32> to vector<32x32xbf16>
    %cst_98 = arith.constant dense<0.000000e+00> : vector<32x32xf32>
    %178 = tpu.matmul %2, %177, %cst_98 {dimension_numbers = #tpu.dot_dimension_numbers<[1], [0], [0], [1], [0, 0, 1, 1], [], []>} : vector<32x32xbf16>, vector<32x32xbf16>, vector<32x32xf32> -> vector<32x32xf32>
    %cst_99 = arith.constant dense<0.000000e+00> : vector<32x32xf32>
    %179 = tpu.matmul %178, %14, %cst_99 {dimension_numbers = #tpu.dot_dimension_numbers<[1], [0], [0], [1], [0, 0, 1, 1], [], []>} : vector<32x32xf32>, vector<32x32xf32>, vector<32x32xf32> -> vector<32x32xf32>
    %180 = vector.broadcast %15 : vector<1x32xf32> to vector<32x32xf32>
    %181 = arith.addf %179, %180 : vector<32x32xf32>
    %cst_100 = arith.constant 0.000000e+00 : f32
    %182 = vector.broadcast %cst_100 : f32 to vector<32x32xf32>
    %183 = arith.maximumf %181, %182 : vector<32x32xf32>
    %cst_101 = arith.constant dense<0.000000e+00> : vector<32x96xf32>
    %184 = tpu.matmul %183, %16, %cst_101 {dimension_numbers = #tpu.dot_dimension_numbers<[1], [0], [0], [1], [0, 0, 1, 1], [], []>} : vector<32x32xf32>, vector<32x96xf32>, vector<32x96xf32> -> vector<32x96xf32>
    %185 = vector.broadcast %18 : vector<1x96xf32> to vector<32x96xf32>
    %186 = arith.addf %184, %185 : vector<32x96xf32>
    %cst_102 = arith.constant dense<0.000000e+00> : vector<32x96xf32>
    %187 = tpu.matmul %135, %17, %cst_102 {dimension_numbers = #tpu.dot_dimension_numbers<[1], [0], [0], [1], [0, 0, 1, 1], [], []>} : vector<32x32xf32>, vector<32x96xf32>, vector<32x96xf32> -> vector<32x96xf32>
    %188 = vector.broadcast %19 : vector<1x96xf32> to vector<32x96xf32>
    %189 = arith.addf %187, %188 : vector<32x96xf32>
    %190 = vector.extract_strided_slice %186 {offsets = [0, 0], sizes = [32, 32], strides = [1, 1]} : vector<32x96xf32> to vector<32x32xf32>
    %191 = vector.extract_strided_slice %189 {offsets = [0, 0], sizes = [32, 32], strides = [1, 1]} : vector<32x96xf32> to vector<32x32xf32>
    %192 = arith.addf %190, %191 : vector<32x32xf32>
    %193 = arith.negf %192 : vector<32x32xf32>
    %194 = math.exp %193 : vector<32x32xf32>
    %cst_103 = arith.constant 1.000000e+00 : f32
    %195 = vector.broadcast %cst_103 : f32 to vector<32x32xf32>
    %196 = arith.addf %195, %194 : vector<32x32xf32>
    %197 = arith.divf %195, %196 : vector<32x32xf32>
    %198 = vector.extract_strided_slice %186 {offsets = [0, 32], sizes = [32, 32], strides = [1, 1]} : vector<32x96xf32> to vector<32x32xf32>
    %199 = vector.extract_strided_slice %189 {offsets = [0, 32], sizes = [32, 32], strides = [1, 1]} : vector<32x96xf32> to vector<32x32xf32>
    %200 = arith.addf %198, %199 : vector<32x32xf32>
    %201 = arith.negf %200 : vector<32x32xf32>
    %202 = math.exp %201 : vector<32x32xf32>
    %cst_104 = arith.constant 1.000000e+00 : f32
    %203 = vector.broadcast %cst_104 : f32 to vector<32x32xf32>
    %204 = arith.addf %203, %202 : vector<32x32xf32>
    %205 = arith.divf %203, %204 : vector<32x32xf32>
    %206 = vector.extract_strided_slice %186 {offsets = [0, 64], sizes = [32, 32], strides = [1, 1]} : vector<32x96xf32> to vector<32x32xf32>
    %207 = vector.extract_strided_slice %189 {offsets = [0, 64], sizes = [32, 32], strides = [1, 1]} : vector<32x96xf32> to vector<32x32xf32>
    %208 = arith.mulf %197, %207 : vector<32x32xf32>
    %209 = arith.addf %206, %208 : vector<32x32xf32>
    %210 = math.tanh %209 : vector<32x32xf32>
    %cst_105 = arith.constant 1.000000e+00 : f32
    %211 = vector.broadcast %cst_105 : f32 to vector<32x32xf32>
    %212 = arith.subf %211, %205 : vector<32x32xf32>
    %213 = arith.mulf %212, %210 : vector<32x32xf32>
    %214 = arith.mulf %205, %135 : vector<32x32xf32>
    %215 = arith.addf %213, %214 : vector<32x32xf32>
    %216 = arith.truncf %215 : vector<32x32xf32> to vector<32x32xbf16>
    %cst_106 = arith.constant dense<0.000000e+00> : vector<16x32xf32>
    %217 = tpu.matmul %1, %216, %cst_106 {dimension_numbers = #tpu.dot_dimension_numbers<[1], [0], [0], [1], [0, 0, 1, 1], [], []>} : vector<16x32xbf16>, vector<32x32xbf16>, vector<16x32xf32> -> vector<16x32xf32>
    %cst_107 = arith.constant dense<0.000000e+00> : vector<16x32xf32>
    %218 = tpu.matmul %217, %6, %cst_107 {dimension_numbers = #tpu.dot_dimension_numbers<[1], [0], [0], [1], [0, 0, 1, 1], [], []>} : vector<16x32xf32>, vector<32x32xf32>, vector<16x32xf32> -> vector<16x32xf32>
    %219 = vector.broadcast %7 : vector<1x32xf32> to vector<16x32xf32>
    %220 = arith.addf %218, %219 : vector<16x32xf32>
    %cst_108 = arith.constant 0.000000e+00 : f32
    %221 = vector.broadcast %cst_108 : f32 to vector<16x32xf32>
    %222 = arith.maximumf %220, %221 : vector<16x32xf32>
    %cst_109 = arith.constant dense<0.000000e+00> : vector<16x128xf32>
    %223 = tpu.matmul %222, %8, %cst_109 {dimension_numbers = #tpu.dot_dimension_numbers<[1], [0], [0], [1], [0, 0, 1, 1], [], []>} : vector<16x32xf32>, vector<32x128xf32>, vector<16x128xf32> -> vector<16x128xf32>
    %cst_110 = arith.constant dense<0.000000e+00> : vector<16x128xf32>
    %224 = tpu.matmul %35, %9, %cst_110 {dimension_numbers = #tpu.dot_dimension_numbers<[1], [0], [0], [1], [0, 0, 1, 1], [], []>} : vector<16x16xf32>, vector<16x128xf32>, vector<16x128xf32> -> vector<16x128xf32>
    %225 = arith.addf %223, %224 : vector<16x128xf32>
    %226 = vector.broadcast %10 : vector<1x128xf32> to vector<16x128xf32>
    %227 = arith.addf %225, %226 : vector<16x128xf32>
    %cst_111 = arith.constant 0.000000e+00 : f32
    %228 = vector.broadcast %cst_111 : f32 to vector<16x128xf32>
    %229 = arith.maximumf %227, %228 : vector<16x128xf32>
    %cst_112 = arith.constant -1.000000e+30 : f32
    %230 = vector.shape_cast %57 : vector<1x128xi1> to vector<1x128xi1>
    %231 = vector.broadcast %230 : vector<1x128xi1> to vector<16x128xi1>
    %232 = vector.broadcast %cst_112 : f32 to vector<16x128xf32>
    %233 = arith.select %231, %229, %232 : vector<16x128xi1>, vector<16x128xf32>
    %cst_113 = arith.constant dense<0xFF800000> : vector<16xf32>
    %234 = vector.multi_reduction <maximumf>, %233, %cst_113 [1] : vector<16x128xf32> to vector<16xf32>
    %235 = vector.shape_cast %234 : vector<16xf32> to vector<16x1xf32>
    %236 = vector.broadcast %235 : vector<16x1xf32> to vector<16x128xf32>
    %237 = arith.subf %233, %236 : vector<16x128xf32>
    %238 = math.exp %237 : vector<16x128xf32>
    %cst_114 = arith.constant dense<0.000000e+00> : vector<16xf32>
    %239 = vector.multi_reduction <add>, %238, %cst_114 [1] : vector<16x128xf32> to vector<16xf32>
    %240 = vector.shape_cast %239 : vector<16xf32> to vector<16x1xf32>
    %241 = math.log %240 : vector<16x1xf32>
    %242 = arith.addf %241, %235 : vector<16x1xf32>
    %243 = vector.broadcast %242 : vector<16x1xf32> to vector<16x128xf32>
    %244 = arith.subf %233, %243 : vector<16x128xf32>
    %c1_i32_115 = arith.constant 1 : i32
    %245 = arith.addi %c1_i32_94, %c1_i32_115 : i32
    %246 = arith.index_cast %245 : i32 to index
    %c0_116 = arith.constant 0 : index
    %c0_117 = arith.constant 0 : index
    %247 = vector.load %arg28[%246, %c0_116, %c0_117] : memref<4x16x128xf32, #tpu.memory_space<vmem>>, vector<1x16x128xf32>
    %248 = vector.shape_cast %247 : vector<1x16x128xf32> to vector<16x128xf32>
    %249 = vector.shape_cast %244 : vector<16x128xf32> to vector<1x16x128xf32>
    tpu.vector_store %arg28[%246, %c0_116, %c0_117], %249 {strides = array<i32>} : memref<4x16x128xf32, #tpu.memory_space<vmem>>, vector<1x16x128xf32>,
    %c2_i32 = arith.constant 2 : i32
    %cst_118 = arith.constant dense<0.000000e+00> : vector<32x32xf32>
    %250 = tpu.matmul %215, %11, %cst_118 {dimension_numbers = #tpu.dot_dimension_numbers<[1], [0], [0], [1], [0, 0, 1, 1], [], []>} : vector<32x32xf32>, vector<32x32xf32>, vector<32x32xf32> -> vector<32x32xf32>
    %cst_119 = arith.constant dense<0.000000e+00> : vector<32x32xf32>
    %251 = tpu.matmul %45, %12, %cst_119 {dimension_numbers = #tpu.dot_dimension_numbers<[1], [0], [0], [1], [0, 0, 1, 1], [], []>} : vector<32x8xf32>, vector<8x32xf32>, vector<32x32xf32> -> vector<32x32xf32>
    %252 = arith.addf %250, %251 : vector<32x32xf32>
    %253 = vector.broadcast %13 : vector<1x32xf32> to vector<32x32xf32>
    %254 = arith.addf %252, %253 : vector<32x32xf32>
    %cst_120 = arith.constant 0.000000e+00 : f32
    %255 = vector.broadcast %cst_120 : f32 to vector<32x32xf32>
    %256 = arith.maximumf %254, %255 : vector<32x32xf32>
    %257 = arith.truncf %256 : vector<32x32xf32> to vector<32x32xbf16>
    %cst_121 = arith.constant dense<0.000000e+00> : vector<32x32xf32>
    %258 = tpu.matmul %2, %257, %cst_121 {dimension_numbers = #tpu.dot_dimension_numbers<[1], [0], [0], [1], [0, 0, 1, 1], [], []>} : vector<32x32xbf16>, vector<32x32xbf16>, vector<32x32xf32> -> vector<32x32xf32>
    %cst_122 = arith.constant dense<0.000000e+00> : vector<32x32xf32>
    %259 = tpu.matmul %258, %14, %cst_122 {dimension_numbers = #tpu.dot_dimension_numbers<[1], [0], [0], [1], [0, 0, 1, 1], [], []>} : vector<32x32xf32>, vector<32x32xf32>, vector<32x32xf32> -> vector<32x32xf32>
    %260 = vector.broadcast %15 : vector<1x32xf32> to vector<32x32xf32>
    %261 = arith.addf %259, %260 : vector<32x32xf32>
    %cst_123 = arith.constant 0.000000e+00 : f32
    %262 = vector.broadcast %cst_123 : f32 to vector<32x32xf32>
    %263 = arith.maximumf %261, %262 : vector<32x32xf32>
    %cst_124 = arith.constant dense<0.000000e+00> : vector<32x96xf32>
    %264 = tpu.matmul %263, %16, %cst_124 {dimension_numbers = #tpu.dot_dimension_numbers<[1], [0], [0], [1], [0, 0, 1, 1], [], []>} : vector<32x32xf32>, vector<32x96xf32>, vector<32x96xf32> -> vector<32x96xf32>
    %265 = vector.broadcast %18 : vector<1x96xf32> to vector<32x96xf32>
    %266 = arith.addf %264, %265 : vector<32x96xf32>
    %cst_125 = arith.constant dense<0.000000e+00> : vector<32x96xf32>
    %267 = tpu.matmul %215, %17, %cst_125 {dimension_numbers = #tpu.dot_dimension_numbers<[1], [0], [0], [1], [0, 0, 1, 1], [], []>} : vector<32x32xf32>, vector<32x96xf32>, vector<32x96xf32> -> vector<32x96xf32>
    %268 = vector.broadcast %19 : vector<1x96xf32> to vector<32x96xf32>
    %269 = arith.addf %267, %268 : vector<32x96xf32>
    %270 = vector.extract_strided_slice %266 {offsets = [0, 0], sizes = [32, 32], strides = [1, 1]} : vector<32x96xf32> to vector<32x32xf32>
    %271 = vector.extract_strided_slice %269 {offsets = [0, 0], sizes = [32, 32], strides = [1, 1]} : vector<32x96xf32> to vector<32x32xf32>
    %272 = arith.addf %270, %271 : vector<32x32xf32>
    %273 = arith.negf %272 : vector<32x32xf32>
    %274 = math.exp %273 : vector<32x32xf32>
    %cst_126 = arith.constant 1.000000e+00 : f32
    %275 = vector.broadcast %cst_126 : f32 to vector<32x32xf32>
    %276 = arith.addf %275, %274 : vector<32x32xf32>
    %277 = arith.divf %275, %276 : vector<32x32xf32>
    %278 = vector.extract_strided_slice %266 {offsets = [0, 32], sizes = [32, 32], strides = [1, 1]} : vector<32x96xf32> to vector<32x32xf32>
    %279 = vector.extract_strided_slice %269 {offsets = [0, 32], sizes = [32, 32], strides = [1, 1]} : vector<32x96xf32> to vector<32x32xf32>
    %280 = arith.addf %278, %279 : vector<32x32xf32>
    %281 = arith.negf %280 : vector<32x32xf32>
    %282 = math.exp %281 : vector<32x32xf32>
    %cst_127 = arith.constant 1.000000e+00 : f32
    %283 = vector.broadcast %cst_127 : f32 to vector<32x32xf32>
    %284 = arith.addf %283, %282 : vector<32x32xf32>
    %285 = arith.divf %283, %284 : vector<32x32xf32>
    %286 = vector.extract_strided_slice %266 {offsets = [0, 64], sizes = [32, 32], strides = [1, 1]} : vector<32x96xf32> to vector<32x32xf32>
    %287 = vector.extract_strided_slice %269 {offsets = [0, 64], sizes = [32, 32], strides = [1, 1]} : vector<32x96xf32> to vector<32x32xf32>
    %288 = arith.mulf %277, %287 : vector<32x32xf32>
    %289 = arith.addf %286, %288 : vector<32x32xf32>
    %290 = math.tanh %289 : vector<32x32xf32>
    %cst_128 = arith.constant 1.000000e+00 : f32
    %291 = vector.broadcast %cst_128 : f32 to vector<32x32xf32>
    %292 = arith.subf %291, %285 : vector<32x32xf32>
    %293 = arith.mulf %292, %290 : vector<32x32xf32>
    %294 = arith.mulf %285, %215 : vector<32x32xf32>
    %295 = arith.addf %293, %294 : vector<32x32xf32>
    %296 = arith.truncf %295 : vector<32x32xf32> to vector<32x32xbf16>
    %cst_129 = arith.constant dense<0.000000e+00> : vector<16x32xf32>
    %297 = tpu.matmul %1, %296, %cst_129 {dimension_numbers = #tpu.dot_dimension_numbers<[1], [0], [0], [1], [0, 0, 1, 1], [], []>} : vector<16x32xbf16>, vector<32x32xbf16>, vector<16x32xf32> -> vector<16x32xf32>
    %cst_130 = arith.constant dense<0.000000e+00> : vector<16x32xf32>
    %298 = tpu.matmul %297, %6, %cst_130 {dimension_numbers = #tpu.dot_dimension_numbers<[1], [0], [0], [1], [0, 0, 1, 1], [], []>} : vector<16x32xf32>, vector<32x32xf32>, vector<16x32xf32> -> vector<16x32xf32>
    %299 = vector.broadcast %7 : vector<1x32xf32> to vector<16x32xf32>
    %300 = arith.addf %298, %299 : vector<16x32xf32>
    %cst_131 = arith.constant 0.000000e+00 : f32
    %301 = vector.broadcast %cst_131 : f32 to vector<16x32xf32>
    %302 = arith.maximumf %300, %301 : vector<16x32xf32>
    %cst_132 = arith.constant dense<0.000000e+00> : vector<16x128xf32>
    %303 = tpu.matmul %302, %8, %cst_132 {dimension_numbers = #tpu.dot_dimension_numbers<[1], [0], [0], [1], [0, 0, 1, 1], [], []>} : vector<16x32xf32>, vector<32x128xf32>, vector<16x128xf32> -> vector<16x128xf32>
    %cst_133 = arith.constant dense<0.000000e+00> : vector<16x128xf32>
    %304 = tpu.matmul %35, %9, %cst_133 {dimension_numbers = #tpu.dot_dimension_numbers<[1], [0], [0], [1], [0, 0, 1, 1], [], []>} : vector<16x16xf32>, vector<16x128xf32>, vector<16x128xf32> -> vector<16x128xf32>
    %305 = arith.addf %303, %304 : vector<16x128xf32>
    %306 = vector.broadcast %10 : vector<1x128xf32> to vector<16x128xf32>
    %307 = arith.addf %305, %306 : vector<16x128xf32>
    %cst_134 = arith.constant 0.000000e+00 : f32
    %308 = vector.broadcast %cst_134 : f32 to vector<16x128xf32>
    %309 = arith.maximumf %307, %308 : vector<16x128xf32>
    %cst_135 = arith.constant -1.000000e+30 : f32
    %310 = vector.shape_cast %57 : vector<1x128xi1> to vector<1x128xi1>
    %311 = vector.broadcast %310 : vector<1x128xi1> to vector<16x128xi1>
    %312 = vector.broadcast %cst_135 : f32 to vector<16x128xf32>
    %313 = arith.select %311, %309, %312 : vector<16x128xi1>, vector<16x128xf32>
    %cst_136 = arith.constant dense<0xFF800000> : vector<16xf32>
    %314 = vector.multi_reduction <maximumf>, %313, %cst_136 [1] : vector<16x128xf32> to vector<16xf32>
    %315 = vector.shape_cast %314 : vector<16xf32> to vector<16x1xf32>
    %316 = vector.broadcast %315 : vector<16x1xf32> to vector<16x128xf32>
    %317 = arith.subf %313, %316 : vector<16x128xf32>
    %318 = math.exp %317 : vector<16x128xf32>
    %cst_137 = arith.constant dense<0.000000e+00> : vector<16xf32>
    %319 = vector.multi_reduction <add>, %318, %cst_137 [1] : vector<16x128xf32> to vector<16xf32>
    %320 = vector.shape_cast %319 : vector<16xf32> to vector<16x1xf32>
    %321 = math.log %320 : vector<16x1xf32>
    %322 = arith.addf %321, %315 : vector<16x1xf32>
    %323 = vector.broadcast %322 : vector<16x1xf32> to vector<16x128xf32>
    %324 = arith.subf %313, %323 : vector<16x128xf32>
    %c1_i32_138 = arith.constant 1 : i32
    %325 = arith.addi %c2_i32, %c1_i32_138 : i32
    %326 = arith.index_cast %325 : i32 to index
    %c0_139 = arith.constant 0 : index
    %c0_140 = arith.constant 0 : index
    %327 = vector.load %arg28[%326, %c0_139, %c0_140] : memref<4x16x128xf32, #tpu.memory_space<vmem>>, vector<1x16x128xf32>
    %328 = vector.shape_cast %327 : vector<1x16x128xf32> to vector<16x128xf32>
    %329 = vector.shape_cast %324 : vector<16x128xf32> to vector<1x16x128xf32>
    tpu.vector_store %arg28[%326, %c0_139, %c0_140], %329 {strides = array<i32>} : memref<4x16x128xf32, #tpu.memory_space<vmem>>, vector<1x16x128xf32>,
    %c3_i32_141 = arith.constant 3 : i32
    return
  }
}

</mosaic_0001>

<llo_original>
// kernel: tpu_custom_call.1
$region0: #{tpu_custom_call.1}
  #allocation0 [shape = 'u32[]', space=smem, size = 0x4, offset = 0x4, fixed_abs, tag = 'smem constant byte address 0x4 - core index']
  #allocation1 [shape = 'u32[144,128]{1,0:T(1,128)}', space=vmem, size = 0x12000, scoped, tag = 'internal scratch']
  %s0 = inlined_call_operand.vmem [shape: bf16[32,16], index: 0, kind: input, shape index: {}]
  %s1 = inlined_call_operand.hbm [shape: bf16[16,32], index: 1, kind: input, shape index: {}]
  %s2 = inlined_call_operand.hbm [shape: bf16[32,32], index: 2, kind: input, shape index: {}]
  %s3 = inlined_call_operand.vmem [shape: f32[32,1], index: 3, kind: input, shape index: {}]
  %s4 = inlined_call_operand.vmem [shape: f32[16,1], index: 4, kind: input, shape index: {}]
  %s5 = inlined_call_operand.vmem [shape: f32[16,1], index: 5, kind: input, shape index: {}]
  %s6 = inlined_call_operand.hbm [shape: f32[1,16], index: 6, kind: input, shape index: {}]
  %s7 = inlined_call_operand.hbm [shape: f32[1,16], index: 7, kind: input, shape index: {}]
  %s8 = inlined_call_operand.hbm [shape: f32[1,16], index: 8, kind: input, shape index: {}]
  %s9 = inlined_call_operand.hbm [shape: f32[1,8], index: 9, kind: input, shape index: {}]
  %s10 = inlined_call_operand.hbm [shape: f32[1,8], index: 10, kind: input, shape index: {}]
  %s11 = inlined_call_operand.hbm [shape: f32[16,32], index: 11, kind: input, shape index: {}]
  %s12 = inlined_call_operand.hbm [shape: f32[8,32], index: 12, kind: input, shape index: {}]
  %s13 = inlined_call_operand.vmem [shape: f32[1,32], index: 13, kind: input, shape index: {}]
  %s14 = inlined_call_operand.vmem [shape: f32[32,32], index: 14, kind: input, shape index: {}]
  %s15 = inlined_call_operand.vmem [shape: f32[1,32], index: 15, kind: input, shape index: {}]
  %s16 = inlined_call_operand.vmem [shape: f32[32,128], index: 16, kind: input, shape index: {}]
  %s17 = inlined_call_operand.hbm [shape: f32[16,128], index: 17, kind: input, shape index: {}]
  %s18 = inlined_call_operand.hbm [shape: f32[1,128], index: 18, kind: input, shape index: {}]
  %s19 = inlined_call_operand.vmem [shape: f32[32,32], index: 19, kind: input, shape index: {}]
  %s20 = inlined_call_operand.hbm [shape: f32[8,32], index: 20, kind: input, shape index: {}]
  %s21 = inlined_call_operand.vmem [shape: f32[1,32], index: 21, kind: input, shape index: {}]
  %s22 = inlined_call_operand.vmem [shape: f32[32,32], index: 22, kind: input, shape index: {}]
  %s23 = inlined_call_operand.vmem [shape: f32[1,32], index: 23, kind: input, shape index: {}]
  %s24 = inlined_call_operand.vmem [shape: f32[32,96], index: 24, kind: input, shape index: {}]
  %s25 = inlined_call_operand.hbm [shape: f32[32,96], index: 25, kind: input, shape index: {}]
  %s26 = inlined_call_operand.vmem [shape: f32[1,96], index: 26, kind: input, shape index: {}]
  %s27 = inlined_call_operand.vmem [shape: f32[1,96], index: 27, kind: input, shape index: {}]
  %s28 = inlined_call_operand.hbm [shape: f32[4,16,128], index: 28, kind: output, shape index: {}]
  %s29 = sld [smem:[#allocation0]]
  $region174: #{tpu_custom_call.1} parent=0
    _
  %s31 = ssub.s32 1, %s29
  %s32 = scalar_select 0, %s31, %s29
  $region1: #{tpu_custom_call.1} parent=0
    #allocation2 [shape = 'u8[4096]{0}', space=vmem, size = 0x1000, scoped, tag = 'input window, operand 1, single buffered']
    #allocation3 [shape = 's32[1]{0}', space=sflag, size = 0x4, scoped, tag = 'scoped memory for tpu_custom_call.1']
    #allocation4 [shape = 's32[1]{0}', space=sflag, size = 0x4, scoped, tag = 'scoped memory for tpu_custom_call.1']
    #allocation5 [shape = 'u8[8192]{0}', space=vmem, size = 0x2000, scoped, tag = 'input window, operand 2, single buffered']
    #allocation6 [shape = 's32[1]{0}', space=sflag, size = 0x4, scoped, tag = 'scoped memory for tpu_custom_call.1']
    #allocation7 [shape = 'u8[512]{0}', space=vmem, size = 0x400, scoped, tag = 'input window, operand 6, single buffered']
    #allocation8 [shape = 'u8[512]{0}', space=vmem, size = 0x400, scoped, tag = 'input window, operand 7, single buffered']
    #allocation9 [shape = 's32[1]{0}', space=sflag, size = 0x4, scoped, tag = 'scoped memory for tpu_custom_call.1']
    #allocation10 [shape = 'u8[512]{0}', space=vmem, size = 0x400, scoped, tag = 'input window, operand 8, single buffered']
    #allocation11 [shape = 'u8[512]{0}', space=vmem, size = 0x400, scoped, tag = 'input window, operand 9, single buffered']
    #allocation12 [shape = 's32[1]{0}', space=sflag, size = 0x4, scoped, tag = 'scoped memory for tpu_custom_call.1']
    #allocation13 [shape = 'u8[512]{0}', space=vmem, size = 0x400, scoped, tag = 'input window, operand 10, single buffered']
    #allocation14 [shape = 'u8[8192]{0}', space=vmem, size = 0x2000, scoped, tag = 'input window, operand 11, single buffered']
    #allocation15 [shape = 's32[1]{0}', space=sflag, size = 0x4, scoped, tag = 'scoped memory for tpu_custom_call.1']
    #allocation16 [shape = 'u8[4096]{0}', space=vmem, size = 0x1000, scoped, tag = 'input window, operand 12, single buffered']
    #allocation17 [shape = 'u8[8192]{0}', space=vmem, size = 0x2000, scoped, tag = 'input window, operand 17, single buffered']
    #allocation18 [shape = 's32[1]{0}', space=sflag, size = 0x4, scoped, tag = 'scoped memory for tpu_custom_call.1']
    #allocation19 [shape = 'u8[512]{0}', space=vmem, size = 0x400, scoped, tag = 'input window, operand 18, single buffered']
    #allocation20 [shape = 'u8[4096]{0}', space=vmem, size = 0x1000, scoped, tag = 'input window, operand 20, single buffered']
    #allocation21 [shape = 's32[1]{0}', space=sflag, size = 0x4, scoped, tag = 'scoped memory for tpu_custom_call.1']
    #allocation22 [shape = 'u8[16384]{0}', space=vmem, size = 0x4000, scoped, tag = 'input window, operand 25, single buffered']
    #allocation23 [shape = 'u8[32768]{0}', space=vmem, size = 0x8000, scoped, tag = 'output window, operand 0, single buffered']
    %33 = vsyncpa [#allocation3], 0
    %34 = vsyncpa [#allocation6], 0
    %35 = vsyncpa [#allocation9], 0
    %36 = vsyncpa [#allocation12], 0
    %37 = vsyncpa [#allocation15], 0
    %38 = vsyncpa [#allocation18], 0
    %39 = vsyncpa [#allocation21], 0
    %40 = vsyncpa [#allocation4], 0
    // Predicated region
    $region2: #{tpu_custom_call.1} parent=1 // pred_check
      _
    $region3: #{tpu_custom_call.1} parent=1 // pred_check_branch
      %42 = sbr.rel (0) target = $region5
    $region4: #{tpu_custom_call.1} parent=1 // pred_region
      _
    $region5: #{tpu_custom_call.1} parent=1 // pred_fallthru
      _
    // Predicated region
    $region6: #{tpu_custom_call.1} parent=1 // pred_check
      _
    $region7: #{tpu_custom_call.1} parent=1 // pred_check_branch
      %44 = sbr.rel (0) target = $region9
    $region8: #{tpu_custom_call.1} parent=1 // pred_region
      %s46 = ssub.s32 128, 128
      %47 = vsyncadd [#allocation3], %s46
      %s48 = sshll.u32 [#allocation2], 4
      %s49 = int_to_ptr.vmem [resolvable:$true] %s48
      %54 = dma.hbm_to_vmem [thread:$0]  %s1, 128, %s49, [#allocation3], 64, 64, 4
    $region9: #{tpu_custom_call.1} parent=1 // pred_fallthru
      _
    // Predicated region
    $region10: #{tpu_custom_call.1} parent=1 // pred_check
      _
    $region11: #{tpu_custom_call.1} parent=1 // pred_check_branch
      %56 = sbr.rel (0) target = $region13
    $region12: #{tpu_custom_call.1} parent=1 // pred_region
      %s58 = ssub.s32 256, 256
      %59 = vsyncadd [#allocation6], %s58
      %s60 = sshll.u32 [#allocation5], 4
      %s61 = int_to_ptr.vmem [resolvable:$true] %s60
      %66 = dma.hbm_to_vmem [thread:$0]  %s2, 256, %s61, [#allocation6], 64, 64, 4
    $region13: #{tpu_custom_call.1} parent=1 // pred_fallthru
      _
    // Predicated region
    $region14: #{tpu_custom_call.1} parent=1 // pred_check
      _
    $region15: #{tpu_custom_call.1} parent=1 // pred_check_branch
      %68 = sbr.rel (0) target = $region17
    $region16: #{tpu_custom_call.1} parent=1 // pred_region
      _
    $region17: #{tpu_custom_call.1} parent=1 // pred_fallthru
      _
    // Predicated region
    $region18: #{tpu_custom_call.1} parent=1 // pred_check
      _
    $region19: #{tpu_custom_call.1} parent=1 // pred_check_branch
      %70 = sbr.rel (0) target = $region21
    $region20: #{tpu_custom_call.1} parent=1 // pred_region
      _
    $region21: #{tpu_custom_call.1} parent=1 // pred_fallthru
      _
    // Predicated region
    $region22: #{tpu_custom_call.1} parent=1 // pred_check
      _
    $region23: #{tpu_custom_call.1} parent=1 // pred_check_branch
      %72 = sbr.rel (0) target = $region25
    $region24: #{tpu_custom_call.1} parent=1 // pred_region
      _
    $region25: #{tpu_custom_call.1} parent=1 // pred_fallthru
      _
    // Predicated region
    $region26: #{tpu_custom_call.1} parent=1 // pred_check
      _
    $region27: #{tpu_custom_call.1} parent=1 // pred_check_branch
      %74 = sbr.rel (0) target = $region29
    $region28: #{tpu_custom_call.1} parent=1 // pred_region
      %s76 = ssub.s32 16, 16
      %77 = vsyncadd [#allocation6], %s76
      %s79 = sshll.u32 [#allocation7], 4
      %s80 = int_to_ptr.vmem [resolvable:$true] %s79
      %82 = dma.hbm_to_vmem [thread:$0]  %s6, 16, %s80, [#allocation6]
    $region29: #{tpu_custom_call.1} parent=1 // pred_fallthru
      _
    // Predicated region
    $region30: #{tpu_custom_call.1} parent=1 // pred_check
      _
    $region31: #{tpu_custom_call.1} parent=1 // pred_check_branch
      %84 = sbr.rel (0) target = $region33
    $region32: #{tpu_custom_call.1} parent=1 // pred_region
      %s86 = ssub.s32 16, 16
      %87 = vsyncadd [#allocation9], %s86
      %s89 = sshll.u32 [#allocation8], 4
      %s90 = int_to_ptr.vmem [resolvable:$true] %s89
      %92 = dma.hbm_to_vmem [thread:$0]  %s7, 16, %s90, [#allocation9]
    $region33: #{tpu_custom_call.1} parent=1 // pred_fallthru
      _
    // Predicated region
    $region34: #{tpu_custom_call.1} parent=1 // pred_check
      _
    $region35: #{tpu_custom_call.1} parent=1 // pred_check_branch
      %94 = sbr.rel (0) target = $region37
    $region36: #{tpu_custom_call.1} parent=1 // pred_region
      %s96 = ssub.s32 16, 16
      %97 = vsyncadd [#allocation9], %s96
      %s99 = sshll.u32 [#allocation10], 4
      %s100 = int_to_ptr.vmem [resolvable:$true] %s99
      %102 = dma.hbm_to_vmem [thread:$0]  %s8, 16, %s100, [#allocation9]
    $region37: #{tpu_custom_call.1} parent=1 // pred_fallthru
      _
    // Predicated region
    $region38: #{tpu_custom_call.1} parent=1 // pred_check
      _
    $region39: #{tpu_custom_call.1} parent=1 // pred_check_branch
      %104 = sbr.rel (0) target = $region41
    $region40: #{tpu_custom_call.1} parent=1 // pred_region
      %s106 = ssub.s32 16, 16
      %107 = vsyncadd [#allocation12], %s106
      %s109 = sshll.u32 [#allocation11], 4
      %s110 = int_to_ptr.vmem [resolvable:$true] %s109
      %112 = dma.hbm_to_vmem [thread:$0]  %s9, 16, %s110, [#allocation12]
    $region41: #{tpu_custom_call.1} parent=1 // pred_fallthru
      _
    // Predicated region
    $region42: #{tpu_custom_call.1} parent=1 // pred_check
      _
    $region43: #{tpu_custom_call.1} parent=1 // pred_check_branch
      %114 = sbr.rel (0) target = $region45
    $region44: #{tpu_custom_call.1} parent=1 // pred_region
      %s116 = ssub.s32 16, 16
      %117 = vsyncadd [#allocation12], %s116
      %s119 = sshll.u32 [#allocation13], 4
      %s120 = int_to_ptr.vmem [resolvable:$true] %s119
      %122 = dma.hbm_to_vmem [thread:$0]  %s10, 16, %s120, [#allocation12]
    $region45: #{tpu_custom_call.1} parent=1 // pred_fallthru
      _
    // Predicated region
    $region46: #{tpu_custom_call.1} parent=1 // pred_check
      _
    $region47: #{tpu_custom_call.1} parent=1 // pred_check_branch
      %124 = sbr.rel (0) target = $region49
    $region48: #{tpu_custom_call.1} parent=1 // pred_region
      %s126 = ssub.s32 256, 256
      %127 = vsyncadd [#allocation15], %s126
      %s128 = sshll.u32 [#allocation14], 4
      %s129 = int_to_ptr.vmem [resolvable:$true] %s128
      %134 = dma.hbm_to_vmem [thread:$0]  %s11, 256, %s129, [#allocation15], 128, 128, 8
    $region49: #{tpu_custom_call.1} parent=1 // pred_fallthru
      _
    // Predicated region
    $region50: #{tpu_custom_call.1} parent=1 // pred_check
      _
    $region51: #{tpu_custom_call.1} parent=1 // pred_check_branch
      %136 = sbr.rel (0) target = $region53
    $region52: #{tpu_custom_call.1} parent=1 // pred_region
      %s138 = ssub.s32 128, 128
      %139 = vsyncadd [#allocation15], %s138
      %s141 = sshll.u32 [#allocation16], 4
      %s142 = int_to_ptr.vmem [resolvable:$true] %s141
      %144 = dma.hbm_to_vmem [thread:$0]  %s12, 128, %s142, [#allocation15]
    $region53: #{tpu_custom_call.1} parent=1 // pred_fallthru
      _
    // Predicated region
    $region54: #{tpu_custom_call.1} parent=1 // pred_check
      _
    $region55: #{tpu_custom_call.1} parent=1 // pred_check_branch
      %146 = sbr.rel (0) target = $region57
    $region56: #{tpu_custom_call.1} parent=1 // pred_region
      _
    $region57: #{tpu_custom_call.1} parent=1 // pred_fallthru
      _
    // Predicated region
    $region58: #{tpu_custom_call.1} parent=1 // pred_check
      _
    $region59: #{tpu_custom_call.1} parent=1 // pred_check_branch
      %148 = sbr.rel (0) target = $region61
    $region60: #{tpu_custom_call.1} parent=1 // pred_region
      _
    $region61: #{tpu_custom_call.1} parent=1 // pred_fallthru
      _
    // Predicated region
    $region62: #{tpu_custom_call.1} parent=1 // pred_check
      _
    $region63: #{tpu_custom_call.1} parent=1 // pred_check_branch
      %150 = sbr.rel (0) target = $region65
    $region64: #{tpu_custom_call.1} parent=1 // pred_region
      _
    $region65: #{tpu_custom_call.1} parent=1 // pred_fallthru
      _
    // Predicated region
    $region66: #{tpu_custom_call.1} parent=1 // pred_check
      _
    $region67: #{tpu_custom_call.1} parent=1 // pred_check_branch
      %152 = sbr.rel (0) target = $region69
    $region68: #{tpu_custom_call.1} parent=1 // pred_region
      _
    $region69: #{tpu_custom_call.1} parent=1 // pred_fallthru
      _
    // Predicated region
    $region70: #{tpu_custom_call.1} parent=1 // pred_check
      _
    $region71: #{tpu_custom_call.1} parent=1 // pred_check_branch
      %154 = sbr.rel (0) target = $region73
    $region72: #{tpu_custom_call.1} parent=1 // pred_region
      %s156 = ssub.s32 256, 256
      %157 = vsyncadd [#allocation18], %s156
      %s158 = sshll.u32 [#allocation17], 4
      %s159 = int_to_ptr.vmem [resolvable:$true] %s158
      %164 = dma.hbm_to_vmem [thread:$0]  %s17, 256, %s159, [#allocation18], 128, 128, 8
    $region73: #{tpu_custom_call.1} parent=1 // pred_fallthru
      _
    // Predicated region
    $region74: #{tpu_custom_call.1} parent=1 // pred_check
      _
    $region75: #{tpu_custom_call.1} parent=1 // pred_check_branch
      %166 = sbr.rel (0) target = $region77
    $region76: #{tpu_custom_call.1} parent=1 // pred_region
      %s168 = ssub.s32 16, 16
      %169 = vsyncadd [#allocation18], %s168
      %s171 = sshll.u32 [#allocation19], 4
      %s172 = int_to_ptr.vmem [resolvable:$true] %s171
      %174 = dma.hbm_to_vmem [thread:$0]  %s18, 16, %s172, [#allocation18]
    $region77: #{tpu_custom_call.1} parent=1 // pred_fallthru
      _
    // Predicated region
    $region78: #{tpu_custom_call.1} parent=1 // pred_check
      _
    $region79: #{tpu_custom_call.1} parent=1 // pred_check_branch
      %176 = sbr.rel (0) target = $region81
    $region80: #{tpu_custom_call.1} parent=1 // pred_region
      _
    $region81: #{tpu_custom_call.1} parent=1 // pred_fallthru
      _
    // Predicated region
    $region82: #{tpu_custom_call.1} parent=1 // pred_check
      _
    $region83: #{tpu_custom_call.1} parent=1 // pred_check_branch
      %178 = sbr.rel (0) target = $region85
    $region84: #{tpu_custom_call.1} parent=1 // pred_region
      %s180 = ssub.s32 128, 128
      %181 = vsyncadd [#allocation21], %s180
      %s183 = sshll.u32 [#allocation20], 4
      %s184 = int_to_ptr.vmem [resolvable:$true] %s183
      %186 = dma.hbm_to_vmem [thread:$0]  %s20, 128, %s184, [#allocation21]
    $region85: #{tpu_custom_call.1} parent=1 // pred_fallthru
      _
    // Predicated region
    $region86: #{tpu_custom_call.1} parent=1 // pred_check
      _
    $region87: #{tpu_custom_call.1} parent=1 // pred_check_branch
      %188 = sbr.rel (0) target = $region89
    $region88: #{tpu_custom_call.1} parent=1 // pred_region
      _
    $region89: #{tpu_custom_call.1} parent=1 // pred_fallthru
      _
    // Predicated region
    $region90: #{tpu_custom_call.1} parent=1 // pred_check
      _
    $region91: #{tpu_custom_call.1} parent=1 // pred_check_branch
      %190 = sbr.rel (0) target = $region93
    $region92: #{tpu_custom_call.1} parent=1 // pred_region
      _
    $region93: #{tpu_custom_call.1} parent=1 // pred_fallthru
      _
    // Predicated region
    $region94: #{tpu_custom_call.1} parent=1 // pred_check
      _
    $region95: #{tpu_custom_call.1} parent=1 // pred_check_branch
      %192 = sbr.rel (0) target = $region97
    $region96: #{tpu_custom_call.1} parent=1 // pred_region
      _
    $region97: #{tpu_custom_call.1} parent=1 // pred_fallthru
      _
    // Predicated region
    $region98: #{tpu_custom_call.1} parent=1 // pred_check
      _
    $region99: #{tpu_custom_call.1} parent=1 // pred_check_branch
      %194 = sbr.rel (0) target = $region101
    $region100: #{tpu_custom_call.1} parent=1 // pred_region
      _
    $region101: #{tpu_custom_call.1} parent=1 // pred_fallthru
      _
    // Predicated region
    $region102: #{tpu_custom_call.1} parent=1 // pred_check
      _
    $region103: #{tpu_custom_call.1} parent=1 // pred_check_branch
      %196 = sbr.rel (0) target = $region105
    $region104: #{tpu_custom_call.1} parent=1 // pred_region
      %s198 = ssub.s32 512, 512
      %199 = vsyncadd [#allocation21], %s198
      %s200 = sshll.u32 [#allocation22], 4
      %s201 = int_to_ptr.vmem [resolvable:$true] %s200
      %206 = dma.hbm_to_vmem [thread:$0]  %s25, 512, %s201, [#allocation21], 128, 128, 8
    $region105: #{tpu_custom_call.1} parent=1 // pred_fallthru
      _
    // Predicated region
    $region106: #{tpu_custom_call.1} parent=1 // pred_check
      _
    $region107: #{tpu_custom_call.1} parent=1 // pred_check_branch
      %208 = sbr.rel (0) target = $region109
    $region108: #{tpu_custom_call.1} parent=1 // pred_region
      _
    $region109: #{tpu_custom_call.1} parent=1 // pred_fallthru
      _
    // Predicated region
    $region110: #{tpu_custom_call.1} parent=1 // pred_check
      _
    $region111: #{tpu_custom_call.1} parent=1 // pred_check_branch
      %210 = sbr.rel (0) target = $region113
    $region112: #{tpu_custom_call.1} parent=1 // pred_region
      _
    $region113: #{tpu_custom_call.1} parent=1 // pred_fallthru
      _
    // Predicated region
    $region114: #{tpu_custom_call.1} parent=1 // pred_check
      _
    $region115: #{tpu_custom_call.1} parent=1 // pred_check_branch
      %212 = sbr.rel (0) target = $region117
    $region116: #{tpu_custom_call.1} parent=1 // pred_region
      %213 = dma.done [#allocation3], 128
    $region117: #{tpu_custom_call.1} parent=1 // pred_fallthru
      _
    // Predicated region
    $region118: #{tpu_custom_call.1} parent=1 // pred_check
      _
    $region119: #{tpu_custom_call.1} parent=1 // pred_check_branch
      %215 = sbr.rel (0) target = $region121
    $region120: #{tpu_custom_call.1} parent=1 // pred_region
      %216 = dma.done [#allocation6], 256
    $region121: #{tpu_custom_call.1} parent=1 // pred_fallthru
      _
    // Predicated region
    $region122: #{tpu_custom_call.1} parent=1 // pred_check
      _
    $region123: #{tpu_custom_call.1} parent=1 // pred_check_branch
      %218 = sbr.rel (0) target = $region125
    $region124: #{tpu_custom_call.1} parent=1 // pred_region
      %219 = dma.done [#allocation6], 16
    $region125: #{tpu_custom_call.1} parent=1 // pred_fallthru
      _
    // Predicated region
    $region126: #{tpu_custom_call.1} parent=1 // pred_check
      _
    $region127: #{tpu_custom_call.1} parent=1 // pred_check_branch
      %221 = sbr.rel (0) target = $region129
    $region128: #{tpu_custom_call.1} parent=1 // pred_region
      %222 = dma.done [#allocation9], 16
    $region129: #{tpu_custom_call.1} parent=1 // pred_fallthru
      _
    // Predicated region
    $region130: #{tpu_custom_call.1} parent=1 // pred_check
      _
    $region131: #{tpu_custom_call.1} parent=1 // pred_check_branch
      %224 = sbr.rel (0) target = $region133
    $region132: #{tpu_custom_call.1} parent=1 // pred_region
      %225 = dma.done [#allocation9], 16
    $region133: #{tpu_custom_call.1} parent=1 // pred_fallthru
      _
    // Predicated region
    $region134: #{tpu_custom_call.1} parent=1 // pred_check
      _
    $region135: #{tpu_custom_call.1} parent=1 // pred_check_branch
      %227 = sbr.rel (0) target = $region137
    $region136: #{tpu_custom_call.1} parent=1 // pred_region
      %228 = dma.done [#allocation12], 16
    $region137: #{tpu_custom_call.1} parent=1 // pred_fallthru
      _
    // Predicated region
    $region138: #{tpu_custom_call.1} parent=1 // pred_check
      _
    $region139: #{tpu_custom_call.1} parent=1 // pred_check_branch
      %230 = sbr.rel (0) target = $region141
    $region140: #{tpu_custom_call.1} parent=1 // pred_region
      %231 = dma.done [#allocation12], 16
    $region141: #{tpu_custom_call.1} parent=1 // pred_fallthru
      _
    // Predicated region
    $region142: #{tpu_custom_call.1} parent=1 // pred_check
      _
    $region143: #{tpu_custom_call.1} parent=1 // pred_check_branch
      %233 = sbr.rel (0) target = $region145
    $region144: #{tpu_custom_call.1} parent=1 // pred_region
      %234 = dma.done [#allocation15], 256
    $region145: #{tpu_custom_call.1} parent=1 // pred_fallthru
      _
    // Predicated region
    $region146: #{tpu_custom_call.1} parent=1 // pred_check
      _
    $region147: #{tpu_custom_call.1} parent=1 // pred_check_branch
      %236 = sbr.rel (0) target = $region149
    $region148: #{tpu_custom_call.1} parent=1 // pred_region
      %237 = dma.done [#allocation15], 128
    $region149: #{tpu_custom_call.1} parent=1 // pred_fallthru
      _
    // Predicated region
    $region150: #{tpu_custom_call.1} parent=1 // pred_check
      _
    $region151: #{tpu_custom_call.1} parent=1 // pred_check_branch
      %239 = sbr.rel (0) target = $region153
    $region152: #{tpu_custom_call.1} parent=1 // pred_region
      %240 = dma.done [#allocation18], 256
    $region153: #{tpu_custom_call.1} parent=1 // pred_fallthru
      _
    // Predicated region
    $region154: #{tpu_custom_call.1} parent=1 // pred_check
      _
    $region155: #{tpu_custom_call.1} parent=1 // pred_check_branch
      %242 = sbr.rel (0) target = $region157
    $region156: #{tpu_custom_call.1} parent=1 // pred_region
      %243 = dma.done [#allocation18], 16
    $region157: #{tpu_custom_call.1} parent=1 // pred_fallthru
      _
    // Predicated region
    $region158: #{tpu_custom_call.1} parent=1 // pred_check
      _
    $region159: #{tpu_custom_call.1} parent=1 // pred_check_branch
      %245 = sbr.rel (0) target = $region161
    $region160: #{tpu_custom_call.1} parent=1 // pred_region
      %246 = dma.done [#allocation21], 128
    $region161: #{tpu_custom_call.1} parent=1 // pred_fallthru
      _
    // Predicated region
    $region162: #{tpu_custom_call.1} parent=1 // pred_check
      _
    $region163: #{tpu_custom_call.1} parent=1 // pred_check_branch
      %248 = sbr.rel (0) target = $region165
    $region164: #{tpu_custom_call.1} parent=1 // pred_region
      %249 = dma.done [#allocation21], 512
    $region165: #{tpu_custom_call.1} parent=1 // pred_fallthru
      _
    %v251 = vld [vmem:[%s0] sm:$0xf]
    %v252 = vld [vmem:[%s0 + $0x4] sm:$0xf]
    %v253 = vld [vmem:[%s0 + $0x8] sm:$0xf]
    %v254 = vld [vmem:[%s0 + $0xc] sm:$0xf]
    %v255 = vld [vmem:[#allocation2] sm:$0xf]
    %v256 = vld [vmem:[#allocation2 + $0x4] sm:$0xf]
    %v257 = vld [vmem:[#allocation5] sm:$0xf]
    %v258 = vld [vmem:[#allocation5 + $0x4] sm:$0xf]
    %v259 = vld [vmem:[#allocation5 + $0x8] sm:$0xf]
    %v260 = vld [vmem:[#allocation5 + $0xc] sm:$0xf]
    %v261 = vld [vmem:[#allocation14] sm:$0xff]
    %v262 = vld [vmem:[#allocation14 + $0x8] sm:$0xff]
    %v263 = vld [vmem:[#allocation16] sm:$0xff]
    %v264 = vld [vmem:[%s13] sm:$0x1]
    %v265 = vld [vmem:[%s14] sm:$0xff]
    %v266 = vld [vmem:[%s14 + $0x8] sm:$0xff]
    %v267 = vld [vmem:[%s14 + $0x10] sm:$0xff]
    %v268 = vld [vmem:[%s14 + $0x18] sm:$0xff]
    %v269 = vld [vmem:[%s15] sm:$0x1]
    %v270 = vld [vmem:[%s16] sm:$0xff]
    %v271 = vld [vmem:[%s16 + $0x8] sm:$0xff]
    %v272 = vld [vmem:[%s16 + $0x10] sm:$0xff]
    %v273 = vld [vmem:[%s16 + $0x18] sm:$0xff]
    %v274 = vld [vmem:[#allocation17] sm:$0xff]
    %v275 = vld [vmem:[#allocation17 + $0x8] sm:$0xff]
    %v276 = vld [vmem:[#allocation19] sm:$0x1]
    %v277 = vld [vmem:[%s19] sm:$0xff]
    %v278 = vld [vmem:[%s19 + $0x8] sm:$0xff]
    %v279 = vld [vmem:[%s19 + $0x10] sm:$0xff]
    %v280 = vld [vmem:[%s19 + $0x18] sm:$0xff]
    %v281 = vld [vmem:[#allocation20] sm:$0xff]
    %v282 = vld [vmem:[%s21] sm:$0x1]
    %v283 = vld [vmem:[%s22] sm:$0xff]
    %v284 = vld [vmem:[%s22 + $0x8] sm:$0xff]
    %v285 = vld [vmem:[%s22 + $0x10] sm:$0xff]
    %v286 = vld [vmem:[%s22 + $0x18] sm:$0xff]
    %v287 = vld [vmem:[%s23] sm:$0x1]
    %v288 = vld [vmem:[%s24] sm:$0xff]
    %v289 = vld [vmem:[%s24 + $0x8] sm:$0xff]
    %v290 = vld [vmem:[%s24 + $0x10] sm:$0xff]
    %v291 = vld [vmem:[%s24 + $0x18] sm:$0xff]
    %v292 = vld [vmem:[#allocation22] sm:$0xff]
    %v293 = vld [vmem:[#allocation22 + $0x8] sm:$0xff]
    %v294 = vld [vmem:[#allocation22 + $0x10] sm:$0xff]
    %v295 = vld [vmem:[#allocation22 + $0x18] sm:$0xff]
    %v296 = vld [vmem:[%s26] sm:$0x1]
    %v297 = vld [vmem:[%s27] sm:$0x1]
    %v298 = vld [vmem:[%s4] sm:$0xff]
    %v299 = vld [vmem:[%s4 + $0x8] sm:$0xff]
    %v300 = vld [vmem:[#allocation7] sm:$0x1]
    %302 = vset.pattern.permute.xlu0 0
    %303 = vperm.xlu0 %302, %v298
    %v304 = vpop.permute.xlu0 %303
    %307 = vset.pattern.permute.xlu0 0
    %308 = vperm.xlu0 %307, %v299
    %v309 = vpop.permute.xlu0 %308
    %v312 = vlaneseq
    %v313 = vshrl.u32 %v312, 7
    %v314 = vsub.s32 0, %v313
    %v315 = vrot.slane %v300, %v314
    %v317 = vmul.f32 %v304, %v315
    %v318 = vmul.f32 %v309, %v315
    %v319 = vld [vmem:[%s5] sm:$0xff]
    %v320 = vld [vmem:[%s5 + $0x8] sm:$0xff]
    %v321 = vld [vmem:[#allocation8] sm:$0x1]
    %323 = vset.pattern.permute.xlu0 0
    %324 = vperm.xlu0 %323, %v319
    %v325 = vpop.permute.xlu0 %324
    %328 = vset.pattern.permute.xlu0 0
    %329 = vperm.xlu0 %328, %v320
    %v330 = vpop.permute.xlu0 %329
    %v333 = vlaneseq
    %v334 = vshrl.u32 %v333, 7
    %v335 = vsub.s32 0, %v334
    %v336 = vrot.slane %v321, %v335
    %v338 = vmul.f32 %v325, %v336
    %v339 = vmul.f32 %v330, %v336
    %v340 = vadd.f32 %v317, %v338
    %v341 = vadd.f32 %v318, %v339
    %v342 = vld [vmem:[#allocation10] sm:$0x1]
    %v344 = vlaneseq
    %v345 = vshrl.u32 %v344, 7
    %v346 = vsub.s32 0, %v345
    %v347 = vrot.slane %v342, %v346
    %v349 = vadd.f32 %v340, %v347
    %v350 = vadd.f32 %v341, %v347
    %v351 = vmax.f32 %v349, 0.0
    %v352 = vmax.f32 %v350, 0.0
    %v353 = vld [vmem:[%s3] sm:$0xff]
    %v354 = vld [vmem:[%s3 + $0x8] sm:$0xff]
    %v355 = vld [vmem:[%s3 + $0x10] sm:$0xff]
    %v356 = vld [vmem:[%s3 + $0x18] sm:$0xff]
    %v357 = vld [vmem:[#allocation11] sm:$0x1]
    %359 = vset.pattern.permute.xlu0 0
    %360 = vperm.xlu0 %359, %v353
    %v361 = vpop.permute.xlu0 %360
    %364 = vset.pattern.permute.xlu0 0
    %365 = vperm.xlu0 %364, %v354
    %v366 = vpop.permute.xlu0 %365
    %369 = vset.pattern.permute.xlu0 0
    %370 = vperm.xlu0 %369, %v355
    %v371 = vpop.permute.xlu0 %370
    %374 = vset.pattern.permute.xlu0 0
    %375 = vperm.xlu0 %374, %v356
    %v376 = vpop.permute.xlu0 %375
    %v379 = vlaneseq
    %v380 = vshrl.u32 %v379, 7
    %v381 = vsub.s32 0, %v380
    %v382 = vrot.slane %v357, %v381
    %v384 = vmul.f32 %v361, %v382
    %v385 = vmul.f32 %v366, %v382
    %v386 = vmul.f32 %v371, %v382
    %v387 = vmul.f32 %v376, %v382
    %v388 = vld [vmem:[#allocation13] sm:$0x1]
    %v390 = vlaneseq
    %v391 = vshrl.u32 %v390, 7
    %v392 = vsub.s32 0, %v391
    %v393 = vrot.slane %v388, %v392
    %v395 = vadd.f32 %v384, %v393
    %v396 = vadd.f32 %v385, %v393
    %v397 = vadd.f32 %v386, %v393
    %v398 = vadd.f32 %v387, %v393
    %v399 = vmax.f32 %v395, 0.0
    %v400 = vmax.f32 %v396, 0.0
    %v401 = vmax.f32 %v397, 0.0
    %v402 = vmax.f32 %v398, 0.0
    %v403 = vpack.c.bf16 %v352, %v351
    %v408 = vunpack.c.l.b16 %v251
    %v409 = vunpack.c.l.b16 %v252
    %v410 = vunpack.c.l.b16 %v253
    %v411 = vunpack.c.l.b16 %v254
    %v412 = vpack.c.b16 %v409, %v408
    %v413 = vpack.c.b16 %v411, %v410
    %vm414 = vcmask 130048
    %v416 = vsel %vm414, %v412, 0
    %v419 = vsel %vm414, %v413, 0
    %421 = vmatprep.subr.bf16.mxu0 0
    %422 = vmatpush1.bf16.msra.mxu0 %v403
    %423 = vmatprep.subr.bf16.mxu0 0
    %424 = vmatpush1.bf16.msra.mxu0 0
    %425 = vmatprep.subr.bf16.mxu0 0
    %426 = vmatpush1.bf16.msra.mxu0 0
    %427 = vmatprep.subr.bf16.mxu0 0
    %428 = vmatpush1.bf16.msra.mxu0 0
    %429 = vmatprep.subr.bf16.mxu0 0
    %430 = vmatpush1.bf16.msra.mxu0 0
    %431 = vmatprep.subr.bf16.mxu0 0
    %432 = vmatpush1.bf16.msra.mxu0 0
    %433 = vmatprep.subr.bf16.mxu0 0
    %434 = vmatpush1.bf16.msra.mxu0 0
    %435 = vmatprep.subr.bf16.mxu0 0
    %436 = vmatpush1.bf16.msra.mxu0 0
    %437 = vmatprep.subr.bf16.mxu0 0
    %438 = vmatpush1.bf16.msra.mxu0 0
    %439 = vmatprep.subr.bf16.mxu0 0
    %440 = vmatpush1.bf16.msra.mxu0 0
    %441 = vmatprep.subr.bf16.mxu0 0
    %442 = vmatpush1.bf16.msra.mxu0 0
    %443 = vmatprep.subr.bf16.mxu0 0
    %444 = vmatpush1.bf16.msra.mxu0 0
    %445 = vmatprep.subr.bf16.mxu0 0
    %446 = vmatpush1.bf16.msra.mxu0 0
    %447 = vmatprep.subr.bf16.mxu0 0
    %448 = vmatpush1.bf16.msra.mxu0 0
    %449 = vmatprep.subr.bf16.mxu0 0
    %450 = vmatpush1.bf16.msra.mxu0 0
    %451 = vmatprep.subr.bf16.mxu0 0
    %452 = vmatpush1.bf16.msra.mxu0 0
    %453 = vmatprep.mubr.bf16.mxu0 0
    %454 = vmatmul.mubr.bf16.gmra.mrb[0].mxu0 %v416
    %v455 = vpop.f32.mrb[0].mxu0
    %v456 = vadd.f32 0.0, %v455
    %v457 = vpop.f32.mrb[0].mxu0
    %v458 = vpop.f32.mrb[0].mxu0
    %v459 = vadd.f32 0.0, %v458
    %v460 = vpop.f32.mrb[0].mxu0
    %461 = vmatprep.mubr.bf16.mxu0 0
    %462 = vmatmul.mubr.bf16.gmra.mrb[0].mxu0 %v419
    %v463 = vpop.f32.mrb[0].mxu0
    %v464 = vadd.f32 0.0, %v463
    %v465 = vpop.f32.mrb[0].mxu0
    %v466 = vpop.f32.mrb[0].mxu0
    %v467 = vadd.f32 0.0, %v466
    %v468 = vpop.f32.mrb[0].mxu0
    %469 = vdwg.mxu0
    %vm470 = vcmask 64512
    %v472 = vsel %vm470, %v399, 0
    %v475 = vsel %vm470, %v400, 0
    %v478 = vsel %vm470, %v401, 0
    %v481 = vsel %vm470, %v402, 0
    %483 = vmatprep.subr.mxu0 0.0
    %484 = vmatpush1.msra.mxu0 %v263
    %485 = vmatprep.subr.mxu0 0.0
    %486 = vmatpush1.msra.mxu0 0.0
    %487 = vmatprep.subr.mxu0 0.0
    %488 = vmatpush1.msra.mxu0 0.0
    %489 = vmatprep.subr.mxu0 0.0
    %490 = vmatpush1.msra.mxu0 0.0
    %491 = vmatprep.subr.mxu0 0.0
    %492 = vmatpush1.msra.mxu0 0.0
    %493 = vmatprep.subr.mxu0 0.0
    %494 = vmatpush1.msra.mxu0 0.0
    %495 = vmatprep.subr.mxu0 0.0
    %496 = vmatpush1.msra.mxu0 0.0
    %497 = vmatprep.subr.mxu0 0.0
    %498 = vmatpush1.msra.mxu0 0.0
    %499 = vmatprep.subr.mxu0 0.0
    %500 = vmatpush1.msra.mxu0 0.0
    %501 = vmatprep.subr.mxu0 0.0
    %502 = vmatpush1.msra.mxu0 0.0
    %503 = vmatprep.subr.mxu0 0.0
    %504 = vmatpush1.msra.mxu0 0.0
    %505 = vmatprep.subr.mxu0 0.0
    %506 = vmatpush1.msra.mxu0 0.0
    %507 = vmatprep.subr.mxu0 0.0
    %508 = vmatpush1.msra.mxu0 0.0
    %509 = vmatprep.subr.mxu0 0.0
    %510 = vmatpush1.msra.mxu0 0.0
    %511 = vmatprep.subr.mxu0 0.0
    %512 = vmatpush1.msra.mxu0 0.0
    %513 = vmatprep.subr.mxu0 0.0
    %514 = vmatpush1.msra.mxu0 0.0
    %515 = vmatprep.subr.mxu0 0.0
    %516 = vmatpush1.msra.mxu0 0.0
    %517 = vmatprep.subr.mxu0 0.0
    %518 = vmatpush1.msra.mxu0 0.0
    %519 = vmatprep.subr.mxu0 0.0
    %520 = vmatpush1.msra.mxu0 0.0
    %521 = vmatprep.subr.mxu0 0.0
    %522 = vmatpush1.msra.mxu0 0.0
    %523 = vmatprep.subr.mxu0 0.0
    %524 = vmatpush1.msra.mxu0 0.0
    %525 = vmatprep.subr.mxu0 0.0
    %526 = vmatpush1.msra.mxu0 0.0
    %527 = vmatprep.subr.mxu0 0.0
    %528 = vmatpush1.msra.mxu0 0.0
    %529 = vmatprep.subr.mxu0 0.0
    %530 = vmatpush1.msra.mxu0 0.0
    %531 = vmatprep.subr.mxu0 0.0
    %532 = vmatpush1.msra.mxu0 0.0
    %533 = vmatprep.subr.mxu0 0.0
    %534 = vmatpush1.msra.mxu0 0.0
    %535 = vmatprep.subr.mxu0 0.0
    %536 = vmatpush1.msra.mxu0 0.0
    %537 = vmatprep.subr.mxu0 0.0
    %538 = vmatpush1.msra.mxu0 0.0
    %539 = vmatprep.subr.mxu0 0.0
    %540 = vmatpush1.msra.mxu0 0.0
    %541 = vmatprep.subr.mxu0 0.0
    %542 = vmatpush1.msra.mxu0 0.0
    %543 = vmatprep.subr.mxu0 0.0
    %544 = vmatpush1.msra.mxu0 0.0
    %545 = vmatprep.subr.mxu0 0.0
    %546 = vmatpush1.msra.mxu0 0.0
    %547 = vmatprep.mubr.f32.mxu0 0.0
    %548 = vmatmul.mubr.f32.gmra.mrb[0].mxu0 %v472
    %v549 = vpop.f32.mrb[0].mxu0
    %v550 = vadd.f32 0.0, %v549
    %v551 = vpop.f32.mrb[0].mxu0
    %552 = vmatprep.mubr.f32.mxu0 0.0
    %553 = vmatmul.mubr.f32.gmra.mrb[0].mxu0 %v475
    %v554 = vpop.f32.mrb[0].mxu0
    %v555 = vadd.f32 0.0, %v554
    %v556 = vpop.f32.mrb[0].mxu0
    %557 = vmatprep.mubr.f32.mxu0 0.0
    %558 = vmatmul.mubr.f32.gmra.mrb[0].mxu0 %v478
    %v559 = vpop.f32.mrb[0].mxu0
    %v560 = vadd.f32 0.0, %v559
    %v561 = vpop.f32.mrb[0].mxu0
    %562 = vmatprep.mubr.f32.mxu0 0.0
    %563 = vmatmul.mubr.f32.gmra.mrb[0].mxu0 %v481
    %v564 = vpop.f32.mrb[0].mxu0
    %v565 = vadd.f32 0.0, %v564
    %v566 = vpop.f32.mrb[0].mxu0
    %567 = vdwg.mxu0
    %v569 = vsel %vm414, %v456, 0
    %v572 = vsel %vm414, %v459, 0
    %v575 = vsel %vm414, %v464, 0
    %v578 = vsel %vm414, %v467, 0
    %580 = vmatprep.subr.mxu0 0.0
    %581 = vmatpush1.msra.mxu0 %v261
    %582 = vmatprep.subr.mxu0 0.0
    %583 = vmatpush1.msra.mxu0 %v262
    %584 = vmatprep.subr.mxu0 0.0
    %585 = vmatpush1.msra.mxu0 0.0
    %586 = vmatprep.subr.mxu0 0.0
    %587 = vmatpush1.msra.mxu0 0.0
    %588 = vmatprep.subr.mxu0 0.0
    %589 = vmatpush1.msra.mxu0 0.0
    %590 = vmatprep.subr.mxu0 0.0
    %591 = vmatpush1.msra.mxu0 0.0
    %592 = vmatprep.subr.mxu0 0.0
    %593 = vmatpush1.msra.mxu0 0.0
    %594 = vmatprep.subr.mxu0 0.0
    %595 = vmatpush1.msra.mxu0 0.0
    %596 = vmatprep.subr.mxu0 0.0
    %597 = vmatpush1.msra.mxu0 0.0
    %598 = vmatprep.subr.mxu0 0.0
    %599 = vmatpush1.msra.mxu0 0.0
    %600 = vmatprep.subr.mxu0 0.0
    %601 = vmatpush1.msra.mxu0 0.0
    %602 = vmatprep.subr.mxu0 0.0
    %603 = vmatpush1.msra.mxu0 0.0
    %604 = vmatprep.subr.mxu0 0.0
    %605 = vmatpush1.msra.mxu0 0.0
    %606 = vmatprep.subr.mxu0 0.0
    %607 = vmatpush1.msra.mxu0 0.0
    %608 = vmatprep.subr.mxu0 0.0
    %609 = vmatpush1.msra.mxu0 0.0
    %610 = vmatprep.subr.mxu0 0.0
    %611 = vmatpush1.msra.mxu0 0.0
    %612 = vmatprep.subr.mxu0 0.0
    %613 = vmatpush1.msra.mxu0 0.0
    %614 = vmatprep.subr.mxu0 0.0
    %615 = vmatpush1.msra.mxu0 0.0
    %616 = vmatprep.subr.mxu0 0.0
    %617 = vmatpush1.msra.mxu0 0.0
    %618 = vmatprep.subr.mxu0 0.0
    %619 = vmatpush1.msra.mxu0 0.0
    %620 = vmatprep.subr.mxu0 0.0
    %621 = vmatpush1.msra.mxu0 0.0
    %622 = vmatprep.subr.mxu0 0.0
    %623 = vmatpush1.msra.mxu0 0.0
    %624 = vmatprep.subr.mxu0 0.0
    %625 = vmatpush1.msra.mxu0 0.0
    %626 = vmatprep.subr.mxu0 0.0
    %627 = vmatpush1.msra.mxu0 0.0
    %628 = vmatprep.subr.mxu0 0.0
    %629 = vmatpush1.msra.mxu0 0.0
    %630 = vmatprep.subr.mxu0 0.0
    %631 = vmatpush1.msra.mxu0 0.0
    %632 = vmatprep.subr.mxu0 0.0
    %633 = vmatpush1.msra.mxu0 0.0
    %634 = vmatprep.subr.mxu0 0.0
    %635 = vmatpush1.msra.mxu0 0.0
    %636 = vmatprep.subr.mxu0 0.0
    %637 = vmatpush1.msra.mxu0 0.0
    %638 = vmatprep.subr.mxu0 0.0
    %639 = vmatpush1.msra.mxu0 0.0
    %640 = vmatprep.subr.mxu0 0.0
    %641 = vmatpush1.msra.mxu0 0.0
    %642 = vmatprep.subr.mxu0 0.0
    %643 = vmatpush1.msra.mxu0 0.0
    %644 = vmatprep.mubr.f32.mxu0 0.0
    %645 = vmatmul.mubr.f32.gmra.mrb[0].mxu0 %v569
    %v646 = vpop.f32.mrb[0].mxu0
    %v647 = vadd.f32 %v550, %v646
    %v648 = vpop.f32.mrb[0].mxu0
    %649 = vmatprep.mubr.f32.mxu0 0.0
    %650 = vmatmul.mubr.f32.gmra.mrb[0].mxu0 %v572
    %v651 = vpop.f32.mrb[0].mxu0
    %v652 = vadd.f32 %v555, %v651
    %v653 = vpop.f32.mrb[0].mxu0
    %654 = vmatprep.mubr.f32.mxu0 0.0
    %655 = vmatmul.mubr.f32.gmra.mrb[0].mxu0 %v575
    %v656 = vpop.f32.mrb[0].mxu0
    %v657 = vadd.f32 %v560, %v656
    %v658 = vpop.f32.mrb[0].mxu0
    %659 = vmatprep.mubr.f32.mxu0 0.0
    %660 = vmatmul.mubr.f32.gmra.mrb[0].mxu0 %v578
    %v661 = vpop.f32.mrb[0].mxu0
    %v662 = vadd.f32 %v565, %v661
    %v663 = vpop.f32.mrb[0].mxu0
    %664 = vdwg.mxu0
    %v666 = vlaneseq
    %v667 = vshrl.u32 %v666, 7
    %v668 = vsub.s32 0, %v667
    %v669 = vrot.slane %v264, %v668
    %v671 = vadd.f32 %v647, %v669
    %v672 = vadd.f32 %v652, %v669
    %v673 = vadd.f32 %v657, %v669
    %v674 = vadd.f32 %v662, %v669
    %v675 = vmax.f32 %v671, 0.0
    %v676 = vmax.f32 %v672, 0.0
    %v677 = vmax.f32 %v673, 0.0
    %v678 = vmax.f32 %v674, 0.0
    %v679 = vlaneseq
    %v680 = vand.u32 %v679, 127
    %vm681 = vcmp.lt.s32.totalorder %v680, 3
    %v682 = vpack.c.bf16 %v676, %v675
    %v683 = vpack.c.bf16 %v678, %v677
    %v686 = vunpack.c.l.b16 %v255
    %v687 = vunpack.c.l.b16 %v256
    %v688 = vpack.c.b16 %v687, %v686
    %vm689 = vcmask 261120
    %v691 = vsel %vm689, %v688, 0
    %693 = vmatprep.subr.bf16.mxu0 0
    %694 = vmatpush1.bf16.msra.mxu0 %v682
    %695 = vmatprep.subr.bf16.mxu0 0
    %696 = vmatpush1.bf16.msra.mxu0 %v683
    %697 = vmatprep.subr.bf16.mxu0 0
    %698 = vmatpush1.bf16.msra.mxu0 0
    %699 = vmatprep.subr.bf16.mxu0 0
    %700 = vmatpush1.bf16.msra.mxu0 0
    %701 = vmatprep.subr.bf16.mxu0 0
    %702 = vmatpush1.bf16.msra.mxu0 0
    %703 = vmatprep.subr.bf16.mxu0 0
    %704 = vmatpush1.bf16.msra.mxu0 0
    %705 = vmatprep.subr.bf16.mxu0 0
    %706 = vmatpush1.bf16.msra.mxu0 0
    %707 = vmatprep.subr.bf16.mxu0 0
    %708 = vmatpush1.bf16.msra.mxu0 0
    %709 = vmatprep.subr.bf16.mxu0 0
    %710 = vmatpush1.bf16.msra.mxu0 0
    %711 = vmatprep.subr.bf16.mxu0 0
    %712 = vmatpush1.bf16.msra.mxu0 0
    %713 = vmatprep.subr.bf16.mxu0 0
    %714 = vmatpush1.bf16.msra.mxu0 0
    %715 = vmatprep.subr.bf16.mxu0 0
    %716 = vmatpush1.bf16.msra.mxu0 0
    %717 = vmatprep.subr.bf16.mxu0 0
    %718 = vmatpush1.bf16.msra.mxu0 0
    %719 = vmatprep.subr.bf16.mxu0 0
    %720 = vmatpush1.bf16.msra.mxu0 0
    %721 = vmatprep.subr.bf16.mxu0 0
    %722 = vmatpush1.bf16.msra.mxu0 0
    %723 = vmatprep.subr.bf16.mxu0 0
    %724 = vmatpush1.bf16.msra.mxu0 0
    %725 = vmatprep.mubr.bf16.mxu0 0
    %726 = vmatmul.mubr.bf16.gmra.mrb[0].mxu0 %v691
    %v727 = vpop.f32.mrb[0].mxu0
    %v728 = vadd.f32 0.0, %v727
    %v729 = vpop.f32.mrb[0].mxu0
    %v730 = vpop.f32.mrb[0].mxu0
    %v731 = vadd.f32 0.0, %v730
    %v732 = vpop.f32.mrb[0].mxu0
    %733 = vdwg.mxu0
    %v735 = vlaneseq
    %v736 = vshrl.u32 %v735, 7
    %v737 = vsub.s32 0, %v736
    %v738 = vrot.slane %v269, %v737
    %v741 = vsel %vm689, %v728, 0
    %v744 = vsel %vm689, %v731, 0
    %746 = vmatprep.subr.mxu0 0.0
    %747 = vmatpush1.msra.mxu0 %v265
    %748 = vmatprep.subr.mxu0 0.0
    %749 = vmatpush1.msra.mxu0 %v266
    %750 = vmatprep.subr.mxu0 0.0
    %751 = vmatpush1.msra.mxu0 %v267
    %752 = vmatprep.subr.mxu0 0.0
    %753 = vmatpush1.msra.mxu0 %v268
    %754 = vmatprep.subr.mxu0 0.0
    %755 = vmatpush1.msra.mxu0 0.0
    %756 = vmatprep.subr.mxu0 0.0
    %757 = vmatpush1.msra.mxu0 0.0
    %758 = vmatprep.subr.mxu0 0.0
    %759 = vmatpush1.msra.mxu0 0.0
    %760 = vmatprep.subr.mxu0 0.0
    %761 = vmatpush1.msra.mxu0 0.0
    %762 = vmatprep.subr.mxu0 0.0
    %763 = vmatpush1.msra.mxu0 0.0
    %764 = vmatprep.subr.mxu0 0.0
    %765 = vmatpush1.msra.mxu0 0.0
    %766 = vmatprep.subr.mxu0 0.0
    %767 = vmatpush1.msra.mxu0 0.0
    %768 = vmatprep.subr.mxu0 0.0
    %769 = vmatpush1.msra.mxu0 0.0
    %770 = vmatprep.subr.mxu0 0.0
    %771 = vmatpush1.msra.mxu0 0.0
    %772 = vmatprep.subr.mxu0 0.0
    %773 = vmatpush1.msra.mxu0 0.0
    %774 = vmatprep.subr.mxu0 0.0
    %775 = vmatpush1.msra.mxu0 0.0
    %776 = vmatprep.subr.mxu0 0.0
    %777 = vmatpush1.msra.mxu0 0.0
    %778 = vmatprep.subr.mxu0 0.0
    %779 = vmatpush1.msra.mxu0 0.0
    %780 = vmatprep.subr.mxu0 0.0
    %781 = vmatpush1.msra.mxu0 0.0
    %782 = vmatprep.subr.mxu0 0.0
    %783 = vmatpush1.msra.mxu0 0.0
    %784 = vmatprep.subr.mxu0 0.0
    %785 = vmatpush1.msra.mxu0 0.0
    %786 = vmatprep.subr.mxu0 0.0
    %787 = vmatpush1.msra.mxu0 0.0
    %788 = vmatprep.subr.mxu0 0.0
    %789 = vmatpush1.msra.mxu0 0.0
    %790 = vmatprep.subr.mxu0 0.0
    %791 = vmatpush1.msra.mxu0 0.0
    %792 = vmatprep.subr.mxu0 0.0
    %793 = vmatpush1.msra.mxu0 0.0
    %794 = vmatprep.subr.mxu0 0.0
    %795 = vmatpush1.msra.mxu0 0.0
    %796 = vmatprep.subr.mxu0 0.0
    %797 = vmatpush1.msra.mxu0 0.0
    %798 = vmatprep.subr.mxu0 0.0
    %799 = vmatpush1.msra.mxu0 0.0
    %800 = vmatprep.subr.mxu0 0.0
    %801 = vmatpush1.msra.mxu0 0.0
    %802 = vmatprep.subr.mxu0 0.0
    %803 = vmatpush1.msra.mxu0 0.0
    %804 = vmatprep.subr.mxu0 0.0
    %805 = vmatpush1.msra.mxu0 0.0
    %806 = vmatprep.subr.mxu0 0.0
    %807 = vmatpush1.msra.mxu0 0.0
    %808 = vmatprep.subr.mxu0 0.0
    %809 = vmatpush1.msra.mxu0 0.0
    %810 = vmatprep.mubr.f32.mxu0 0.0
    %811 = vmatmul.mubr.f32.gmra.mrb[0].mxu0 %v741
    %v812 = vpop.f32.mrb[0].mxu0
    %v813 = vadd.f32 %v738, %v812
    %v814 = vpop.f32.mrb[0].mxu0
    %815 = vmatprep.mubr.f32.mxu0 0.0
    %816 = vmatmul.mubr.f32.gmra.mrb[0].mxu0 %v744
    %v817 = vpop.f32.mrb[0].mxu0
    %v818 = vadd.f32 %v738, %v817
    %v819 = vpop.f32.mrb[0].mxu0
    %820 = vdwg.mxu0
    %v821 = vmax.f32 %v813, 0.0
    %v822 = vmax.f32 %v818, 0.0
    %v824 = vsel %vm414, %v351, 0
    %v827 = vsel %vm414, %v352, 0
    %829 = vmatprep.subr.mxu0 0.0
    %830 = vmatpush1.msra.mxu0 %v274
    %831 = vmatprep.subr.mxu0 0.0
    %832 = vmatpush1.msra.mxu0 %v275
    %833 = vmatprep.subr.mxu0 0.0
    %834 = vmatpush1.msra.mxu0 0.0
    %835 = vmatprep.subr.mxu0 0.0
    %836 = vmatpush1.msra.mxu0 0.0
    %837 = vmatprep.subr.mxu0 0.0
    %838 = vmatpush1.msra.mxu0 0.0
    %839 = vmatprep.subr.mxu0 0.0
    %840 = vmatpush1.msra.mxu0 0.0
    %841 = vmatprep.subr.mxu0 0.0
    %842 = vmatpush1.msra.mxu0 0.0
    %843 = vmatprep.subr.mxu0 0.0
    %844 = vmatpush1.msra.mxu0 0.0
    %845 = vmatprep.subr.mxu0 0.0
    %846 = vmatpush1.msra.mxu0 0.0
    %847 = vmatprep.subr.mxu0 0.0
    %848 = vmatpush1.msra.mxu0 0.0
    %849 = vmatprep.subr.mxu0 0.0
    %850 = vmatpush1.msra.mxu0 0.0
    %851 = vmatprep.subr.mxu0 0.0
    %852 = vmatpush1.msra.mxu0 0.0
    %853 = vmatprep.subr.mxu0 0.0
    %854 = vmatpush1.msra.mxu0 0.0
    %855 = vmatprep.subr.mxu0 0.0
    %856 = vmatpush1.msra.mxu0 0.0
    %857 = vmatprep.subr.mxu0 0.0
    %858 = vmatpush1.msra.mxu0 0.0
    %859 = vmatprep.subr.mxu0 0.0
    %860 = vmatpush1.msra.mxu0 0.0
    %861 = vmatprep.subr.mxu0 0.0
    %862 = vmatpush1.msra.mxu0 0.0
    %863 = vmatprep.subr.mxu0 0.0
    %864 = vmatpush1.msra.mxu0 0.0
    %865 = vmatprep.subr.mxu0 0.0
    %866 = vmatpush1.msra.mxu0 0.0
    %867 = vmatprep.subr.mxu0 0.0
    %868 = vmatpush1.msra.mxu0 0.0
    %869 = vmatprep.subr.mxu0 0.0
    %870 = vmatpush1.msra.mxu0 0.0
    %871 = vmatprep.subr.mxu0 0.0
    %872 = vmatpush1.msra.mxu0 0.0
    %873 = vmatprep.subr.mxu0 0.0
    %874 = vmatpush1.msra.mxu0 0.0
    %875 = vmatprep.subr.mxu0 0.0
    %876 = vmatpush1.msra.mxu0 0.0
    %877 = vmatprep.subr.mxu0 0.0
    %878 = vmatpush1.msra.mxu0 0.0
    %879 = vmatprep.subr.mxu0 0.0
    %880 = vmatpush1.msra.mxu0 0.0
    %881 = vmatprep.subr.mxu0 0.0
    %882 = vmatpush1.msra.mxu0 0.0
    %883 = vmatprep.subr.mxu0 0.0
    %884 = vmatpush1.msra.mxu0 0.0
    %885 = vmatprep.subr.mxu0 0.0
    %886 = vmatpush1.msra.mxu0 0.0
    %887 = vmatprep.subr.mxu0 0.0
    %888 = vmatpush1.msra.mxu0 0.0
    %889 = vmatprep.subr.mxu0 0.0
    %890 = vmatpush1.msra.mxu0 0.0
    %891 = vmatprep.subr.mxu0 0.0
    %892 = vmatpush1.msra.mxu0 0.0
    %893 = vmatprep.mubr.f32.mxu0 0.0
    %894 = vmatmul.mubr.f32.gmra.mrb[0].mxu0 %v824
    %v895 = vpop.f32.mrb[0].mxu0
    %v896 = vadd.f32 0.0, %v895
    %v897 = vpop.f32.mrb[0].mxu0
    %898 = vmatprep.mubr.f32.mxu0 0.0
    %899 = vmatmul.mubr.f32.gmra.mrb[0].mxu0 %v827
    %v900 = vpop.f32.mrb[0].mxu0
    %v901 = vadd.f32 0.0, %v900
    %v902 = vpop.f32.mrb[0].mxu0
    %903 = vdwg.mxu0
    %v905 = vsel %vm689, %v821, 0
    %v908 = vsel %vm689, %v822, 0
    %910 = vmatprep.subr.mxu0 0.0
    %911 = vmatpush1.msra.mxu0 %v270
    %912 = vmatprep.subr.mxu0 0.0
    %913 = vmatpush1.msra.mxu0 %v271
    %914 = vmatprep.subr.mxu0 0.0
    %915 = vmatpush1.msra.mxu0 %v272
    %916 = vmatprep.subr.mxu0 0.0
    %917 = vmatpush1.msra.mxu0 %v273
    %918 = vmatprep.subr.mxu0 0.0
    %919 = vmatpush1.msra.mxu0 0.0
    %920 = vmatprep.subr.mxu0 0.0
    %921 = vmatpush1.msra.mxu0 0.0
    %922 = vmatprep.subr.mxu0 0.0
    %923 = vmatpush1.msra.mxu0 0.0
    %924 = vmatprep.subr.mxu0 0.0
    %925 = vmatpush1.msra.mxu0 0.0
    %926 = vmatprep.subr.mxu0 0.0
    %927 = vmatpush1.msra.mxu0 0.0
    %928 = vmatprep.subr.mxu0 0.0
    %929 = vmatpush1.msra.mxu0 0.0
    %930 = vmatprep.subr.mxu0 0.0
    %931 = vmatpush1.msra.mxu0 0.0
    %932 = vmatprep.subr.mxu0 0.0
    %933 = vmatpush1.msra.mxu0 0.0
    %934 = vmatprep.subr.mxu0 0.0
    %935 = vmatpush1.msra.mxu0 0.0
    %936 = vmatprep.subr.mxu0 0.0
    %937 = vmatpush1.msra.mxu0 0.0
    %938 = vmatprep.subr.mxu0 0.0
    %939 = vmatpush1.msra.mxu0 0.0
    %940 = vmatprep.subr.mxu0 0.0
    %941 = vmatpush1.msra.mxu0 0.0
    %942 = vmatprep.subr.mxu0 0.0
    %943 = vmatpush1.msra.mxu0 0.0
    %944 = vmatprep.subr.mxu0 0.0
    %945 = vmatpush1.msra.mxu0 0.0
    %946 = vmatprep.subr.mxu0 0.0
    %947 = vmatpush1.msra.mxu0 0.0
    %948 = vmatprep.subr.mxu0 0.0
    %949 = vmatpush1.msra.mxu0 0.0
    %950 = vmatprep.subr.mxu0 0.0
    %951 = vmatpush1.msra.mxu0 0.0
    %952 = vmatprep.subr.mxu0 0.0
    %953 = vmatpush1.msra.mxu0 0.0
    %954 = vmatprep.subr.mxu0 0.0
    %955 = vmatpush1.msra.mxu0 0.0
    %956 = vmatprep.subr.mxu0 0.0
    %957 = vmatpush1.msra.mxu0 0.0
    %958 = vmatprep.subr.mxu0 0.0
    %959 = vmatpush1.msra.mxu0 0.0
    %960 = vmatprep.subr.mxu0 0.0
    %961 = vmatpush1.msra.mxu0 0.0
    %962 = vmatprep.subr.mxu0 0.0
    %963 = vmatpush1.msra.mxu0 0.0
    %964 = vmatprep.subr.mxu0 0.0
    %965 = vmatpush1.msra.mxu0 0.0
    %966 = vmatprep.subr.mxu0 0.0
    %967 = vmatpush1.msra.mxu0 0.0
    %968 = vmatprep.subr.mxu0 0.0
    %969 = vmatpush1.msra.mxu0 0.0
    %970 = vmatprep.subr.mxu0 0.0
    %971 = vmatpush1.msra.mxu0 0.0
    %972 = vmatprep.subr.mxu0 0.0
    %973 = vmatpush1.msra.mxu0 0.0
    %974 = vmatprep.mubr.f32.mxu0 0.0
    %975 = vmatmul.mubr.f32.gmra.mrb[0].mxu0 %v905
    %v976 = vpop.f32.mrb[0].mxu0
    %v977 = vadd.f32 %v896, %v976
    %v978 = vpop.f32.mrb[0].mxu0
    %979 = vmatprep.mubr.f32.mxu0 0.0
    %980 = vmatmul.mubr.f32.gmra.mrb[0].mxu0 %v908
    %v981 = vpop.f32.mrb[0].mxu0
    %v982 = vadd.f32 %v901, %v981
    %v983 = vpop.f32.mrb[0].mxu0
    %984 = vdwg.mxu0
    %v986 = vlaneseq
    %v987 = vshrl.u32 %v986, 7
    %v988 = vsub.s32 0, %v987
    %v989 = vrot.slane %v276, %v988
    %v991 = vadd.f32 %v977, %v989
    %v992 = vadd.f32 %v982, %v989
    %v993 = vmax.f32 %v991, 0.0
    %v994 = vmax.f32 %v992, 0.0
    %v995 = vsel %vm681, 1, 0
    %vm996 = vcmp.eq.s32.totalorder %v995, 1
    %v997 = vsel %vm996, %v993, -1e+30
    %v998 = vsel %vm996, %v994, -1e+30
    %999 = vmax.xlane.f32.xlu0 %v997
    %v1000 = vpop.xlane.xlu0 %999
    %1001 = vmax.xlane.f32.xlu0 %v998
    %v1002 = vpop.xlane.xlu0 %1001
    %v1003 = vsub.f32 %v997, %v1000
    %v1004 = vsub.f32 %v998, %v1002
    %v1005 = vmul.f32 %v1003, 1.442695
    %v1006 = vpow.pop %v1005
    %v1007 = vmul.f32 %v1004, 1.442695
    %v1008 = vpow.pop %v1007
    %1009 = vadd.xlane.f32.xlu0 %v1006
    %v1010 = vpop.xlane.xlu0 %1009
    %1011 = vadd.xlane.f32.xlu0 %v1008
    %v1012 = vpop.xlane.xlu0 %1011
    %v1013 = vlog2.pop %v1010
    %v1014 = vmul.f32 %v1013, 0.6931472
    %v1015 = vlog2.pop %v1012
    %v1016 = vmul.f32 %v1015, 0.6931472
    %v1017 = vadd.f32 %v1014, %v1000
    %v1018 = vadd.f32 %v1016, %v1002
    %v1019 = vsub.f32 %v997, %v1017
    %v1020 = vsub.f32 %v998, %v1018
    %1021 = vst [vmem:[#allocation23] sm:$0xff] %v1019
    %1022 = vst [vmem:[#allocation23 + $0x8] sm:$0xff] %v1020
    %1023 = vmatprep.subr.mxu0 0.0
    %1024 = vmatpush1.msra.mxu0 %v281
    %1025 = vmatprep.subr.mxu0 0.0
    %1026 = vmatpush1.msra.mxu0 0.0
    %1027 = vmatprep.subr.mxu0 0.0
    %1028 = vmatpush1.msra.mxu0 0.0
    %1029 = vmatprep.subr.mxu0 0.0
    %1030 = vmatpush1.msra.mxu0 0.0
    %1031 = vmatprep.subr.mxu0 0.0
    %1032 = vmatpush1.msra.mxu0 0.0
    %1033 = vmatprep.subr.mxu0 0.0
    %1034 = vmatpush1.msra.mxu0 0.0
    %1035 = vmatprep.subr.mxu0 0.0
    %1036 = vmatpush1.msra.mxu0 0.0
    %1037 = vmatprep.subr.mxu0 0.0
    %1038 = vmatpush1.msra.mxu0 0.0
    %1039 = vmatprep.subr.mxu0 0.0
    %1040 = vmatpush1.msra.mxu0 0.0
    %1041 = vmatprep.subr.mxu0 0.0
    %1042 = vmatpush1.msra.mxu0 0.0
    %1043 = vmatprep.subr.mxu0 0.0
    %1044 = vmatpush1.msra.mxu0 0.0
    %1045 = vmatprep.subr.mxu0 0.0
    %1046 = vmatpush1.msra.mxu0 0.0
    %1047 = vmatprep.subr.mxu0 0.0
    %1048 = vmatpush1.msra.mxu0 0.0
    %1049 = vmatprep.subr.mxu0 0.0
    %1050 = vmatpush1.msra.mxu0 0.0
    %1051 = vmatprep.subr.mxu0 0.0
    %1052 = vmatpush1.msra.mxu0 0.0
    %1053 = vmatprep.subr.mxu0 0.0
    %1054 = vmatpush1.msra.mxu0 0.0
    %1055 = vmatprep.subr.mxu0 0.0
    %1056 = vmatpush1.msra.mxu0 0.0
    %1057 = vmatprep.subr.mxu0 0.0
    %1058 = vmatpush1.msra.mxu0 0.0
    %1059 = vmatprep.subr.mxu0 0.0
    %1060 = vmatpush1.msra.mxu0 0.0
    %1061 = vmatprep.subr.mxu0 0.0
    %1062 = vmatpush1.msra.mxu0 0.0
    %1063 = vmatprep.subr.mxu0 0.0
    %1064 = vmatpush1.msra.mxu0 0.0
    %1065 = vmatprep.subr.mxu0 0.0
    %1066 = vmatpush1.msra.mxu0 0.0
    %1067 = vmatprep.subr.mxu0 0.0
    %1068 = vmatpush1.msra.mxu0 0.0
    %1069 = vmatprep.subr.mxu0 0.0
    %1070 = vmatpush1.msra.mxu0 0.0
    %1071 = vmatprep.subr.mxu0 0.0
    %1072 = vmatpush1.msra.mxu0 0.0
    %1073 = vmatprep.subr.mxu0 0.0
    %1074 = vmatpush1.msra.mxu0 0.0
    %1075 = vmatprep.subr.mxu0 0.0
    %1076 = vmatpush1.msra.mxu0 0.0
    %1077 = vmatprep.subr.mxu0 0.0
    %1078 = vmatpush1.msra.mxu0 0.0
    %1079 = vmatprep.subr.mxu0 0.0
    %1080 = vmatpush1.msra.mxu0 0.0
    %1081 = vmatprep.subr.mxu0 0.0
    %1082 = vmatpush1.msra.mxu0 0.0
    %1083 = vmatprep.subr.mxu0 0.0
    %1084 = vmatpush1.msra.mxu0 0.0
    %1085 = vmatprep.subr.mxu0 0.0
    %1086 = vmatpush1.msra.mxu0 0.0
    %1087 = vmatprep.mubr.f32.mxu0 0.0
    %1088 = vmatmul.mubr.f32.gmra.mrb[0].mxu0 %v472
    %v1089 = vpop.f32.mrb[0].mxu0
    %v1090 = vadd.f32 0.0, %v1089
    %v1091 = vpop.f32.mrb[0].mxu0
    %1092 = vmatprep.mubr.f32.mxu0 0.0
    %1093 = vmatmul.mubr.f32.gmra.mrb[0].mxu0 %v475
    %v1094 = vpop.f32.mrb[0].mxu0
    %v1095 = vadd.f32 0.0, %v1094
    %v1096 = vpop.f32.mrb[0].mxu0
    %1097 = vmatprep.mubr.f32.mxu0 0.0
    %1098 = vmatmul.mubr.f32.gmra.mrb[0].mxu0 %v478
    %v1099 = vpop.f32.mrb[0].mxu0
    %v1100 = vadd.f32 0.0, %v1099
    %v1101 = vpop.f32.mrb[0].mxu0
    %1102 = vmatprep.mubr.f32.mxu0 0.0
    %1103 = vmatmul.mubr.f32.gmra.mrb[0].mxu0 %v481
    %v1104 = vpop.f32.mrb[0].mxu0
    %v1105 = vadd.f32 0.0, %v1104
    %v1106 = vpop.f32.mrb[0].mxu0
    %1107 = vdwg.mxu0
    %v1109 = vsel %vm689, %v675, 0
    %v1112 = vsel %vm689, %v676, 0
    %v1115 = vsel %vm689, %v677, 0
    %v1118 = vsel %vm689, %v678, 0
    %1120 = vmatprep.subr.mxu0 0.0
    %1121 = vmatpush1.msra.mxu0 %v277
    %1122 = vmatprep.subr.mxu0 0.0
    %1123 = vmatpush1.msra.mxu0 %v278
    %1124 = vmatprep.subr.mxu0 0.0
    %1125 = vmatpush1.msra.mxu0 %v279
    %1126 = vmatprep.subr.mxu0 0.0
    %1127 = vmatpush1.msra.mxu0 %v280
    %1128 = vmatprep.subr.mxu0 0.0
    %1129 = vmatpush1.msra.mxu0 0.0
    %1130 = vmatprep.subr.mxu0 0.0
    %1131 = vmatpush1.msra.mxu0 0.0
    %1132 = vmatprep.subr.mxu0 0.0
    %1133 = vmatpush1.msra.mxu0 0.0
    %1134 = vmatprep.subr.mxu0 0.0
    %1135 = vmatpush1.msra.mxu0 0.0
    %1136 = vmatprep.subr.mxu0 0.0
    %1137 = vmatpush1.msra.mxu0 0.0
    %1138 = vmatprep.subr.mxu0 0.0
    %1139 = vmatpush1.msra.mxu0 0.0
    %1140 = vmatprep.subr.mxu0 0.0
    %1141 = vmatpush1.msra.mxu0 0.0
    %1142 = vmatprep.subr.mxu0 0.0
    %1143 = vmatpush1.msra.mxu0 0.0
    %1144 = vmatprep.subr.mxu0 0.0
    %1145 = vmatpush1.msra.mxu0 0.0
    %1146 = vmatprep.subr.mxu0 0.0
    %1147 = vmatpush1.msra.mxu0 0.0
    %1148 = vmatprep.subr.mxu0 0.0
    %1149 = vmatpush1.msra.mxu0 0.0
    %1150 = vmatprep.subr.mxu0 0.0
    %1151 = vmatpush1.msra.mxu0 0.0
    %1152 = vmatprep.subr.mxu0 0.0
    %1153 = vmatpush1.msra.mxu0 0.0
    %1154 = vmatprep.subr.mxu0 0.0
    %1155 = vmatpush1.msra.mxu0 0.0
    %1156 = vmatprep.subr.mxu0 0.0
    %1157 = vmatpush1.msra.mxu0 0.0
    %1158 = vmatprep.subr.mxu0 0.0
    %1159 = vmatpush1.msra.mxu0 0.0
    %1160 = vmatprep.subr.mxu0 0.0
    %1161 = vmatpush1.msra.mxu0 0.0
    %1162 = vmatprep.subr.mxu0 0.0
    %1163 = vmatpush1.msra.mxu0 0.0
    %1164 = vmatprep.subr.mxu0 0.0
    %1165 = vmatpush1.msra.mxu0 0.0
    %1166 = vmatprep.subr.mxu0 0.0
    %1167 = vmatpush1.msra.mxu0 0.0
    %1168 = vmatprep.subr.mxu0 0.0
    %1169 = vmatpush1.msra.mxu0 0.0
    %1170 = vmatprep.subr.mxu0 0.0
    %1171 = vmatpush1.msra.mxu0 0.0
    %1172 = vmatprep.subr.mxu0 0.0
    %1173 = vmatpush1.msra.mxu0 0.0
    %1174 = vmatprep.subr.mxu0 0.0
    %1175 = vmatpush1.msra.mxu0 0.0
    %1176 = vmatprep.subr.mxu0 0.0
    %1177 = vmatpush1.msra.mxu0 0.0
    %1178 = vmatprep.subr.mxu0 0.0
    %1179 = vmatpush1.msra.mxu0 0.0
    %1180 = vmatprep.subr.mxu0 0.0
    %1181 = vmatpush1.msra.mxu0 0.0
    %1182 = vmatprep.subr.mxu0 0.0
    %1183 = vmatpush1.msra.mxu0 0.0
    %1184 = vmatprep.mubr.f32.mxu0 0.0
    %1185 = vmatmul.mubr.f32.gmra.mrb[0].mxu0 %v1109
    %v1186 = vpop.f32.mrb[0].mxu0
    %v1187 = vadd.f32 %v1090, %v1186
    %v1188 = vpop.f32.mrb[0].mxu0
    %1189 = vmatprep.mubr.f32.mxu0 0.0
    %1190 = vmatmul.mubr.f32.gmra.mrb[0].mxu0 %v1112
    %v1191 = vpop.f32.mrb[0].mxu0
    %v1192 = vadd.f32 %v1095, %v1191
    %v1193 = vpop.f32.mrb[0].mxu0
    %1194 = vmatprep.mubr.f32.mxu0 0.0
    %1195 = vmatmul.mubr.f32.gmra.mrb[0].mxu0 %v1115
    %v1196 = vpop.f32.mrb[0].mxu0
    %v1197 = vadd.f32 %v1100, %v1196
    %v1198 = vpop.f32.mrb[0].mxu0
    %1199 = vmatprep.mubr.f32.mxu0 0.0
    %1200 = vmatmul.mubr.f32.gmra.mrb[0].mxu0 %v1118
    %v1201 = vpop.f32.mrb[0].mxu0
    %v1202 = vadd.f32 %v1105, %v1201
    %v1203 = vpop.f32.mrb[0].mxu0
    %1204 = vdwg.mxu0
    %v1206 = vlaneseq
    %v1207 = vshrl.u32 %v1206, 7
    %v1208 = vsub.s32 0, %v1207
    %v1209 = vrot.slane %v282, %v1208
    %v1211 = vadd.f32 %v1187, %v1209
    %v1212 = vadd.f32 %v1192, %v1209
    %v1213 = vadd.f32 %v1197, %v1209
    %v1214 = vadd.f32 %v1202, %v1209
    %v1215 = vmax.f32 %v1211, 0.0
    %v1216 = vmax.f32 %v1212, 0.0
    %v1217 = vmax.f32 %v1213, 0.0
    %v1218 = vmax.f32 %v1214, 0.0
    %v1219 = vpack.c.bf16 %v1216, %v1215
    %v1220 = vpack.c.bf16 %v1218, %v1217
    %v1225 = vunpack.c.l.b16 %v257
    %v1226 = vunpack.c.l.b16 %v258
    %v1227 = vunpack.c.l.b16 %v259
    %v1228 = vunpack.c.l.b16 %v260
    %v1229 = vpack.c.b16 %v1226, %v1225
    %v1230 = vpack.c.b16 %v1228, %v1227
    %v1232 = vsel %vm689, %v1229, 0
    %v1235 = vsel %vm689, %v1230, 0
    %1237 = vmatprep.subr.bf16.mxu0 0
    %1238 = vmatpush1.bf16.msra.mxu0 %v1219
    %1239 = vmatprep.subr.bf16.mxu0 0
    %1240 = vmatpush1.bf16.msra.mxu0 %v1220
    %1241 = vmatprep.subr.bf16.mxu0 0
    %1242 = vmatpush1.bf16.msra.mxu0 0
    %1243 = vmatprep.subr.bf16.mxu0 0
    %1244 = vmatpush1.bf16.msra.mxu0 0
    %1245 = vmatprep.subr.bf16.mxu0 0
    %1246 = vmatpush1.bf16.msra.mxu0 0
    %1247 = vmatprep.subr.bf16.mxu0 0
    %1248 = vmatpush1.bf16.msra.mxu0 0
    %1249 = vmatprep.subr.bf16.mxu0 0
    %1250 = vmatpush1.bf16.msra.mxu0 0
    %1251 = vmatprep.subr.bf16.mxu0 0
    %1252 = vmatpush1.bf16.msra.mxu0 0
    %1253 = vmatprep.subr.bf16.mxu0 0
    %1254 = vmatpush1.bf16.msra.mxu0 0
    %1255 = vmatprep.subr.bf16.mxu0 0
    %1256 = vmatpush1.bf16.msra.mxu0 0
    %1257 = vmatprep.subr.bf16.mxu0 0
    %1258 = vmatpush1.bf16.msra.mxu0 0
    %1259 = vmatprep.subr.bf16.mxu0 0
    %1260 = vmatpush1.bf16.msra.mxu0 0
    %1261 = vmatprep.subr.bf16.mxu0 0
    %1262 = vmatpush1.bf16.msra.mxu0 0
    %1263 = vmatprep.subr.bf16.mxu0 0
    %1264 = vmatpush1.bf16.msra.mxu0 0
    %1265 = vmatprep.subr.bf16.mxu0 0
    %1266 = vmatpush1.bf16.msra.mxu0 0
    %1267 = vmatprep.subr.bf16.mxu0 0
    %1268 = vmatpush1.bf16.msra.mxu0 0
    %1269 = vmatprep.mubr.bf16.mxu0 0
    %1270 = vmatmul.mubr.bf16.gmra.mrb[0].mxu0 %v1232
    %v1271 = vpop.f32.mrb[0].mxu0
    %v1272 = vadd.f32 0.0, %v1271
    %v1273 = vpop.f32.mrb[0].mxu0
    %v1274 = vpop.f32.mrb[0].mxu0
    %v1275 = vadd.f32 0.0, %v1274
    %v1276 = vpop.f32.mrb[0].mxu0
    %1277 = vmatprep.mubr.bf16.mxu0 0
    %1278 = vmatmul.mubr.bf16.gmra.mrb[0].mxu0 %v1235
    %v1279 = vpop.f32.mrb[0].mxu0
    %v1280 = vadd.f32 0.0, %v1279
    %v1281 = vpop.f32.mrb[0].mxu0
    %v1282 = vpop.f32.mrb[0].mxu0
    %v1283 = vadd.f32 0.0, %v1282
    %v1284 = vpop.f32.mrb[0].mxu0
    %1285 = vdwg.mxu0
    %v1287 = vlaneseq
    %v1288 = vshrl.u32 %v1287, 7
    %v1289 = vsub.s32 0, %v1288
    %v1290 = vrot.slane %v287, %v1289
    %v1293 = vsel %vm689, %v1272, 0
    %v1296 = vsel %vm689, %v1275, 0
    %v1299 = vsel %vm689, %v1280, 0
    %v1302 = vsel %vm689, %v1283, 0
    %1304 = vmatprep.subr.mxu0 0.0
    %1305 = vmatpush1.msra.mxu0 %v283
    %1306 = vmatprep.subr.mxu0 0.0
    %1307 = vmatpush1.msra.mxu0 %v284
    %1308 = vmatprep.subr.mxu0 0.0
    %1309 = vmatpush1.msra.mxu0 %v285
    %1310 = vmatprep.subr.mxu0 0.0
    %1311 = vmatpush1.msra.mxu0 %v286
    %1312 = vmatprep.subr.mxu0 0.0
    %1313 = vmatpush1.msra.mxu0 0.0
    %1314 = vmatprep.subr.mxu0 0.0
    %1315 = vmatpush1.msra.mxu0 0.0
    %1316 = vmatprep.subr.mxu0 0.0
    %1317 = vmatpush1.msra.mxu0 0.0
    %1318 = vmatprep.subr.mxu0 0.0
    %1319 = vmatpush1.msra.mxu0 0.0
    %1320 = vmatprep.subr.mxu0 0.0
    %1321 = vmatpush1.msra.mxu0 0.0
    %1322 = vmatprep.subr.mxu0 0.0
    %1323 = vmatpush1.msra.mxu0 0.0
    %1324 = vmatprep.subr.mxu0 0.0
    %1325 = vmatpush1.msra.mxu0 0.0
    %1326 = vmatprep.subr.mxu0 0.0
    %1327 = vmatpush1.msra.mxu0 0.0
    %1328 = vmatprep.subr.mxu0 0.0
    %1329 = vmatpush1.msra.mxu0 0.0
    %1330 = vmatprep.subr.mxu0 0.0
    %1331 = vmatpush1.msra.mxu0 0.0
    %1332 = vmatprep.subr.mxu0 0.0
    %1333 = vmatpush1.msra.mxu0 0.0
    %1334 = vmatprep.subr.mxu0 0.0
    %1335 = vmatpush1.msra.mxu0 0.0
    %1336 = vmatprep.subr.mxu0 0.0
    %1337 = vmatpush1.msra.mxu0 0.0
    %1338 = vmatprep.subr.mxu0 0.0
    %1339 = vmatpush1.msra.mxu0 0.0
    %1340 = vmatprep.subr.mxu0 0.0
    %1341 = vmatpush1.msra.mxu0 0.0
    %1342 = vmatprep.subr.mxu0 0.0
    %1343 = vmatpush1.msra.mxu0 0.0
    %1344 = vmatprep.subr.mxu0 0.0
    %1345 = vmatpush1.msra.mxu0 0.0
    %1346 = vmatprep.subr.mxu0 0.0
    %1347 = vmatpush1.msra.mxu0 0.0
    %1348 = vmatprep.subr.mxu0 0.0
    %1349 = vmatpush1.msra.mxu0 0.0
    %1350 = vmatprep.subr.mxu0 0.0
    %1351 = vmatpush1.msra.mxu0 0.0
    %1352 = vmatprep.subr.mxu0 0.0
    %1353 = vmatpush1.msra.mxu0 0.0
    %1354 = vmatprep.subr.mxu0 0.0
    %1355 = vmatpush1.msra.mxu0 0.0
    %1356 = vmatprep.subr.mxu0 0.0
    %1357 = vmatpush1.msra.mxu0 0.0
    %1358 = vmatprep.subr.mxu0 0.0
    %1359 = vmatpush1.msra.mxu0 0.0
    %1360 = vmatprep.subr.mxu0 0.0
    %1361 = vmatpush1.msra.mxu0 0.0
    %1362 = vmatprep.subr.mxu0 0.0
    %1363 = vmatpush1.msra.mxu0 0.0
    %1364 = vmatprep.subr.mxu0 0.0
    %1365 = vmatpush1.msra.mxu0 0.0
    %1366 = vmatprep.subr.mxu0 0.0
    %1367 = vmatpush1.msra.mxu0 0.0
    %1368 = vmatprep.mubr.f32.mxu0 0.0
    %1369 = vmatmul.mubr.f32.gmra.mrb[0].mxu0 %v1293
    %v1370 = vpop.f32.mrb[0].mxu0
    %v1371 = vadd.f32 %v1290, %v1370
    %v1372 = vpop.f32.mrb[0].mxu0
    %1373 = vmatprep.mubr.f32.mxu0 0.0
    %1374 = vmatmul.mubr.f32.gmra.mrb[0].mxu0 %v1296
    %v1375 = vpop.f32.mrb[0].mxu0
    %v1376 = vadd.f32 %v1290, %v1375
    %v1377 = vpop.f32.mrb[0].mxu0
    %1378 = vmatprep.mubr.f32.mxu0 0.0
    %1379 = vmatmul.mubr.f32.gmra.mrb[0].mxu0 %v1299
    %v1380 = vpop.f32.mrb[0].mxu0
    %v1381 = vadd.f32 %v1290, %v1380
    %v1382 = vpop.f32.mrb[0].mxu0
    %1383 = vmatprep.mubr.f32.mxu0 0.0
    %1384 = vmatmul.mubr.f32.gmra.mrb[0].mxu0 %v1302
    %v1385 = vpop.f32.mrb[0].mxu0
    %v1386 = vadd.f32 %v1290, %v1385
    %v1387 = vpop.f32.mrb[0].mxu0
    %1388 = vdwg.mxu0
    %v1389 = vmax.f32 %v1371, 0.0
    %v1390 = vmax.f32 %v1376, 0.0
    %v1391 = vmax.f32 %v1381, 0.0
    %v1392 = vmax.f32 %v1386, 0.0
    %v1394 = vlaneseq
    %v1395 = vshrl.u32 %v1394, 7
    %v1396 = vsub.s32 0, %v1395
    %v1397 = vrot.slane %v296, %v1396
    %v1400 = vsel %vm689, %v1389, 0
    %v1403 = vsel %vm689, %v1390, 0
    %v1406 = vsel %vm689, %v1391, 0
    %v1409 = vsel %vm689, %v1392, 0
    %1411 = vmatprep.subr.mxu0 0.0
    %1412 = vmatpush1.msra.mxu0 %v288
    %1413 = vmatprep.subr.mxu0 0.0
    %1414 = vmatpush1.msra.mxu0 %v289
    %1415 = vmatprep.subr.mxu0 0.0
    %1416 = vmatpush1.msra.mxu0 %v290
    %1417 = vmatprep.subr.mxu0 0.0
    %1418 = vmatpush1.msra.mxu0 %v291
    %1419 = vmatprep.subr.mxu0 0.0
    %1420 = vmatpush1.msra.mxu0 0.0
    %1421 = vmatprep.subr.mxu0 0.0
    %1422 = vmatpush1.msra.mxu0 0.0
    %1423 = vmatprep.subr.mxu0 0.0
    %1424 = vmatpush1.msra.mxu0 0.0
    %1425 = vmatprep.subr.mxu0 0.0
    %1426 = vmatpush1.msra.mxu0 0.0
    %1427 = vmatprep.subr.mxu0 0.0
    %1428 = vmatpush1.msra.mxu0 0.0
    %1429 = vmatprep.subr.mxu0 0.0
    %1430 = vmatpush1.msra.mxu0 0.0
    %1431 = vmatprep.subr.mxu0 0.0
    %1432 = vmatpush1.msra.mxu0 0.0
    %1433 = vmatprep.subr.mxu0 0.0
    %1434 = vmatpush1.msra.mxu0 0.0
    %1435 = vmatprep.subr.mxu0 0.0
    %1436 = vmatpush1.msra.mxu0 0.0
    %1437 = vmatprep.subr.mxu0 0.0
    %1438 = vmatpush1.msra.mxu0 0.0
    %1439 = vmatprep.subr.mxu0 0.0
    %1440 = vmatpush1.msra.mxu0 0.0
    %1441 = vmatprep.subr.mxu0 0.0
    %1442 = vmatpush1.msra.mxu0 0.0
    %1443 = vmatprep.subr.mxu0 0.0
    %1444 = vmatpush1.msra.mxu0 0.0
    %1445 = vmatprep.subr.mxu0 0.0
    %1446 = vmatpush1.msra.mxu0 0.0
    %1447 = vmatprep.subr.mxu0 0.0
    %1448 = vmatpush1.msra.mxu0 0.0
    %1449 = vmatprep.subr.mxu0 0.0
    %1450 = vmatpush1.msra.mxu0 0.0
    %1451 = vmatprep.subr.mxu0 0.0
    %1452 = vmatpush1.msra.mxu0 0.0
    %1453 = vmatprep.subr.mxu0 0.0
    %1454 = vmatpush1.msra.mxu0 0.0
    %1455 = vmatprep.subr.mxu0 0.0
    %1456 = vmatpush1.msra.mxu0 0.0
    %1457 = vmatprep.subr.mxu0 0.0
    %1458 = vmatpush1.msra.mxu0 0.0
    %1459 = vmatprep.subr.mxu0 0.0
    %1460 = vmatpush1.msra.mxu0 0.0
    %1461 = vmatprep.subr.mxu0 0.0
    %1462 = vmatpush1.msra.mxu0 0.0
    %1463 = vmatprep.subr.mxu0 0.0
    %1464 = vmatpush1.msra.mxu0 0.0
    %1465 = vmatprep.subr.mxu0 0.0
    %1466 = vmatpush1.msra.mxu0 0.0
    %1467 = vmatprep.subr.mxu0 0.0
    %1468 = vmatpush1.msra.mxu0 0.0
    %1469 = vmatprep.subr.mxu0 0.0
    %1470 = vmatpush1.msra.mxu0 0.0
    %1471 = vmatprep.subr.mxu0 0.0
    %1472 = vmatpush1.msra.mxu0 0.0
    %1473 = vmatprep.subr.mxu0 0.0
    %1474 = vmatpush1.msra.mxu0 0.0
    %1475 = vmatprep.mubr.f32.mxu0 0.0
    %1476 = vmatmul.mubr.f32.gmra.mrb[0].mxu0 %v1400
    %v1477 = vpop.f32.mrb[0].mxu0
    %v1478 = vadd.f32 %v1397, %v1477
    %v1479 = vpop.f32.mrb[0].mxu0
    %1480 = vmatprep.mubr.f32.mxu0 0.0
    %1481 = vmatmul.mubr.f32.gmra.mrb[0].mxu0 %v1403
    %v1482 = vpop.f32.mrb[0].mxu0
    %v1483 = vadd.f32 %v1397, %v1482
    %v1484 = vpop.f32.mrb[0].mxu0
    %1485 = vmatprep.mubr.f32.mxu0 0.0
    %1486 = vmatmul.mubr.f32.gmra.mrb[0].mxu0 %v1406
    %v1487 = vpop.f32.mrb[0].mxu0
    %v1488 = vadd.f32 %v1397, %v1487
    %v1489 = vpop.f32.mrb[0].mxu0
    %1490 = vmatprep.mubr.f32.mxu0 0.0
    %1491 = vmatmul.mubr.f32.gmra.mrb[0].mxu0 %v1409
    %v1492 = vpop.f32.mrb[0].mxu0
    %v1493 = vadd.f32 %v1397, %v1492
    %v1494 = vpop.f32.mrb[0].mxu0
    %1495 = vdwg.mxu0
    %v1497 = vlaneseq
    %v1498 = vshrl.u32 %v1497, 7
    %v1499 = vsub.s32 0, %v1498
    %v1500 = vrot.slane %v297, %v1499
    %1502 = vmatprep.subr.mxu0 0.0
    %1503 = vmatpush1.msra.mxu0 %v292
    %1504 = vmatprep.subr.mxu0 0.0
    %1505 = vmatpush1.msra.mxu0 %v293
    %1506 = vmatprep.subr.mxu0 0.0
    %1507 = vmatpush1.msra.mxu0 %v294
    %1508 = vmatprep.subr.mxu0 0.0
    %1509 = vmatpush1.msra.mxu0 %v295
    %1510 = vmatprep.subr.mxu0 0.0
    %1511 = vmatpush1.msra.mxu0 0.0
    %1512 = vmatprep.subr.mxu0 0.0
    %1513 = vmatpush1.msra.mxu0 0.0
    %1514 = vmatprep.subr.mxu0 0.0
    %1515 = vmatpush1.msra.mxu0 0.0
    %1516 = vmatprep.subr.mxu0 0.0
    %1517 = vmatpush1.msra.mxu0 0.0
    %1518 = vmatprep.subr.mxu0 0.0
    %1519 = vmatpush1.msra.mxu0 0.0
    %1520 = vmatprep.subr.mxu0 0.0
    %1521 = vmatpush1.msra.mxu0 0.0
    %1522 = vmatprep.subr.mxu0 0.0
    %1523 = vmatpush1.msra.mxu0 0.0
    %1524 = vmatprep.subr.mxu0 0.0
    %1525 = vmatpush1.msra.mxu0 0.0
    %1526 = vmatprep.subr.mxu0 0.0
    %1527 = vmatpush1.msra.mxu0 0.0
    %1528 = vmatprep.subr.mxu0 0.0
    %1529 = vmatpush1.msra.mxu0 0.0
    %1530 = vmatprep.subr.mxu0 0.0
    %1531 = vmatpush1.msra.mxu0 0.0
    %1532 = vmatprep.subr.mxu0 0.0
    %1533 = vmatpush1.msra.mxu0 0.0
    %1534 = vmatprep.subr.mxu0 0.0
    %1535 = vmatpush1.msra.mxu0 0.0
    %1536 = vmatprep.subr.mxu0 0.0
    %1537 = vmatpush1.msra.mxu0 0.0
    %1538 = vmatprep.subr.mxu0 0.0
    %1539 = vmatpush1.msra.mxu0 0.0
    %1540 = vmatprep.subr.mxu0 0.0
    %1541 = vmatpush1.msra.mxu0 0.0
    %1542 = vmatprep.subr.mxu0 0.0
    %1543 = vmatpush1.msra.mxu0 0.0
    %1544 = vmatprep.subr.mxu0 0.0
    %1545 = vmatpush1.msra.mxu0 0.0
    %1546 = vmatprep.subr.mxu0 0.0
    %1547 = vmatpush1.msra.mxu0 0.0
    %1548 = vmatprep.subr.mxu0 0.0
    %1549 = vmatpush1.msra.mxu0 0.0
    %1550 = vmatprep.subr.mxu0 0.0
    %1551 = vmatpush1.msra.mxu0 0.0
    %1552 = vmatprep.subr.mxu0 0.0
    %1553 = vmatpush1.msra.mxu0 0.0
    %1554 = vmatprep.subr.mxu0 0.0
    %1555 = vmatpush1.msra.mxu0 0.0
    %1556 = vmatprep.subr.mxu0 0.0
    %1557 = vmatpush1.msra.mxu0 0.0
    %1558 = vmatprep.subr.mxu0 0.0
    %1559 = vmatpush1.msra.mxu0 0.0
    %1560 = vmatprep.subr.mxu0 0.0
    %1561 = vmatpush1.msra.mxu0 0.0
    %1562 = vmatprep.subr.mxu0 0.0
    %1563 = vmatpush1.msra.mxu0 0.0
    %1564 = vmatprep.subr.mxu0 0.0
    %1565 = vmatpush1.msra.mxu0 0.0
    %1566 = vmatprep.mubr.f32.mxu0 0.0
    %1567 = vmatmul.mubr.f32.gmra.mrb[0].mxu0 %v1109
    %v1568 = vpop.f32.mrb[0].mxu0
    %v1569 = vadd.f32 %v1500, %v1568
    %v1570 = vpop.f32.mrb[0].mxu0
    %1571 = vmatprep.mubr.f32.mxu0 0.0
    %1572 = vmatmul.mubr.f32.gmra.mrb[0].mxu0 %v1112
    %v1573 = vpop.f32.mrb[0].mxu0
    %v1574 = vadd.f32 %v1500, %v1573
    %v1575 = vpop.f32.mrb[0].mxu0
    %1576 = vmatprep.mubr.f32.mxu0 0.0
    %1577 = vmatmul.mubr.f32.gmra.mrb[0].mxu0 %v1115
    %v1578 = vpop.f32.mrb[0].mxu0
    %v1579 = vadd.f32 %v1500, %v1578
    %v1580 = vpop.f32.mrb[0].mxu0
    %1581 = vmatprep.mubr.f32.mxu0 0.0
    %1582 = vmatmul.mubr.f32.gmra.mrb[0].mxu0 %v1118
    %v1583 = vpop.f32.mrb[0].mxu0
    %v1584 = vadd.f32 %v1500, %v1583
    %v1585 = vpop.f32.mrb[0].mxu0
    %1586 = vdwg.mxu0
    %v1587 = vadd.f32 %v1478, %v1569
    %v1588 = vadd.f32 %v1483, %v1574
    %v1589 = vadd.f32 %v1488, %v1579
    %v1590 = vadd.f32 %v1493, %v1584
    %v1591 = vxor.u32 %v1587, 2147483648
    %v1592 = vxor.u32 %v1588, 2147483648
    %v1593 = vxor.u32 %v1589, 2147483648
    %v1594 = vxor.u32 %v1590, 2147483648
    %v1595 = vmul.f32 %v1591, 1.442695
    %v1596 = vpow.pop %v1595
    %v1597 = vmul.f32 %v1592, 1.442695
    %v1598 = vpow.pop %v1597
    %v1599 = vmul.f32 %v1593, 1.442695
    %v1600 = vpow.pop %v1599
    %v1601 = vmul.f32 %v1594, 1.442695
    %v1602 = vpow.pop %v1601
    %v1603 = vadd.f32 %v1596, 1.0
    %v1604 = vadd.f32 %v1598, 1.0
    %v1605 = vadd.f32 %v1600, 1.0
    %v1606 = vadd.f32 %v1602, 1.0
    %v1607 = vrcp.pop %v1603
    %v1608 = vmul.f32 1.0, %v1607
    %v1609 = vrcp.pop %v1604
    %v1610 = vmul.f32 1.0, %v1609
    %v1611 = vrcp.pop %v1605
    %v1612 = vmul.f32 1.0, %v1611
    %v1613 = vrcp.pop %v1606
    %v1614 = vmul.f32 1.0, %v1613
    %1619 = vrot.lane.b32.xlu0 %v1569, 64
    %v1620 = vpop.permute.xlu0 %1619
    %1621 = vrot.lane.b32.xlu0 %v1574, 64
    %v1622 = vpop.permute.xlu0 %1621
    %1623 = vrot.lane.b32.xlu0 %v1579, 64
    %v1624 = vpop.permute.xlu0 %1623
    %1625 = vrot.lane.b32.xlu0 %v1584, 64
    %v1626 = vpop.permute.xlu0 %1625
    %v1631 = vmul.f32 %v1608, %v1620
    %v1632 = vmul.f32 %v1610, %v1622
    %v1633 = vmul.f32 %v1612, %v1624
    %v1634 = vmul.f32 %v1614, %v1626
    %1639 = vrot.lane.b32.xlu0 %v1631, 64
    %v1640 = vpop.permute.xlu0 %1639
    %1641 = vrot.lane.b32.xlu0 %v1632, 64
    %v1642 = vpop.permute.xlu0 %1641
    %1643 = vrot.lane.b32.xlu0 %v1633, 64
    %v1644 = vpop.permute.xlu0 %1643
    %1645 = vrot.lane.b32.xlu0 %v1634, 64
    %v1646 = vpop.permute.xlu0 %1645
    %v1651 = vadd.f32 %v1478, %v1640
    %v1652 = vadd.f32 %v1483, %v1642
    %v1653 = vadd.f32 %v1488, %v1644
    %v1654 = vadd.f32 %v1493, %v1646
    %v1655 = vtanh.pop %v1651
    %v1656 = vtanh.pop %v1652
    %v1657 = vtanh.pop %v1653
    %v1658 = vtanh.pop %v1654
    %v1659 = vsub.f32 1.0, %v1608
    %v1660 = vsub.f32 1.0, %v1610
    %v1661 = vsub.f32 1.0, %v1612
    %v1662 = vsub.f32 1.0, %v1614
    %1667 = vrot.lane.b32.xlu0 %v1655, 96
    %v1668 = vpop.permute.xlu0 %1667
    %1669 = vrot.lane.b32.xlu0 %v1656, 96
    %v1670 = vpop.permute.xlu0 %1669
    %1671 = vrot.lane.b32.xlu0 %v1657, 96
    %v1672 = vpop.permute.xlu0 %1671
    %1673 = vrot.lane.b32.xlu0 %v1658, 96
    %v1674 = vpop.permute.xlu0 %1673
    %v1679 = vmul.f32 %v1659, %v1668
    %v1680 = vmul.f32 %v1660, %v1670
    %v1681 = vmul.f32 %v1661, %v1672
    %v1682 = vmul.f32 %v1662, %v1674
    %1683 = vrot.lane.b32.xlu0 %v675, 32
    %v1684 = vpop.permute.xlu0 %1683
    %1685 = vrot.lane.b32.xlu0 %v676, 32
    %v1686 = vpop.permute.xlu0 %1685
    %1687 = vrot.lane.b32.xlu0 %v677, 32
    %v1688 = vpop.permute.xlu0 %1687
    %1689 = vrot.lane.b32.xlu0 %v678, 32
    %v1690 = vpop.permute.xlu0 %1689
    %v1695 = vmul.f32 %v1608, %v1684
    %v1696 = vmul.f32 %v1610, %v1686
    %v1697 = vmul.f32 %v1612, %v1688
    %v1698 = vmul.f32 %v1614, %v1690
    %v1699 = vadd.f32 %v1679, %v1695
    %v1700 = vadd.f32 %v1680, %v1696
    %v1701 = vadd.f32 %v1681, %v1697
    %v1702 = vadd.f32 %v1682, %v1698
    %v1703 = vpack.c.bf16 %v1700, %v1699
    %v1704 = vpack.c.bf16 %v1702, %v1701
    %1707 = vrot.lane.b32.xlu0 %v1703, 96
    %v1708 = vpop.permute.xlu0 %1707
    %1709 = vrot.lane.b32.xlu0 %v1704, 96
    %v1710 = vpop.permute.xlu0 %1709
    %1713 = vmatprep.subr.bf16.mxu0 0
    %1714 = vmatpush1.bf16.msra.mxu0 %v1708
    %1715 = vmatprep.subr.bf16.mxu0 0
    %1716 = vmatpush1.bf16.msra.mxu0 %v1710
    %1717 = vmatprep.subr.bf16.mxu0 0
    %1718 = vmatpush1.bf16.msra.mxu0 0
    %1719 = vmatprep.subr.bf16.mxu0 0
    %1720 = vmatpush1.bf16.msra.mxu0 0
    %1721 = vmatprep.subr.bf16.mxu0 0
    %1722 = vmatpush1.bf16.msra.mxu0 0
    %1723 = vmatprep.subr.bf16.mxu0 0
    %1724 = vmatpush1.bf16.msra.mxu0 0
    %1725 = vmatprep.subr.bf16.mxu0 0
    %1726 = vmatpush1.bf16.msra.mxu0 0
    %1727 = vmatprep.subr.bf16.mxu0 0
    %1728 = vmatpush1.bf16.msra.mxu0 0
    %1729 = vmatprep.subr.bf16.mxu0 0
    %1730 = vmatpush1.bf16.msra.mxu0 0
    %1731 = vmatprep.subr.bf16.mxu0 0
    %1732 = vmatpush1.bf16.msra.mxu0 0
    %1733 = vmatprep.subr.bf16.mxu0 0
    %1734 = vmatpush1.bf16.msra.mxu0 0
    %1735 = vmatprep.subr.bf16.mxu0 0
    %1736 = vmatpush1.bf16.msra.mxu0 0
    %1737 = vmatprep.subr.bf16.mxu0 0
    %1738 = vmatpush1.bf16.msra.mxu0 0
    %1739 = vmatprep.subr.bf16.mxu0 0
    %1740 = vmatpush1.bf16.msra.mxu0 0
    %1741 = vmatprep.subr.bf16.mxu0 0
    %1742 = vmatpush1.bf16.msra.mxu0 0
    %1743 = vmatprep.subr.bf16.mxu0 0
    %1744 = vmatpush1.bf16.msra.mxu0 0
    %1745 = vmatprep.mubr.bf16.mxu0 0
    %1746 = vmatmul.mubr.bf16.gmra.mrb[0].mxu0 %v691
    %v1747 = vpop.f32.mrb[0].mxu0
    %v1748 = vadd.f32 0.0, %v1747
    %v1749 = vpop.f32.mrb[0].mxu0
    %v1750 = vpop.f32.mrb[0].mxu0
    %v1751 = vadd.f32 0.0, %v1750
    %v1752 = vpop.f32.mrb[0].mxu0
    %1753 = vdwg.mxu0
    %v1755 = vsel %vm689, %v1748, 0
    %v1758 = vsel %vm689, %v1751, 0
    %1760 = vmatprep.subr.mxu0 0.0
    %1761 = vmatpush1.msra.mxu0 %v265
    %1762 = vmatprep.subr.mxu0 0.0
    %1763 = vmatpush1.msra.mxu0 %v266
    %1764 = vmatprep.subr.mxu0 0.0
    %1765 = vmatpush1.msra.mxu0 %v267
    %1766 = vmatprep.subr.mxu0 0.0
    %1767 = vmatpush1.msra.mxu0 %v268
    %1768 = vmatprep.subr.mxu0 0.0
    %1769 = vmatpush1.msra.mxu0 0.0
    %1770 = vmatprep.subr.mxu0 0.0
    %1771 = vmatpush1.msra.mxu0 0.0
    %1772 = vmatprep.subr.mxu0 0.0
    %1773 = vmatpush1.msra.mxu0 0.0
    %1774 = vmatprep.subr.mxu0 0.0
    %1775 = vmatpush1.msra.mxu0 0.0
    %1776 = vmatprep.subr.mxu0 0.0
    %1777 = vmatpush1.msra.mxu0 0.0
    %1778 = vmatprep.subr.mxu0 0.0
    %1779 = vmatpush1.msra.mxu0 0.0
    %1780 = vmatprep.subr.mxu0 0.0
    %1781 = vmatpush1.msra.mxu0 0.0
    %1782 = vmatprep.subr.mxu0 0.0
    %1783 = vmatpush1.msra.mxu0 0.0
    %1784 = vmatprep.subr.mxu0 0.0
    %1785 = vmatpush1.msra.mxu0 0.0
    %1786 = vmatprep.subr.mxu0 0.0
    %1787 = vmatpush1.msra.mxu0 0.0
    %1788 = vmatprep.subr.mxu0 0.0
    %1789 = vmatpush1.msra.mxu0 0.0
    %1790 = vmatprep.subr.mxu0 0.0
    %1791 = vmatpush1.msra.mxu0 0.0
    %1792 = vmatprep.subr.mxu0 0.0
    %1793 = vmatpush1.msra.mxu0 0.0
    %1794 = vmatprep.subr.mxu0 0.0
    %1795 = vmatpush1.msra.mxu0 0.0
    %1796 = vmatprep.subr.mxu0 0.0
    %1797 = vmatpush1.msra.mxu0 0.0
    %1798 = vmatprep.subr.mxu0 0.0
    %1799 = vmatpush1.msra.mxu0 0.0
    %1800 = vmatprep.subr.mxu0 0.0
    %1801 = vmatpush1.msra.mxu0 0.0
    %1802 = vmatprep.subr.mxu0 0.0
    %1803 = vmatpush1.msra.mxu0 0.0
    %1804 = vmatprep.subr.mxu0 0.0
    %1805 = vmatpush1.msra.mxu0 0.0
    %1806 = vmatprep.subr.mxu0 0.0
    %1807 = vmatpush1.msra.mxu0 0.0
    %1808 = vmatprep.subr.mxu0 0.0
    %1809 = vmatpush1.msra.mxu0 0.0
    %1810 = vmatprep.subr.mxu0 0.0
    %1811 = vmatpush1.msra.mxu0 0.0
    %1812 = vmatprep.subr.mxu0 0.0
    %1813 = vmatpush1.msra.mxu0 0.0
    %1814 = vmatprep.subr.mxu0 0.0
    %1815 = vmatpush1.msra.mxu0 0.0
    %1816 = vmatprep.subr.mxu0 0.0
    %1817 = vmatpush1.msra.mxu0 0.0
    %1818 = vmatprep.subr.mxu0 0.0
    %1819 = vmatpush1.msra.mxu0 0.0
    %1820 = vmatprep.subr.mxu0 0.0
    %1821 = vmatpush1.msra.mxu0 0.0
    %1822 = vmatprep.subr.mxu0 0.0
    %1823 = vmatpush1.msra.mxu0 0.0
    %1824 = vmatprep.mubr.f32.mxu0 0.0
    %1825 = vmatmul.mubr.f32.gmra.mrb[0].mxu0 %v1755
    %v1826 = vpop.f32.mrb[0].mxu0
    %v1827 = vadd.f32 %v738, %v1826
    %v1828 = vpop.f32.mrb[0].mxu0
    %1829 = vmatprep.mubr.f32.mxu0 0.0
    %1830 = vmatmul.mubr.f32.gmra.mrb[0].mxu0 %v1758
    %v1831 = vpop.f32.mrb[0].mxu0
    %v1832 = vadd.f32 %v738, %v1831
    %v1833 = vpop.f32.mrb[0].mxu0
    %1834 = vdwg.mxu0
    %v1835 = vmax.f32 %v1827, 0.0
    %v1836 = vmax.f32 %v1832, 0.0
    %v1838 = vsel %vm689, %v1835, 0
    %v1841 = vsel %vm689, %v1836, 0
    %1843 = vmatprep.subr.mxu0 0.0
    %1844 = vmatpush1.msra.mxu0 %v270
    %1845 = vmatprep.subr.mxu0 0.0
    %1846 = vmatpush1.msra.mxu0 %v271
    %1847 = vmatprep.subr.mxu0 0.0
    %1848 = vmatpush1.msra.mxu0 %v272
    %1849 = vmatprep.subr.mxu0 0.0
    %1850 = vmatpush1.msra.mxu0 %v273
    %1851 = vmatprep.subr.mxu0 0.0
    %1852 = vmatpush1.msra.mxu0 0.0
    %1853 = vmatprep.subr.mxu0 0.0
    %1854 = vmatpush1.msra.mxu0 0.0
    %1855 = vmatprep.subr.mxu0 0.0
    %1856 = vmatpush1.msra.mxu0 0.0
    %1857 = vmatprep.subr.mxu0 0.0
    %1858 = vmatpush1.msra.mxu0 0.0
    %1859 = vmatprep.subr.mxu0 0.0
    %1860 = vmatpush1.msra.mxu0 0.0
    %1861 = vmatprep.subr.mxu0 0.0
    %1862 = vmatpush1.msra.mxu0 0.0
    %1863 = vmatprep.subr.mxu0 0.0
    %1864 = vmatpush1.msra.mxu0 0.0
    %1865 = vmatprep.subr.mxu0 0.0
    %1866 = vmatpush1.msra.mxu0 0.0
    %1867 = vmatprep.subr.mxu0 0.0
    %1868 = vmatpush1.msra.mxu0 0.0
    %1869 = vmatprep.subr.mxu0 0.0
    %1870 = vmatpush1.msra.mxu0 0.0
    %1871 = vmatprep.subr.mxu0 0.0
    %1872 = vmatpush1.msra.mxu0 0.0
    %1873 = vmatprep.subr.mxu0 0.0
    %1874 = vmatpush1.msra.mxu0 0.0
    %1875 = vmatprep.subr.mxu0 0.0
    %1876 = vmatpush1.msra.mxu0 0.0
    %1877 = vmatprep.subr.mxu0 0.0
    %1878 = vmatpush1.msra.mxu0 0.0
    %1879 = vmatprep.subr.mxu0 0.0
    %1880 = vmatpush1.msra.mxu0 0.0
    %1881 = vmatprep.subr.mxu0 0.0
    %1882 = vmatpush1.msra.mxu0 0.0
    %1883 = vmatprep.subr.mxu0 0.0
    %1884 = vmatpush1.msra.mxu0 0.0
    %1885 = vmatprep.subr.mxu0 0.0
    %1886 = vmatpush1.msra.mxu0 0.0
    %1887 = vmatprep.subr.mxu0 0.0
    %1888 = vmatpush1.msra.mxu0 0.0
    %1889 = vmatprep.subr.mxu0 0.0
    %1890 = vmatpush1.msra.mxu0 0.0
    %1891 = vmatprep.subr.mxu0 0.0
    %1892 = vmatpush1.msra.mxu0 0.0
    %1893 = vmatprep.subr.mxu0 0.0
    %1894 = vmatpush1.msra.mxu0 0.0
    %1895 = vmatprep.subr.mxu0 0.0
    %1896 = vmatpush1.msra.mxu0 0.0
    %1897 = vmatprep.subr.mxu0 0.0
    %1898 = vmatpush1.msra.mxu0 0.0
    %1899 = vmatprep.subr.mxu0 0.0
    %1900 = vmatpush1.msra.mxu0 0.0
    %1901 = vmatprep.subr.mxu0 0.0
    %1902 = vmatpush1.msra.mxu0 0.0
    %1903 = vmatprep.subr.mxu0 0.0
    %1904 = vmatpush1.msra.mxu0 0.0
    %1905 = vmatprep.subr.mxu0 0.0
    %1906 = vmatpush1.msra.mxu0 0.0
    %1907 = vmatprep.mubr.f32.mxu0 0.0
    %1908 = vmatmul.mubr.f32.gmra.mrb[0].mxu0 %v1838
    %v1909 = vpop.f32.mrb[0].mxu0
    %v1910 = vadd.f32 %v896, %v1909
    %v1911 = vpop.f32.mrb[0].mxu0
    %1912 = vmatprep.mubr.f32.mxu0 0.0
    %1913 = vmatmul.mubr.f32.gmra.mrb[0].mxu0 %v1841
    %v1914 = vpop.f32.mrb[0].mxu0
    %v1915 = vadd.f32 %v901, %v1914
    %v1916 = vpop.f32.mrb[0].mxu0
    %1917 = vdwg.mxu0
    %v1918 = vadd.f32 %v1910, %v989
    %v1919 = vadd.f32 %v1915, %v989
    %v1920 = vmax.f32 %v1918, 0.0
    %v1921 = vmax.f32 %v1919, 0.0
    %v1922 = vsel %vm996, %v1920, -1e+30
    %v1923 = vsel %vm996, %v1921, -1e+30
    %1924 = vmax.xlane.f32.xlu0 %v1922
    %v1925 = vpop.xlane.xlu0 %1924
    %1926 = vmax.xlane.f32.xlu0 %v1923
    %v1927 = vpop.xlane.xlu0 %1926
    %v1928 = vsub.f32 %v1922, %v1925
    %v1929 = vsub.f32 %v1923, %v1927
    %v1930 = vmul.f32 %v1928, 1.442695
    %v1931 = vpow.pop %v1930
    %v1932 = vmul.f32 %v1929, 1.442695
    %v1933 = vpow.pop %v1932
    %1934 = vadd.xlane.f32.xlu0 %v1931
    %v1935 = vpop.xlane.xlu0 %1934
    %1936 = vadd.xlane.f32.xlu0 %v1933
    %v1937 = vpop.xlane.xlu0 %1936
    %v1938 = vlog2.pop %v1935
    %v1939 = vmul.f32 %v1938, 0.6931472
    %v1940 = vlog2.pop %v1937
    %v1941 = vmul.f32 %v1940, 0.6931472
    %v1942 = vadd.f32 %v1939, %v1925
    %v1943 = vadd.f32 %v1941, %v1927
    %v1944 = vsub.f32 %v1922, %v1942
    %v1945 = vsub.f32 %v1923, %v1943
    %s1946 = scalar_lea.vmem [#allocation23], 16
    %1947 = vst [vmem:[%s1946] sm:$0xff] %v1944
    %1948 = vst [vmem:[%s1946 + $0x8] sm:$0xff] %v1945
    %1953 = vrot.lane.b32.xlu0 %v1699, 96
    %v1954 = vpop.permute.xlu0 %1953
    %1955 = vrot.lane.b32.xlu0 %v1700, 96
    %v1956 = vpop.permute.xlu0 %1955
    %1957 = vrot.lane.b32.xlu0 %v1701, 96
    %v1958 = vpop.permute.xlu0 %1957
    %1959 = vrot.lane.b32.xlu0 %v1702, 96
    %v1960 = vpop.permute.xlu0 %1959
    %v1961 = vsel %vm689, %v1954, 0
    %v1963 = vsel %vm689, %v1956, 0
    %v1965 = vsel %vm689, %v1958, 0
    %v1967 = vsel %vm689, %v1960, 0
    %1969 = vmatprep.subr.mxu0 0.0
    %1970 = vmatpush1.msra.mxu0 %v277
    %1971 = vmatprep.subr.mxu0 0.0
    %1972 = vmatpush1.msra.mxu0 %v278
    %1973 = vmatprep.subr.mxu0 0.0
    %1974 = vmatpush1.msra.mxu0 %v279
    %1975 = vmatprep.subr.mxu0 0.0
    %1976 = vmatpush1.msra.mxu0 %v280
    %1977 = vmatprep.subr.mxu0 0.0
    %1978 = vmatpush1.msra.mxu0 0.0
    %1979 = vmatprep.subr.mxu0 0.0
    %1980 = vmatpush1.msra.mxu0 0.0
    %1981 = vmatprep.subr.mxu0 0.0
    %1982 = vmatpush1.msra.mxu0 0.0
    %1983 = vmatprep.subr.mxu0 0.0
    %1984 = vmatpush1.msra.mxu0 0.0
    %1985 = vmatprep.subr.mxu0 0.0
    %1986 = vmatpush1.msra.mxu0 0.0
    %1987 = vmatprep.subr.mxu0 0.0
    %1988 = vmatpush1.msra.mxu0 0.0
    %1989 = vmatprep.subr.mxu0 0.0
    %1990 = vmatpush1.msra.mxu0 0.0
    %1991 = vmatprep.subr.mxu0 0.0
    %1992 = vmatpush1.msra.mxu0 0.0
    %1993 = vmatprep.subr.mxu0 0.0
    %1994 = vmatpush1.msra.mxu0 0.0
    %1995 = vmatprep.subr.mxu0 0.0
    %1996 = vmatpush1.msra.mxu0 0.0
    %1997 = vmatprep.subr.mxu0 0.0
    %1998 = vmatpush1.msra.mxu0 0.0
    %1999 = vmatprep.subr.mxu0 0.0
    %2000 = vmatpush1.msra.mxu0 0.0
    %2001 = vmatprep.subr.mxu0 0.0
    %2002 = vmatpush1.msra.mxu0 0.0
    %2003 = vmatprep.subr.mxu0 0.0
    %2004 = vmatpush1.msra.mxu0 0.0
    %2005 = vmatprep.subr.mxu0 0.0
    %2006 = vmatpush1.msra.mxu0 0.0
    %2007 = vmatprep.subr.mxu0 0.0
    %2008 = vmatpush1.msra.mxu0 0.0
    %2009 = vmatprep.subr.mxu0 0.0
    %2010 = vmatpush1.msra.mxu0 0.0
    %2011 = vmatprep.subr.mxu0 0.0
    %2012 = vmatpush1.msra.mxu0 0.0
    %2013 = vmatprep.subr.mxu0 0.0
    %2014 = vmatpush1.msra.mxu0 0.0
    %2015 = vmatprep.subr.mxu0 0.0
    %2016 = vmatpush1.msra.mxu0 0.0
    %2017 = vmatprep.subr.mxu0 0.0
    %2018 = vmatpush1.msra.mxu0 0.0
    %2019 = vmatprep.subr.mxu0 0.0
    %2020 = vmatpush1.msra.mxu0 0.0
    %2021 = vmatprep.subr.mxu0 0.0
    %2022 = vmatpush1.msra.mxu0 0.0
    %2023 = vmatprep.subr.mxu0 0.0
    %2024 = vmatpush1.msra.mxu0 0.0
    %2025 = vmatprep.subr.mxu0 0.0
    %2026 = vmatpush1.msra.mxu0 0.0
    %2027 = vmatprep.subr.mxu0 0.0
    %2028 = vmatpush1.msra.mxu0 0.0
    %2029 = vmatprep.subr.mxu0 0.0
    %2030 = vmatpush1.msra.mxu0 0.0
    %2031 = vmatprep.subr.mxu0 0.0
    %2032 = vmatpush1.msra.mxu0 0.0
    %2033 = vmatprep.mubr.f32.mxu0 0.0
    %2034 = vmatmul.mubr.f32.gmra.mrb[0].mxu0 %v1961
    %v2035 = vpop.f32.mrb[0].mxu0
    %v2036 = vadd.f32 %v1090, %v2035
    %v2037 = vpop.f32.mrb[0].mxu0
    %2038 = vmatprep.mubr.f32.mxu0 0.0
    %2039 = vmatmul.mubr.f32.gmra.mrb[0].mxu0 %v1963
    %v2040 = vpop.f32.mrb[0].mxu0
    %v2041 = vadd.f32 %v1095, %v2040
    %v2042 = vpop.f32.mrb[0].mxu0
    %2043 = vmatprep.mubr.f32.mxu0 0.0
    %2044 = vmatmul.mubr.f32.gmra.mrb[0].mxu0 %v1965
    %v2045 = vpop.f32.mrb[0].mxu0
    %v2046 = vadd.f32 %v1100, %v2045
    %v2047 = vpop.f32.mrb[0].mxu0
    %2048 = vmatprep.mubr.f32.mxu0 0.0
    %2049 = vmatmul.mubr.f32.gmra.mrb[0].mxu0 %v1967
    %v2050 = vpop.f32.mrb[0].mxu0
    %v2051 = vadd.f32 %v1105, %v2050
    %v2052 = vpop.f32.mrb[0].mxu0
    %2053 = vdwg.mxu0
    %v2054 = vadd.f32 %v2036, %v1209
    %v2055 = vadd.f32 %v2041, %v1209
    %v2056 = vadd.f32 %v2046, %v1209
    %v2057 = vadd.f32 %v2051, %v1209
    %v2058 = vmax.f32 %v2054, 0.0
    %v2059 = vmax.f32 %v2055, 0.0
    %v2060 = vmax.f32 %v2056, 0.0
    %v2061 = vmax.f32 %v2057, 0.0
    %v2062 = vpack.c.bf16 %v2059, %v2058
    %v2063 = vpack.c.bf16 %v2061, %v2060
    %2064 = vmatprep.subr.bf16.mxu0 0
    %2065 = vmatpush1.bf16.msra.mxu0 %v2062
    %2066 = vmatprep.subr.bf16.mxu0 0
    %2067 = vmatpush1.bf16.msra.mxu0 %v2063
    %2068 = vmatprep.subr.bf16.mxu0 0
    %2069 = vmatpush1.bf16.msra.mxu0 0
    %2070 = vmatprep.subr.bf16.mxu0 0
    %2071 = vmatpush1.bf16.msra.mxu0 0
    %2072 = vmatprep.subr.bf16.mxu0 0
    %2073 = vmatpush1.bf16.msra.mxu0 0
    %2074 = vmatprep.subr.bf16.mxu0 0
    %2075 = vmatpush1.bf16.msra.mxu0 0
    %2076 = vmatprep.subr.bf16.mxu0 0
    %2077 = vmatpush1.bf16.msra.mxu0 0
    %2078 = vmatprep.subr.bf16.mxu0 0
    %2079 = vmatpush1.bf16.msra.mxu0 0
    %2080 = vmatprep.subr.bf16.mxu0 0
    %2081 = vmatpush1.bf16.msra.mxu0 0
    %2082 = vmatprep.subr.bf16.mxu0 0
    %2083 = vmatpush1.bf16.msra.mxu0 0
    %2084 = vmatprep.subr.bf16.mxu0 0
    %2085 = vmatpush1.bf16.msra.mxu0 0
    %2086 = vmatprep.subr.bf16.mxu0 0
    %2087 = vmatpush1.bf16.msra.mxu0 0
    %2088 = vmatprep.subr.bf16.mxu0 0
    %2089 = vmatpush1.bf16.msra.mxu0 0
    %2090 = vmatprep.subr.bf16.mxu0 0
    %2091 = vmatpush1.bf16.msra.mxu0 0
    %2092 = vmatprep.subr.bf16.mxu0 0
    %2093 = vmatpush1.bf16.msra.mxu0 0
    %2094 = vmatprep.subr.bf16.mxu0 0
    %2095 = vmatpush1.bf16.msra.mxu0 0
    %2096 = vmatprep.mubr.bf16.mxu0 0
    %2097 = vmatmul.mubr.bf16.gmra.mrb[0].mxu0 %v1232
    %v2098 = vpop.f32.mrb[0].mxu0
    %v2099 = vadd.f32 0.0, %v2098
    %v2100 = vpop.f32.mrb[0].mxu0
    %v2101 = vpop.f32.mrb[0].mxu0
    %v2102 = vadd.f32 0.0, %v2101
    %v2103 = vpop.f32.mrb[0].mxu0
    %2104 = vmatprep.mubr.bf16.mxu0 0
    %2105 = vmatmul.mubr.bf16.gmra.mrb[0].mxu0 %v1235
    %v2106 = vpop.f32.mrb[0].mxu0
    %v2107 = vadd.f32 0.0, %v2106
    %v2108 = vpop.f32.mrb[0].mxu0
    %v2109 = vpop.f32.mrb[0].mxu0
    %v2110 = vadd.f32 0.0, %v2109
    %v2111 = vpop.f32.mrb[0].mxu0
    %2112 = vdwg.mxu0
    %v2114 = vsel %vm689, %v2099, 0
    %v2117 = vsel %vm689, %v2102, 0
    %v2120 = vsel %vm689, %v2107, 0
    %v2123 = vsel %vm689, %v2110, 0
    %2125 = vmatprep.subr.mxu0 0.0
    %2126 = vmatpush1.msra.mxu0 %v283
    %2127 = vmatprep.subr.mxu0 0.0
    %2128 = vmatpush1.msra.mxu0 %v284
    %2129 = vmatprep.subr.mxu0 0.0
    %2130 = vmatpush1.msra.mxu0 %v285
    %2131 = vmatprep.subr.mxu0 0.0
    %2132 = vmatpush1.msra.mxu0 %v286
    %2133 = vmatprep.subr.mxu0 0.0
    %2134 = vmatpush1.msra.mxu0 0.0
    %2135 = vmatprep.subr.mxu0 0.0
    %2136 = vmatpush1.msra.mxu0 0.0
    %2137 = vmatprep.subr.mxu0 0.0
    %2138 = vmatpush1.msra.mxu0 0.0
    %2139 = vmatprep.subr.mxu0 0.0
    %2140 = vmatpush1.msra.mxu0 0.0
    %2141 = vmatprep.subr.mxu0 0.0
    %2142 = vmatpush1.msra.mxu0 0.0
    %2143 = vmatprep.subr.mxu0 0.0
    %2144 = vmatpush1.msra.mxu0 0.0
    %2145 = vmatprep.subr.mxu0 0.0
    %2146 = vmatpush1.msra.mxu0 0.0
    %2147 = vmatprep.subr.mxu0 0.0
    %2148 = vmatpush1.msra.mxu0 0.0
    %2149 = vmatprep.subr.mxu0 0.0
    %2150 = vmatpush1.msra.mxu0 0.0
    %2151 = vmatprep.subr.mxu0 0.0
    %2152 = vmatpush1.msra.mxu0 0.0
    %2153 = vmatprep.subr.mxu0 0.0
    %2154 = vmatpush1.msra.mxu0 0.0
    %2155 = vmatprep.subr.mxu0 0.0
    %2156 = vmatpush1.msra.mxu0 0.0
    %2157 = vmatprep.subr.mxu0 0.0
    %2158 = vmatpush1.msra.mxu0 0.0
    %2159 = vmatprep.subr.mxu0 0.0
    %2160 = vmatpush1.msra.mxu0 0.0
    %2161 = vmatprep.subr.mxu0 0.0
    %2162 = vmatpush1.msra.mxu0 0.0
    %2163 = vmatprep.subr.mxu0 0.0
    %2164 = vmatpush1.msra.mxu0 0.0
    %2165 = vmatprep.subr.mxu0 0.0
    %2166 = vmatpush1.msra.mxu0 0.0
    %2167 = vmatprep.subr.mxu0 0.0
    %2168 = vmatpush1.msra.mxu0 0.0
    %2169 = vmatprep.subr.mxu0 0.0
    %2170 = vmatpush1.msra.mxu0 0.0
    %2171 = vmatprep.subr.mxu0 0.0
    %2172 = vmatpush1.msra.mxu0 0.0
    %2173 = vmatprep.subr.mxu0 0.0
    %2174 = vmatpush1.msra.mxu0 0.0
    %2175 = vmatprep.subr.mxu0 0.0
    %2176 = vmatpush1.msra.mxu0 0.0
    %2177 = vmatprep.subr.mxu0 0.0
    %2178 = vmatpush1.msra.mxu0 0.0
    %2179 = vmatprep.subr.mxu0 0.0
    %2180 = vmatpush1.msra.mxu0 0.0
    %2181 = vmatprep.subr.mxu0 0.0
    %2182 = vmatpush1.msra.mxu0 0.0
    %2183 = vmatprep.subr.mxu0 0.0
    %2184 = vmatpush1.msra.mxu0 0.0
    %2185 = vmatprep.subr.mxu0 0.0
    %2186 = vmatpush1.msra.mxu0 0.0
    %2187 = vmatprep.subr.mxu0 0.0
    %2188 = vmatpush1.msra.mxu0 0.0
    %2189 = vmatprep.mubr.f32.mxu0 0.0
    %2190 = vmatmul.mubr.f32.gmra.mrb[0].mxu0 %v2114
    %v2191 = vpop.f32.mrb[0].mxu0
    %v2192 = vadd.f32 %v1290, %v2191
    %v2193 = vpop.f32.mrb[0].mxu0
    %2194 = vmatprep.mubr.f32.mxu0 0.0
    %2195 = vmatmul.mubr.f32.gmra.mrb[0].mxu0 %v2117
    %v2196 = vpop.f32.mrb[0].mxu0
    %v2197 = vadd.f32 %v1290, %v2196
    %v2198 = vpop.f32.mrb[0].mxu0
    %2199 = vmatprep.mubr.f32.mxu0 0.0
    %2200 = vmatmul.mubr.f32.gmra.mrb[0].mxu0 %v2120
    %v2201 = vpop.f32.mrb[0].mxu0
    %v2202 = vadd.f32 %v1290, %v2201
    %v2203 = vpop.f32.mrb[0].mxu0
    %2204 = vmatprep.mubr.f32.mxu0 0.0
    %2205 = vmatmul.mubr.f32.gmra.mrb[0].mxu0 %v2123
    %v2206 = vpop.f32.mrb[0].mxu0
    %v2207 = vadd.f32 %v1290, %v2206
    %v2208 = vpop.f32.mrb[0].mxu0
    %2209 = vdwg.mxu0
    %v2210 = vmax.f32 %v2192, 0.0
    %v2211 = vmax.f32 %v2197, 0.0
    %v2212 = vmax.f32 %v2202, 0.0
    %v2213 = vmax.f32 %v2207, 0.0
    %v2215 = vsel %vm689, %v2210, 0
    %v2218 = vsel %vm689, %v2211, 0
    %v2221 = vsel %vm689, %v2212, 0
    %v2224 = vsel %vm689, %v2213, 0
    %2226 = vmatprep.subr.mxu0 0.0
    %2227 = vmatpush1.msra.mxu0 %v288
    %2228 = vmatprep.subr.mxu0 0.0
    %2229 = vmatpush1.msra.mxu0 %v289
    %2230 = vmatprep.subr.mxu0 0.0
    %2231 = vmatpush1.msra.mxu0 %v290
    %2232 = vmatprep.subr.mxu0 0.0
    %2233 = vmatpush1.msra.mxu0 %v291
    %2234 = vmatprep.subr.mxu0 0.0
    %2235 = vmatpush1.msra.mxu0 0.0
    %2236 = vmatprep.subr.mxu0 0.0
    %2237 = vmatpush1.msra.mxu0 0.0
    %2238 = vmatprep.subr.mxu0 0.0
    %2239 = vmatpush1.msra.mxu0 0.0
    %2240 = vmatprep.subr.mxu0 0.0
    %2241 = vmatpush1.msra.mxu0 0.0
    %2242 = vmatprep.subr.mxu0 0.0
    %2243 = vmatpush1.msra.mxu0 0.0
    %2244 = vmatprep.subr.mxu0 0.0
    %2245 = vmatpush1.msra.mxu0 0.0
    %2246 = vmatprep.subr.mxu0 0.0
    %2247 = vmatpush1.msra.mxu0 0.0
    %2248 = vmatprep.subr.mxu0 0.0
    %2249 = vmatpush1.msra.mxu0 0.0
    %2250 = vmatprep.subr.mxu0 0.0
    %2251 = vmatpush1.msra.mxu0 0.0
    %2252 = vmatprep.subr.mxu0 0.0
    %2253 = vmatpush1.msra.mxu0 0.0
    %2254 = vmatprep.subr.mxu0 0.0
    %2255 = vmatpush1.msra.mxu0 0.0
    %2256 = vmatprep.subr.mxu0 0.0
    %2257 = vmatpush1.msra.mxu0 0.0
    %2258 = vmatprep.subr.mxu0 0.0
    %2259 = vmatpush1.msra.mxu0 0.0
    %2260 = vmatprep.subr.mxu0 0.0
    %2261 = vmatpush1.msra.mxu0 0.0
    %2262 = vmatprep.subr.mxu0 0.0
    %2263 = vmatpush1.msra.mxu0 0.0
    %2264 = vmatprep.subr.mxu0 0.0
    %2265 = vmatpush1.msra.mxu0 0.0
    %2266 = vmatprep.subr.mxu0 0.0
    %2267 = vmatpush1.msra.mxu0 0.0
    %2268 = vmatprep.subr.mxu0 0.0
    %2269 = vmatpush1.msra.mxu0 0.0
    %2270 = vmatprep.subr.mxu0 0.0
    %2271 = vmatpush1.msra.mxu0 0.0
    %2272 = vmatprep.subr.mxu0 0.0
    %2273 = vmatpush1.msra.mxu0 0.0
    %2274 = vmatprep.subr.mxu0 0.0
    %2275 = vmatpush1.msra.mxu0 0.0
    %2276 = vmatprep.subr.mxu0 0.0
    %2277 = vmatpush1.msra.mxu0 0.0
    %2278 = vmatprep.subr.mxu0 0.0
    %2279 = vmatpush1.msra.mxu0 0.0
    %2280 = vmatprep.subr.mxu0 0.0
    %2281 = vmatpush1.msra.mxu0 0.0
    %2282 = vmatprep.subr.mxu0 0.0
    %2283 = vmatpush1.msra.mxu0 0.0
    %2284 = vmatprep.subr.mxu0 0.0
    %2285 = vmatpush1.msra.mxu0 0.0
    %2286 = vmatprep.subr.mxu0 0.0
    %2287 = vmatpush1.msra.mxu0 0.0
    %2288 = vmatprep.subr.mxu0 0.0
    %2289 = vmatpush1.msra.mxu0 0.0
    %2290 = vmatprep.mubr.f32.mxu0 0.0
    %2291 = vmatmul.mubr.f32.gmra.mrb[0].mxu0 %v2215
    %v2292 = vpop.f32.mrb[0].mxu0
    %v2293 = vadd.f32 %v1397, %v2292
    %v2294 = vpop.f32.mrb[0].mxu0
    %2295 = vmatprep.mubr.f32.mxu0 0.0
    %2296 = vmatmul.mubr.f32.gmra.mrb[0].mxu0 %v2218
    %v2297 = vpop.f32.mrb[0].mxu0
    %v2298 = vadd.f32 %v1397, %v2297
    %v2299 = vpop.f32.mrb[0].mxu0
    %2300 = vmatprep.mubr.f32.mxu0 0.0
    %2301 = vmatmul.mubr.f32.gmra.mrb[0].mxu0 %v2221
    %v2302 = vpop.f32.mrb[0].mxu0
    %v2303 = vadd.f32 %v1397, %v2302
    %v2304 = vpop.f32.mrb[0].mxu0
    %2305 = vmatprep.mubr.f32.mxu0 0.0
    %2306 = vmatmul.mubr.f32.gmra.mrb[0].mxu0 %v2224
    %v2307 = vpop.f32.mrb[0].mxu0
    %v2308 = vadd.f32 %v1397, %v2307
    %v2309 = vpop.f32.mrb[0].mxu0
    %2310 = vdwg.mxu0
    %2311 = vmatprep.subr.mxu0 0.0
    %2312 = vmatpush1.msra.mxu0 %v292
    %2313 = vmatprep.subr.mxu0 0.0
    %2314 = vmatpush1.msra.mxu0 %v293
    %2315 = vmatprep.subr.mxu0 0.0
    %2316 = vmatpush1.msra.mxu0 %v294
    %2317 = vmatprep.subr.mxu0 0.0
    %2318 = vmatpush1.msra.mxu0 %v295
    %2319 = vmatprep.subr.mxu0 0.0
    %2320 = vmatpush1.msra.mxu0 0.0
    %2321 = vmatprep.subr.mxu0 0.0
    %2322 = vmatpush1.msra.mxu0 0.0
    %2323 = vmatprep.subr.mxu0 0.0
    %2324 = vmatpush1.msra.mxu0 0.0
    %2325 = vmatprep.subr.mxu0 0.0
    %2326 = vmatpush1.msra.mxu0 0.0
    %2327 = vmatprep.subr.mxu0 0.0
    %2328 = vmatpush1.msra.mxu0 0.0
    %2329 = vmatprep.subr.mxu0 0.0
    %2330 = vmatpush1.msra.mxu0 0.0
    %2331 = vmatprep.subr.mxu0 0.0
    %2332 = vmatpush1.msra.mxu0 0.0
    %2333 = vmatprep.subr.mxu0 0.0
    %2334 = vmatpush1.msra.mxu0 0.0
    %2335 = vmatprep.subr.mxu0 0.0
    %2336 = vmatpush1.msra.mxu0 0.0
    %2337 = vmatprep.subr.mxu0 0.0
    %2338 = vmatpush1.msra.mxu0 0.0
    %2339 = vmatprep.subr.mxu0 0.0
    %2340 = vmatpush1.msra.mxu0 0.0
    %2341 = vmatprep.subr.mxu0 0.0
    %2342 = vmatpush1.msra.mxu0 0.0
    %2343 = vmatprep.subr.mxu0 0.0
    %2344 = vmatpush1.msra.mxu0 0.0
    %2345 = vmatprep.subr.mxu0 0.0
    %2346 = vmatpush1.msra.mxu0 0.0
    %2347 = vmatprep.subr.mxu0 0.0
    %2348 = vmatpush1.msra.mxu0 0.0
    %2349 = vmatprep.subr.mxu0 0.0
    %2350 = vmatpush1.msra.mxu0 0.0
    %2351 = vmatprep.subr.mxu0 0.0
    %2352 = vmatpush1.msra.mxu0 0.0
    %2353 = vmatprep.subr.mxu0 0.0
    %2354 = vmatpush1.msra.mxu0 0.0
    %2355 = vmatprep.subr.mxu0 0.0
    %2356 = vmatpush1.msra.mxu0 0.0
    %2357 = vmatprep.subr.mxu0 0.0
    %2358 = vmatpush1.msra.mxu0 0.0
    %2359 = vmatprep.subr.mxu0 0.0
    %2360 = vmatpush1.msra.mxu0 0.0
    %2361 = vmatprep.subr.mxu0 0.0
    %2362 = vmatpush1.msra.mxu0 0.0
    %2363 = vmatprep.subr.mxu0 0.0
    %2364 = vmatpush1.msra.mxu0 0.0
    %2365 = vmatprep.subr.mxu0 0.0
    %2366 = vmatpush1.msra.mxu0 0.0
    %2367 = vmatprep.subr.mxu0 0.0
    %2368 = vmatpush1.msra.mxu0 0.0
    %2369 = vmatprep.subr.mxu0 0.0
    %2370 = vmatpush1.msra.mxu0 0.0
    %2371 = vmatprep.subr.mxu0 0.0
    %2372 = vmatpush1.msra.mxu0 0.0
    %2373 = vmatprep.subr.mxu0 0.0
    %2374 = vmatpush1.msra.mxu0 0.0
    %2375 = vmatprep.mubr.f32.mxu0 0.0
    %2376 = vmatmul.mubr.f32.gmra.mrb[0].mxu0 %v1961
    %v2377 = vpop.f32.mrb[0].mxu0
    %v2378 = vadd.f32 %v1500, %v2377
    %v2379 = vpop.f32.mrb[0].mxu0
    %2380 = vmatprep.mubr.f32.mxu0 0.0
    %2381 = vmatmul.mubr.f32.gmra.mrb[0].mxu0 %v1963
    %v2382 = vpop.f32.mrb[0].mxu0
    %v2383 = vadd.f32 %v1500, %v2382
    %v2384 = vpop.f32.mrb[0].mxu0
    %2385 = vmatprep.mubr.f32.mxu0 0.0
    %2386 = vmatmul.mubr.f32.gmra.mrb[0].mxu0 %v1965
    %v2387 = vpop.f32.mrb[0].mxu0
    %v2388 = vadd.f32 %v1500, %v2387
    %v2389 = vpop.f32.mrb[0].mxu0
    %2390 = vmatprep.mubr.f32.mxu0 0.0
    %2391 = vmatmul.mubr.f32.gmra.mrb[0].mxu0 %v1967
    %v2392 = vpop.f32.mrb[0].mxu0
    %v2393 = vadd.f32 %v1500, %v2392
    %v2394 = vpop.f32.mrb[0].mxu0
    %2395 = vdwg.mxu0
    %v2396 = vadd.f32 %v2293, %v2378
    %v2397 = vadd.f32 %v2298, %v2383
    %v2398 = vadd.f32 %v2303, %v2388
    %v2399 = vadd.f32 %v2308, %v2393
    %v2400 = vxor.u32 %v2396, 2147483648
    %v2401 = vxor.u32 %v2397, 2147483648
    %v2402 = vxor.u32 %v2398, 2147483648
    %v2403 = vxor.u32 %v2399, 2147483648
    %v2404 = vmul.f32 %v2400, 1.442695
    %v2405 = vpow.pop %v2404
    %v2406 = vmul.f32 %v2401, 1.442695
    %v2407 = vpow.pop %v2406
    %v2408 = vmul.f32 %v2402, 1.442695
    %v2409 = vpow.pop %v2408
    %v2410 = vmul.f32 %v2403, 1.442695
    %v2411 = vpow.pop %v2410
    %v2412 = vadd.f32 %v2405, 1.0
    %v2413 = vadd.f32 %v2407, 1.0
    %v2414 = vadd.f32 %v2409, 1.0
    %v2415 = vadd.f32 %v2411, 1.0
    %v2416 = vrcp.pop %v2412
    %v2417 = vmul.f32 1.0, %v2416
    %v2418 = vrcp.pop %v2413
    %v2419 = vmul.f32 1.0, %v2418
    %v2420 = vrcp.pop %v2414
    %v2421 = vmul.f32 1.0, %v2420
    %v2422 = vrcp.pop %v2415
    %v2423 = vmul.f32 1.0, %v2422
    %2428 = vrot.lane.b32.xlu0 %v2378, 64
    %v2429 = vpop.permute.xlu0 %2428
    %2430 = vrot.lane.b32.xlu0 %v2383, 64
    %v2431 = vpop.permute.xlu0 %2430
    %2432 = vrot.lane.b32.xlu0 %v2388, 64
    %v2433 = vpop.permute.xlu0 %2432
    %2434 = vrot.lane.b32.xlu0 %v2393, 64
    %v2435 = vpop.permute.xlu0 %2434
    %v2440 = vmul.f32 %v2417, %v2429
    %v2441 = vmul.f32 %v2419, %v2431
    %v2442 = vmul.f32 %v2421, %v2433
    %v2443 = vmul.f32 %v2423, %v2435
    %2448 = vrot.lane.b32.xlu0 %v2440, 64
    %v2449 = vpop.permute.xlu0 %2448
    %2450 = vrot.lane.b32.xlu0 %v2441, 64
    %v2451 = vpop.permute.xlu0 %2450
    %2452 = vrot.lane.b32.xlu0 %v2442, 64
    %v2453 = vpop.permute.xlu0 %2452
    %2454 = vrot.lane.b32.xlu0 %v2443, 64
    %v2455 = vpop.permute.xlu0 %2454
    %v2460 = vadd.f32 %v2293, %v2449
    %v2461 = vadd.f32 %v2298, %v2451
    %v2462 = vadd.f32 %v2303, %v2453
    %v2463 = vadd.f32 %v2308, %v2455
    %v2464 = vtanh.pop %v2460
    %v2465 = vtanh.pop %v2461
    %v2466 = vtanh.pop %v2462
    %v2467 = vtanh.pop %v2463
    %v2468 = vsub.f32 1.0, %v2417
    %v2469 = vsub.f32 1.0, %v2419
    %v2470 = vsub.f32 1.0, %v2421
    %v2471 = vsub.f32 1.0, %v2423
    %2476 = vrot.lane.b32.xlu0 %v2464, 96
    %v2477 = vpop.permute.xlu0 %2476
    %2478 = vrot.lane.b32.xlu0 %v2465, 96
    %v2479 = vpop.permute.xlu0 %2478
    %2480 = vrot.lane.b32.xlu0 %v2466, 96
    %v2481 = vpop.permute.xlu0 %2480
    %2482 = vrot.lane.b32.xlu0 %v2467, 96
    %v2483 = vpop.permute.xlu0 %2482
    %v2488 = vmul.f32 %v2468, %v2477
    %v2489 = vmul.f32 %v2469, %v2479
    %v2490 = vmul.f32 %v2470, %v2481
    %v2491 = vmul.f32 %v2471, %v2483
    %v2492 = vmul.f32 %v2417, %v1699
    %v2493 = vmul.f32 %v2419, %v1700
    %v2494 = vmul.f32 %v2421, %v1701
    %v2495 = vmul.f32 %v2423, %v1702
    %v2496 = vadd.f32 %v2488, %v2492
    %v2497 = vadd.f32 %v2489, %v2493
    %v2498 = vadd.f32 %v2490, %v2494
    %v2499 = vadd.f32 %v2491, %v2495
    %v2500 = vpack.c.bf16 %v2497, %v2496
    %v2501 = vpack.c.bf16 %v2499, %v2498
    %2504 = vrot.lane.b32.xlu0 %v2500, 96
    %v2505 = vpop.permute.xlu0 %2504
    %2506 = vrot.lane.b32.xlu0 %v2501, 96
    %v2507 = vpop.permute.xlu0 %2506
    %2510 = vmatprep.subr.bf16.mxu0 0
    %2511 = vmatpush1.bf16.msra.mxu0 %v2505
    %2512 = vmatprep.subr.bf16.mxu0 0
    %2513 = vmatpush1.bf16.msra.mxu0 %v2507
    %2514 = vmatprep.subr.bf16.mxu0 0
    %2515 = vmatpush1.bf16.msra.mxu0 0
    %2516 = vmatprep.subr.bf16.mxu0 0
    %2517 = vmatpush1.bf16.msra.mxu0 0
    %2518 = vmatprep.subr.bf16.mxu0 0
    %2519 = vmatpush1.bf16.msra.mxu0 0
    %2520 = vmatprep.subr.bf16.mxu0 0
    %2521 = vmatpush1.bf16.msra.mxu0 0
    %2522 = vmatprep.subr.bf16.mxu0 0
    %2523 = vmatpush1.bf16.msra.mxu0 0
    %2524 = vmatprep.subr.bf16.mxu0 0
    %2525 = vmatpush1.bf16.msra.mxu0 0
    %2526 = vmatprep.subr.bf16.mxu0 0
    %2527 = vmatpush1.bf16.msra.mxu0 0
    %2528 = vmatprep.subr.bf16.mxu0 0
    %2529 = vmatpush1.bf16.msra.mxu0 0
    %2530 = vmatprep.subr.bf16.mxu0 0
    %2531 = vmatpush1.bf16.msra.mxu0 0
    %2532 = vmatprep.subr.bf16.mxu0 0
    %2533 = vmatpush1.bf16.msra.mxu0 0
    %2534 = vmatprep.subr.bf16.mxu0 0
    %2535 = vmatpush1.bf16.msra.mxu0 0
    %2536 = vmatprep.subr.bf16.mxu0 0
    %2537 = vmatpush1.bf16.msra.mxu0 0
    %2538 = vmatprep.subr.bf16.mxu0 0
    %2539 = vmatpush1.bf16.msra.mxu0 0
    %2540 = vmatprep.subr.bf16.mxu0 0
    %2541 = vmatpush1.bf16.msra.mxu0 0
    %2542 = vmatprep.mubr.bf16.mxu0 0
    %2543 = vmatmul.mubr.bf16.gmra.mrb[0].mxu0 %v691
    %v2544 = vpop.f32.mrb[0].mxu0
    %v2545 = vadd.f32 0.0, %v2544
    %v2546 = vpop.f32.mrb[0].mxu0
    %v2547 = vpop.f32.mrb[0].mxu0
    %v2548 = vadd.f32 0.0, %v2547
    %v2549 = vpop.f32.mrb[0].mxu0
    %2550 = vdwg.mxu0
    %v2552 = vsel %vm689, %v2545, 0
    %v2555 = vsel %vm689, %v2548, 0
    %2557 = vmatprep.subr.mxu0 0.0
    %2558 = vmatpush1.msra.mxu0 %v265
    %2559 = vmatprep.subr.mxu0 0.0
    %2560 = vmatpush1.msra.mxu0 %v266
    %2561 = vmatprep.subr.mxu0 0.0
    %2562 = vmatpush1.msra.mxu0 %v267
    %2563 = vmatprep.subr.mxu0 0.0
    %2564 = vmatpush1.msra.mxu0 %v268
    %2565 = vmatprep.subr.mxu0 0.0
    %2566 = vmatpush1.msra.mxu0 0.0
    %2567 = vmatprep.subr.mxu0 0.0
    %2568 = vmatpush1.msra.mxu0 0.0
    %2569 = vmatprep.subr.mxu0 0.0
    %2570 = vmatpush1.msra.mxu0 0.0
    %2571 = vmatprep.subr.mxu0 0.0
    %2572 = vmatpush1.msra.mxu0 0.0
    %2573 = vmatprep.subr.mxu0 0.0
    %2574 = vmatpush1.msra.mxu0 0.0
    %2575 = vmatprep.subr.mxu0 0.0
    %2576 = vmatpush1.msra.mxu0 0.0
    %2577 = vmatprep.subr.mxu0 0.0
    %2578 = vmatpush1.msra.mxu0 0.0
    %2579 = vmatprep.subr.mxu0 0.0
    %2580 = vmatpush1.msra.mxu0 0.0
    %2581 = vmatprep.subr.mxu0 0.0
    %2582 = vmatpush1.msra.mxu0 0.0
    %2583 = vmatprep.subr.mxu0 0.0
    %2584 = vmatpush1.msra.mxu0 0.0
    %2585 = vmatprep.subr.mxu0 0.0
    %2586 = vmatpush1.msra.mxu0 0.0
    %2587 = vmatprep.subr.mxu0 0.0
    %2588 = vmatpush1.msra.mxu0 0.0
    %2589 = vmatprep.subr.mxu0 0.0
    %2590 = vmatpush1.msra.mxu0 0.0
    %2591 = vmatprep.subr.mxu0 0.0
    %2592 = vmatpush1.msra.mxu0 0.0
    %2593 = vmatprep.subr.mxu0 0.0
    %2594 = vmatpush1.msra.mxu0 0.0
    %2595 = vmatprep.subr.mxu0 0.0
    %2596 = vmatpush1.msra.mxu0 0.0
    %2597 = vmatprep.subr.mxu0 0.0
    %2598 = vmatpush1.msra.mxu0 0.0
    %2599 = vmatprep.subr.mxu0 0.0
    %2600 = vmatpush1.msra.mxu0 0.0
    %2601 = vmatprep.subr.mxu0 0.0
    %2602 = vmatpush1.msra.mxu0 0.0
    %2603 = vmatprep.subr.mxu0 0.0
    %2604 = vmatpush1.msra.mxu0 0.0
    %2605 = vmatprep.subr.mxu0 0.0
    %2606 = vmatpush1.msra.mxu0 0.0
    %2607 = vmatprep.subr.mxu0 0.0
    %2608 = vmatpush1.msra.mxu0 0.0
    %2609 = vmatprep.subr.mxu0 0.0
    %2610 = vmatpush1.msra.mxu0 0.0
    %2611 = vmatprep.subr.mxu0 0.0
    %2612 = vmatpush1.msra.mxu0 0.0
    %2613 = vmatprep.subr.mxu0 0.0
    %2614 = vmatpush1.msra.mxu0 0.0
    %2615 = vmatprep.subr.mxu0 0.0
    %2616 = vmatpush1.msra.mxu0 0.0
    %2617 = vmatprep.subr.mxu0 0.0
    %2618 = vmatpush1.msra.mxu0 0.0
    %2619 = vmatprep.subr.mxu0 0.0
    %2620 = vmatpush1.msra.mxu0 0.0
    %2621 = vmatprep.mubr.f32.mxu0 0.0
    %2622 = vmatmul.mubr.f32.gmra.mrb[0].mxu0 %v2552
    %v2623 = vpop.f32.mrb[0].mxu0
    %v2624 = vadd.f32 %v738, %v2623
    %v2625 = vpop.f32.mrb[0].mxu0
    %2626 = vmatprep.mubr.f32.mxu0 0.0
    %2627 = vmatmul.mubr.f32.gmra.mrb[0].mxu0 %v2555
    %v2628 = vpop.f32.mrb[0].mxu0
    %v2629 = vadd.f32 %v738, %v2628
    %v2630 = vpop.f32.mrb[0].mxu0
    %2631 = vdwg.mxu0
    %v2632 = vmax.f32 %v2624, 0.0
    %v2633 = vmax.f32 %v2629, 0.0
    %v2635 = vsel %vm689, %v2632, 0
    %v2638 = vsel %vm689, %v2633, 0
    %2640 = vmatprep.subr.mxu0 0.0
    %2641 = vmatpush1.msra.mxu0 %v270
    %2642 = vmatprep.subr.mxu0 0.0
    %2643 = vmatpush1.msra.mxu0 %v271
    %2644 = vmatprep.subr.mxu0 0.0
    %2645 = vmatpush1.msra.mxu0 %v272
    %2646 = vmatprep.subr.mxu0 0.0
    %2647 = vmatpush1.msra.mxu0 %v273
    %2648 = vmatprep.subr.mxu0 0.0
    %2649 = vmatpush1.msra.mxu0 0.0
    %2650 = vmatprep.subr.mxu0 0.0
    %2651 = vmatpush1.msra.mxu0 0.0
    %2652 = vmatprep.subr.mxu0 0.0
    %2653 = vmatpush1.msra.mxu0 0.0
    %2654 = vmatprep.subr.mxu0 0.0
    %2655 = vmatpush1.msra.mxu0 0.0
    %2656 = vmatprep.subr.mxu0 0.0
    %2657 = vmatpush1.msra.mxu0 0.0
    %2658 = vmatprep.subr.mxu0 0.0
    %2659 = vmatpush1.msra.mxu0 0.0
    %2660 = vmatprep.subr.mxu0 0.0
    %2661 = vmatpush1.msra.mxu0 0.0
    %2662 = vmatprep.subr.mxu0 0.0
    %2663 = vmatpush1.msra.mxu0 0.0
    %2664 = vmatprep.subr.mxu0 0.0
    %2665 = vmatpush1.msra.mxu0 0.0
    %2666 = vmatprep.subr.mxu0 0.0
    %2667 = vmatpush1.msra.mxu0 0.0
    %2668 = vmatprep.subr.mxu0 0.0
    %2669 = vmatpush1.msra.mxu0 0.0
    %2670 = vmatprep.subr.mxu0 0.0
    %2671 = vmatpush1.msra.mxu0 0.0
    %2672 = vmatprep.subr.mxu0 0.0
    %2673 = vmatpush1.msra.mxu0 0.0
    %2674 = vmatprep.subr.mxu0 0.0
    %2675 = vmatpush1.msra.mxu0 0.0
    %2676 = vmatprep.subr.mxu0 0.0
    %2677 = vmatpush1.msra.mxu0 0.0
    %2678 = vmatprep.subr.mxu0 0.0
    %2679 = vmatpush1.msra.mxu0 0.0
    %2680 = vmatprep.subr.mxu0 0.0
    %2681 = vmatpush1.msra.mxu0 0.0
    %2682 = vmatprep.subr.mxu0 0.0
    %2683 = vmatpush1.msra.mxu0 0.0
    %2684 = vmatprep.subr.mxu0 0.0
    %2685 = vmatpush1.msra.mxu0 0.0
    %2686 = vmatprep.subr.mxu0 0.0
    %2687 = vmatpush1.msra.mxu0 0.0
    %2688 = vmatprep.subr.mxu0 0.0
    %2689 = vmatpush1.msra.mxu0 0.0
    %2690 = vmatprep.subr.mxu0 0.0
    %2691 = vmatpush1.msra.mxu0 0.0
    %2692 = vmatprep.subr.mxu0 0.0
    %2693 = vmatpush1.msra.mxu0 0.0
    %2694 = vmatprep.subr.mxu0 0.0
    %2695 = vmatpush1.msra.mxu0 0.0
    %2696 = vmatprep.subr.mxu0 0.0
    %2697 = vmatpush1.msra.mxu0 0.0
    %2698 = vmatprep.subr.mxu0 0.0
    %2699 = vmatpush1.msra.mxu0 0.0
    %2700 = vmatprep.subr.mxu0 0.0
    %2701 = vmatpush1.msra.mxu0 0.0
    %2702 = vmatprep.subr.mxu0 0.0
    %2703 = vmatpush1.msra.mxu0 0.0
    %2704 = vmatprep.mubr.f32.mxu0 0.0
    %2705 = vmatmul.mubr.f32.gmra.mrb[0].mxu0 %v2635
    %v2706 = vpop.f32.mrb[0].mxu0
    %v2707 = vadd.f32 %v896, %v2706
    %v2708 = vpop.f32.mrb[0].mxu0
    %2709 = vmatprep.mubr.f32.mxu0 0.0
    %2710 = vmatmul.mubr.f32.gmra.mrb[0].mxu0 %v2638
    %v2711 = vpop.f32.mrb[0].mxu0
    %v2712 = vadd.f32 %v901, %v2711
    %v2713 = vpop.f32.mrb[0].mxu0
    %2714 = vdwg.mxu0
    %v2715 = vadd.f32 %v2707, %v989
    %v2716 = vadd.f32 %v2712, %v989
    %v2717 = vmax.f32 %v2715, 0.0
    %v2718 = vmax.f32 %v2716, 0.0
    %v2719 = vsel %vm996, %v2717, -1e+30
    %v2720 = vsel %vm996, %v2718, -1e+30
    %2721 = vmax.xlane.f32.xlu0 %v2719
    %v2722 = vpop.xlane.xlu0 %2721
    %2723 = vmax.xlane.f32.xlu0 %v2720
    %v2724 = vpop.xlane.xlu0 %2723
    %v2725 = vsub.f32 %v2719, %v2722
    %v2726 = vsub.f32 %v2720, %v2724
    %v2727 = vmul.f32 %v2725, 1.442695
    %v2728 = vpow.pop %v2727
    %v2729 = vmul.f32 %v2726, 1.442695
    %v2730 = vpow.pop %v2729
    %2731 = vadd.xlane.f32.xlu0 %v2728
    %v2732 = vpop.xlane.xlu0 %2731
    %2733 = vadd.xlane.f32.xlu0 %v2730
    %v2734 = vpop.xlane.xlu0 %2733
    %v2735 = vlog2.pop %v2732
    %v2736 = vmul.f32 %v2735, 0.6931472
    %v2737 = vlog2.pop %v2734
    %v2738 = vmul.f32 %v2737, 0.6931472
    %v2739 = vadd.f32 %v2736, %v2722
    %v2740 = vadd.f32 %v2738, %v2724
    %v2741 = vsub.f32 %v2719, %v2739
    %v2742 = vsub.f32 %v2720, %v2740
    %s2743 = scalar_lea.vmem [#allocation23], 32
    %2744 = vst [vmem:[%s2743] sm:$0xff] %v2741
    %2745 = vst [vmem:[%s2743 + $0x8] sm:$0xff] %v2742
    %2750 = vrot.lane.b32.xlu0 %v2496, 96
    %v2751 = vpop.permute.xlu0 %2750
    %2752 = vrot.lane.b32.xlu0 %v2497, 96
    %v2753 = vpop.permute.xlu0 %2752
    %2754 = vrot.lane.b32.xlu0 %v2498, 96
    %v2755 = vpop.permute.xlu0 %2754
    %2756 = vrot.lane.b32.xlu0 %v2499, 96
    %v2757 = vpop.permute.xlu0 %2756
    %v2758 = vsel %vm689, %v2751, 0
    %v2760 = vsel %vm689, %v2753, 0
    %v2762 = vsel %vm689, %v2755, 0
    %v2764 = vsel %vm689, %v2757, 0
    %2766 = vmatprep.subr.mxu0 0.0
    %2767 = vmatpush1.msra.mxu0 %v277
    %2768 = vmatprep.subr.mxu0 0.0
    %2769 = vmatpush1.msra.mxu0 %v278
    %2770 = vmatprep.subr.mxu0 0.0
    %2771 = vmatpush1.msra.mxu0 %v279
    %2772 = vmatprep.subr.mxu0 0.0
    %2773 = vmatpush1.msra.mxu0 %v280
    %2774 = vmatprep.subr.mxu0 0.0
    %2775 = vmatpush1.msra.mxu0 0.0
    %2776 = vmatprep.subr.mxu0 0.0
    %2777 = vmatpush1.msra.mxu0 0.0
    %2778 = vmatprep.subr.mxu0 0.0
    %2779 = vmatpush1.msra.mxu0 0.0
    %2780 = vmatprep.subr.mxu0 0.0
    %2781 = vmatpush1.msra.mxu0 0.0
    %2782 = vmatprep.subr.mxu0 0.0
    %2783 = vmatpush1.msra.mxu0 0.0
    %2784 = vmatprep.subr.mxu0 0.0
    %2785 = vmatpush1.msra.mxu0 0.0
    %2786 = vmatprep.subr.mxu0 0.0
    %2787 = vmatpush1.msra.mxu0 0.0
    %2788 = vmatprep.subr.mxu0 0.0
    %2789 = vmatpush1.msra.mxu0 0.0
    %2790 = vmatprep.subr.mxu0 0.0
    %2791 = vmatpush1.msra.mxu0 0.0
    %2792 = vmatprep.subr.mxu0 0.0
    %2793 = vmatpush1.msra.mxu0 0.0
    %2794 = vmatprep.subr.mxu0 0.0
    %2795 = vmatpush1.msra.mxu0 0.0
    %2796 = vmatprep.subr.mxu0 0.0
    %2797 = vmatpush1.msra.mxu0 0.0
    %2798 = vmatprep.subr.mxu0 0.0
    %2799 = vmatpush1.msra.mxu0 0.0
    %2800 = vmatprep.subr.mxu0 0.0
    %2801 = vmatpush1.msra.mxu0 0.0
    %2802 = vmatprep.subr.mxu0 0.0
    %2803 = vmatpush1.msra.mxu0 0.0
    %2804 = vmatprep.subr.mxu0 0.0
    %2805 = vmatpush1.msra.mxu0 0.0
    %2806 = vmatprep.subr.mxu0 0.0
    %2807 = vmatpush1.msra.mxu0 0.0
    %2808 = vmatprep.subr.mxu0 0.0
    %2809 = vmatpush1.msra.mxu0 0.0
    %2810 = vmatprep.subr.mxu0 0.0
    %2811 = vmatpush1.msra.mxu0 0.0
    %2812 = vmatprep.subr.mxu0 0.0
    %2813 = vmatpush1.msra.mxu0 0.0
    %2814 = vmatprep.subr.mxu0 0.0
    %2815 = vmatpush1.msra.mxu0 0.0
    %2816 = vmatprep.subr.mxu0 0.0
    %2817 = vmatpush1.msra.mxu0 0.0
    %2818 = vmatprep.subr.mxu0 0.0
    %2819 = vmatpush1.msra.mxu0 0.0
    %2820 = vmatprep.subr.mxu0 0.0
    %2821 = vmatpush1.msra.mxu0 0.0
    %2822 = vmatprep.subr.mxu0 0.0
    %2823 = vmatpush1.msra.mxu0 0.0
    %2824 = vmatprep.subr.mxu0 0.0
    %2825 = vmatpush1.msra.mxu0 0.0
    %2826 = vmatprep.subr.mxu0 0.0
    %2827 = vmatpush1.msra.mxu0 0.0
    %2828 = vmatprep.subr.mxu0 0.0
    %2829 = vmatpush1.msra.mxu0 0.0
    %2830 = vmatprep.mubr.f32.mxu0 0.0
    %2831 = vmatmul.mubr.f32.gmra.mrb[0].mxu0 %v2758
    %v2832 = vpop.f32.mrb[0].mxu0
    %v2833 = vadd.f32 %v1090, %v2832
    %v2834 = vpop.f32.mrb[0].mxu0
    %2835 = vmatprep.mubr.f32.mxu0 0.0
    %2836 = vmatmul.mubr.f32.gmra.mrb[0].mxu0 %v2760
    %v2837 = vpop.f32.mrb[0].mxu0
    %v2838 = vadd.f32 %v1095, %v2837
    %v2839 = vpop.f32.mrb[0].mxu0
    %2840 = vmatprep.mubr.f32.mxu0 0.0
    %2841 = vmatmul.mubr.f32.gmra.mrb[0].mxu0 %v2762
    %v2842 = vpop.f32.mrb[0].mxu0
    %v2843 = vadd.f32 %v1100, %v2842
    %v2844 = vpop.f32.mrb[0].mxu0
    %2845 = vmatprep.mubr.f32.mxu0 0.0
    %2846 = vmatmul.mubr.f32.gmra.mrb[0].mxu0 %v2764
    %v2847 = vpop.f32.mrb[0].mxu0
    %v2848 = vadd.f32 %v1105, %v2847
    %v2849 = vpop.f32.mrb[0].mxu0
    %2850 = vdwg.mxu0
    %v2851 = vadd.f32 %v2833, %v1209
    %v2852 = vadd.f32 %v2838, %v1209
    %v2853 = vadd.f32 %v2843, %v1209
    %v2854 = vadd.f32 %v2848, %v1209
    %v2855 = vmax.f32 %v2851, 0.0
    %v2856 = vmax.f32 %v2852, 0.0
    %v2857 = vmax.f32 %v2853, 0.0
    %v2858 = vmax.f32 %v2854, 0.0
    %v2859 = vpack.c.bf16 %v2856, %v2855
    %v2860 = vpack.c.bf16 %v2858, %v2857
    %2861 = vmatprep.subr.bf16.mxu0 0
    %2862 = vmatpush1.bf16.msra.mxu0 %v2859
    %2863 = vmatprep.subr.bf16.mxu0 0
    %2864 = vmatpush1.bf16.msra.mxu0 %v2860
    %2865 = vmatprep.subr.bf16.mxu0 0
    %2866 = vmatpush1.bf16.msra.mxu0 0
    %2867 = vmatprep.subr.bf16.mxu0 0
    %2868 = vmatpush1.bf16.msra.mxu0 0
    %2869 = vmatprep.subr.bf16.mxu0 0
    %2870 = vmatpush1.bf16.msra.mxu0 0
    %2871 = vmatprep.subr.bf16.mxu0 0
    %2872 = vmatpush1.bf16.msra.mxu0 0
    %2873 = vmatprep.subr.bf16.mxu0 0
    %2874 = vmatpush1.bf16.msra.mxu0 0
    %2875 = vmatprep.subr.bf16.mxu0 0
    %2876 = vmatpush1.bf16.msra.mxu0 0
    %2877 = vmatprep.subr.bf16.mxu0 0
    %2878 = vmatpush1.bf16.msra.mxu0 0
    %2879 = vmatprep.subr.bf16.mxu0 0
    %2880 = vmatpush1.bf16.msra.mxu0 0
    %2881 = vmatprep.subr.bf16.mxu0 0
    %2882 = vmatpush1.bf16.msra.mxu0 0
    %2883 = vmatprep.subr.bf16.mxu0 0
    %2884 = vmatpush1.bf16.msra.mxu0 0
    %2885 = vmatprep.subr.bf16.mxu0 0
    %2886 = vmatpush1.bf16.msra.mxu0 0
    %2887 = vmatprep.subr.bf16.mxu0 0
    %2888 = vmatpush1.bf16.msra.mxu0 0
    %2889 = vmatprep.subr.bf16.mxu0 0
    %2890 = vmatpush1.bf16.msra.mxu0 0
    %2891 = vmatprep.subr.bf16.mxu0 0
    %2892 = vmatpush1.bf16.msra.mxu0 0
    %2893 = vmatprep.mubr.bf16.mxu0 0
    %2894 = vmatmul.mubr.bf16.gmra.mrb[0].mxu0 %v1232
    %v2895 = vpop.f32.mrb[0].mxu0
    %v2896 = vadd.f32 0.0, %v2895
    %v2897 = vpop.f32.mrb[0].mxu0
    %v2898 = vpop.f32.mrb[0].mxu0
    %v2899 = vadd.f32 0.0, %v2898
    %v2900 = vpop.f32.mrb[0].mxu0
    %2901 = vmatprep.mubr.bf16.mxu0 0
    %2902 = vmatmul.mubr.bf16.gmra.mrb[0].mxu0 %v1235
    %v2903 = vpop.f32.mrb[0].mxu0
    %v2904 = vadd.f32 0.0, %v2903
    %v2905 = vpop.f32.mrb[0].mxu0
    %v2906 = vpop.f32.mrb[0].mxu0
    %v2907 = vadd.f32 0.0, %v2906
    %v2908 = vpop.f32.mrb[0].mxu0
    %2909 = vdwg.mxu0
    %v2911 = vsel %vm689, %v2896, 0
    %v2914 = vsel %vm689, %v2899, 0
    %v2917 = vsel %vm689, %v2904, 0
    %v2920 = vsel %vm689, %v2907, 0
    %2922 = vmatprep.subr.mxu0 0.0
    %2923 = vmatpush1.msra.mxu0 %v283
    %2924 = vmatprep.subr.mxu0 0.0
    %2925 = vmatpush1.msra.mxu0 %v284
    %2926 = vmatprep.subr.mxu0 0.0
    %2927 = vmatpush1.msra.mxu0 %v285
    %2928 = vmatprep.subr.mxu0 0.0
    %2929 = vmatpush1.msra.mxu0 %v286
    %2930 = vmatprep.subr.mxu0 0.0
    %2931 = vmatpush1.msra.mxu0 0.0
    %2932 = vmatprep.subr.mxu0 0.0
    %2933 = vmatpush1.msra.mxu0 0.0
    %2934 = vmatprep.subr.mxu0 0.0
    %2935 = vmatpush1.msra.mxu0 0.0
    %2936 = vmatprep.subr.mxu0 0.0
    %2937 = vmatpush1.msra.mxu0 0.0
    %2938 = vmatprep.subr.mxu0 0.0
    %2939 = vmatpush1.msra.mxu0 0.0
    %2940 = vmatprep.subr.mxu0 0.0
    %2941 = vmatpush1.msra.mxu0 0.0
    %2942 = vmatprep.subr.mxu0 0.0
    %2943 = vmatpush1.msra.mxu0 0.0
    %2944 = vmatprep.subr.mxu0 0.0
    %2945 = vmatpush1.msra.mxu0 0.0
    %2946 = vmatprep.subr.mxu0 0.0
    %2947 = vmatpush1.msra.mxu0 0.0
    %2948 = vmatprep.subr.mxu0 0.0
    %2949 = vmatpush1.msra.mxu0 0.0
    %2950 = vmatprep.subr.mxu0 0.0
    %2951 = vmatpush1.msra.mxu0 0.0
    %2952 = vmatprep.subr.mxu0 0.0
    %2953 = vmatpush1.msra.mxu0 0.0
    %2954 = vmatprep.subr.mxu0 0.0
    %2955 = vmatpush1.msra.mxu0 0.0
    %2956 = vmatprep.subr.mxu0 0.0
    %2957 = vmatpush1.msra.mxu0 0.0
    %2958 = vmatprep.subr.mxu0 0.0
    %2959 = vmatpush1.msra.mxu0 0.0
    %2960 = vmatprep.subr.mxu0 0.0
    %2961 = vmatpush1.msra.mxu0 0.0
    %2962 = vmatprep.subr.mxu0 0.0
    %2963 = vmatpush1.msra.mxu0 0.0
    %2964 = vmatprep.subr.mxu0 0.0
    %2965 = vmatpush1.msra.mxu0 0.0
    %2966 = vmatprep.subr.mxu0 0.0
    %2967 = vmatpush1.msra.mxu0 0.0
    %2968 = vmatprep.subr.mxu0 0.0
    %2969 = vmatpush1.msra.mxu0 0.0
    %2970 = vmatprep.subr.mxu0 0.0
    %2971 = vmatpush1.msra.mxu0 0.0
    %2972 = vmatprep.subr.mxu0 0.0
    %2973 = vmatpush1.msra.mxu0 0.0
    %2974 = vmatprep.subr.mxu0 0.0
    %2975 = vmatpush1.msra.mxu0 0.0
    %2976 = vmatprep.subr.mxu0 0.0
    %2977 = vmatpush1.msra.mxu0 0.0
    %2978 = vmatprep.subr.mxu0 0.0
    %2979 = vmatpush1.msra.mxu0 0.0
    %2980 = vmatprep.subr.mxu0 0.0
    %2981 = vmatpush1.msra.mxu0 0.0
    %2982 = vmatprep.subr.mxu0 0.0
    %2983 = vmatpush1.msra.mxu0 0.0
    %2984 = vmatprep.subr.mxu0 0.0
    %2985 = vmatpush1.msra.mxu0 0.0
    %2986 = vmatprep.mubr.f32.mxu0 0.0
    %2987 = vmatmul.mubr.f32.gmra.mrb[0].mxu0 %v2911
    %v2988 = vpop.f32.mrb[0].mxu0
    %v2989 = vadd.f32 %v1290, %v2988
    %v2990 = vpop.f32.mrb[0].mxu0
    %2991 = vmatprep.mubr.f32.mxu0 0.0
    %2992 = vmatmul.mubr.f32.gmra.mrb[0].mxu0 %v2914
    %v2993 = vpop.f32.mrb[0].mxu0
    %v2994 = vadd.f32 %v1290, %v2993
    %v2995 = vpop.f32.mrb[0].mxu0
    %2996 = vmatprep.mubr.f32.mxu0 0.0
    %2997 = vmatmul.mubr.f32.gmra.mrb[0].mxu0 %v2917
    %v2998 = vpop.f32.mrb[0].mxu0
    %v2999 = vadd.f32 %v1290, %v2998
    %v3000 = vpop.f32.mrb[0].mxu0
    %3001 = vmatprep.mubr.f32.mxu0 0.0
    %3002 = vmatmul.mubr.f32.gmra.mrb[0].mxu0 %v2920
    %v3003 = vpop.f32.mrb[0].mxu0
    %v3004 = vadd.f32 %v1290, %v3003
    %v3005 = vpop.f32.mrb[0].mxu0
    %3006 = vdwg.mxu0
    %v3007 = vmax.f32 %v2989, 0.0
    %v3008 = vmax.f32 %v2994, 0.0
    %v3009 = vmax.f32 %v2999, 0.0
    %v3010 = vmax.f32 %v3004, 0.0
    %v3012 = vsel %vm689, %v3007, 0
    %v3015 = vsel %vm689, %v3008, 0
    %v3018 = vsel %vm689, %v3009, 0
    %v3021 = vsel %vm689, %v3010, 0
    %3023 = vmatprep.subr.mxu0 0.0
    %3024 = vmatpush1.msra.mxu0 %v288
    %3025 = vmatprep.subr.mxu0 0.0
    %3026 = vmatpush1.msra.mxu0 %v289
    %3027 = vmatprep.subr.mxu0 0.0
    %3028 = vmatpush1.msra.mxu0 %v290
    %3029 = vmatprep.subr.mxu0 0.0
    %3030 = vmatpush1.msra.mxu0 %v291
    %3031 = vmatprep.subr.mxu0 0.0
    %3032 = vmatpush1.msra.mxu0 0.0
    %3033 = vmatprep.subr.mxu0 0.0
    %3034 = vmatpush1.msra.mxu0 0.0
    %3035 = vmatprep.subr.mxu0 0.0
    %3036 = vmatpush1.msra.mxu0 0.0
    %3037 = vmatprep.subr.mxu0 0.0
    %3038 = vmatpush1.msra.mxu0 0.0
    %3039 = vmatprep.subr.mxu0 0.0
    %3040 = vmatpush1.msra.mxu0 0.0
    %3041 = vmatprep.subr.mxu0 0.0
    %3042 = vmatpush1.msra.mxu0 0.0
    %3043 = vmatprep.subr.mxu0 0.0
    %3044 = vmatpush1.msra.mxu0 0.0
    %3045 = vmatprep.subr.mxu0 0.0
    %3046 = vmatpush1.msra.mxu0 0.0
    %3047 = vmatprep.subr.mxu0 0.0
    %3048 = vmatpush1.msra.mxu0 0.0
    %3049 = vmatprep.subr.mxu0 0.0
    %3050 = vmatpush1.msra.mxu0 0.0
    %3051 = vmatprep.subr.mxu0 0.0
    %3052 = vmatpush1.msra.mxu0 0.0
    %3053 = vmatprep.subr.mxu0 0.0
    %3054 = vmatpush1.msra.mxu0 0.0
    %3055 = vmatprep.subr.mxu0 0.0
    %3056 = vmatpush1.msra.mxu0 0.0
    %3057 = vmatprep.subr.mxu0 0.0
    %3058 = vmatpush1.msra.mxu0 0.0
    %3059 = vmatprep.subr.mxu0 0.0
    %3060 = vmatpush1.msra.mxu0 0.0
    %3061 = vmatprep.subr.mxu0 0.0
    %3062 = vmatpush1.msra.mxu0 0.0
    %3063 = vmatprep.subr.mxu0 0.0
    %3064 = vmatpush1.msra.mxu0 0.0
    %3065 = vmatprep.subr.mxu0 0.0
    %3066 = vmatpush1.msra.mxu0 0.0
    %3067 = vmatprep.subr.mxu0 0.0
    %3068 = vmatpush1.msra.mxu0 0.0
    %3069 = vmatprep.subr.mxu0 0.0
    %3070 = vmatpush1.msra.mxu0 0.0
    %3071 = vmatprep.subr.mxu0 0.0
    %3072 = vmatpush1.msra.mxu0 0.0
    %3073 = vmatprep.subr.mxu0 0.0
    %3074 = vmatpush1.msra.mxu0 0.0
    %3075 = vmatprep.subr.mxu0 0.0
    %3076 = vmatpush1.msra.mxu0 0.0
    %3077 = vmatprep.subr.mxu0 0.0
    %3078 = vmatpush1.msra.mxu0 0.0
    %3079 = vmatprep.subr.mxu0 0.0
    %3080 = vmatpush1.msra.mxu0 0.0
    %3081 = vmatprep.subr.mxu0 0.0
    %3082 = vmatpush1.msra.mxu0 0.0
    %3083 = vmatprep.subr.mxu0 0.0
    %3084 = vmatpush1.msra.mxu0 0.0
    %3085 = vmatprep.subr.mxu0 0.0
    %3086 = vmatpush1.msra.mxu0 0.0
    %3087 = vmatprep.mubr.f32.mxu0 0.0
    %3088 = vmatmul.mubr.f32.gmra.mrb[0].mxu0 %v3012
    %v3089 = vpop.f32.mrb[0].mxu0
    %v3090 = vadd.f32 %v1397, %v3089
    %v3091 = vpop.f32.mrb[0].mxu0
    %3092 = vmatprep.mubr.f32.mxu0 0.0
    %3093 = vmatmul.mubr.f32.gmra.mrb[0].mxu0 %v3015
    %v3094 = vpop.f32.mrb[0].mxu0
    %v3095 = vadd.f32 %v1397, %v3094
    %v3096 = vpop.f32.mrb[0].mxu0
    %3097 = vmatprep.mubr.f32.mxu0 0.0
    %3098 = vmatmul.mubr.f32.gmra.mrb[0].mxu0 %v3018
    %v3099 = vpop.f32.mrb[0].mxu0
    %v3100 = vadd.f32 %v1397, %v3099
    %v3101 = vpop.f32.mrb[0].mxu0
    %3102 = vmatprep.mubr.f32.mxu0 0.0
    %3103 = vmatmul.mubr.f32.gmra.mrb[0].mxu0 %v3021
    %v3104 = vpop.f32.mrb[0].mxu0
    %v3105 = vadd.f32 %v1397, %v3104
    %v3106 = vpop.f32.mrb[0].mxu0
    %3107 = vdwg.mxu0
    %3108 = vmatprep.subr.mxu0 0.0
    %3109 = vmatpush1.msra.mxu0 %v292
    %3110 = vmatprep.subr.mxu0 0.0
    %3111 = vmatpush1.msra.mxu0 %v293
    %3112 = vmatprep.subr.mxu0 0.0
    %3113 = vmatpush1.msra.mxu0 %v294
    %3114 = vmatprep.subr.mxu0 0.0
    %3115 = vmatpush1.msra.mxu0 %v295
    %3116 = vmatprep.subr.mxu0 0.0
    %3117 = vmatpush1.msra.mxu0 0.0
    %3118 = vmatprep.subr.mxu0 0.0
    %3119 = vmatpush1.msra.mxu0 0.0
    %3120 = vmatprep.subr.mxu0 0.0
    %3121 = vmatpush1.msra.mxu0 0.0
    %3122 = vmatprep.subr.mxu0 0.0
    %3123 = vmatpush1.msra.mxu0 0.0
    %3124 = vmatprep.subr.mxu0 0.0
    %3125 = vmatpush1.msra.mxu0 0.0
    %3126 = vmatprep.subr.mxu0 0.0
    %3127 = vmatpush1.msra.mxu0 0.0
    %3128 = vmatprep.subr.mxu0 0.0
    %3129 = vmatpush1.msra.mxu0 0.0
    %3130 = vmatprep.subr.mxu0 0.0
    %3131 = vmatpush1.msra.mxu0 0.0
    %3132 = vmatprep.subr.mxu0 0.0
    %3133 = vmatpush1.msra.mxu0 0.0
    %3134 = vmatprep.subr.mxu0 0.0
    %3135 = vmatpush1.msra.mxu0 0.0
    %3136 = vmatprep.subr.mxu0 0.0
    %3137 = vmatpush1.msra.mxu0 0.0
    %3138 = vmatprep.subr.mxu0 0.0
    %3139 = vmatpush1.msra.mxu0 0.0
    %3140 = vmatprep.subr.mxu0 0.0
    %3141 = vmatpush1.msra.mxu0 0.0
    %3142 = vmatprep.subr.mxu0 0.0
    %3143 = vmatpush1.msra.mxu0 0.0
    %3144 = vmatprep.subr.mxu0 0.0
    %3145 = vmatpush1.msra.mxu0 0.0
    %3146 = vmatprep.subr.mxu0 0.0
    %3147 = vmatpush1.msra.mxu0 0.0
    %3148 = vmatprep.subr.mxu0 0.0
    %3149 = vmatpush1.msra.mxu0 0.0
    %3150 = vmatprep.subr.mxu0 0.0
    %3151 = vmatpush1.msra.mxu0 0.0
    %3152 = vmatprep.subr.mxu0 0.0
    %3153 = vmatpush1.msra.mxu0 0.0
    %3154 = vmatprep.subr.mxu0 0.0
    %3155 = vmatpush1.msra.mxu0 0.0
    %3156 = vmatprep.subr.mxu0 0.0
    %3157 = vmatpush1.msra.mxu0 0.0
    %3158 = vmatprep.subr.mxu0 0.0
    %3159 = vmatpush1.msra.mxu0 0.0
    %3160 = vmatprep.subr.mxu0 0.0
    %3161 = vmatpush1.msra.mxu0 0.0
    %3162 = vmatprep.subr.mxu0 0.0
    %3163 = vmatpush1.msra.mxu0 0.0
    %3164 = vmatprep.subr.mxu0 0.0
    %3165 = vmatpush1.msra.mxu0 0.0
    %3166 = vmatprep.subr.mxu0 0.0
    %3167 = vmatpush1.msra.mxu0 0.0
    %3168 = vmatprep.subr.mxu0 0.0
    %3169 = vmatpush1.msra.mxu0 0.0
    %3170 = vmatprep.subr.mxu0 0.0
    %3171 = vmatpush1.msra.mxu0 0.0
    %3172 = vmatprep.mubr.f32.mxu0 0.0
    %3173 = vmatmul.mubr.f32.gmra.mrb[0].mxu0 %v2758
    %v3174 = vpop.f32.mrb[0].mxu0
    %v3175 = vadd.f32 %v1500, %v3174
    %v3176 = vpop.f32.mrb[0].mxu0
    %3177 = vmatprep.mubr.f32.mxu0 0.0
    %3178 = vmatmul.mubr.f32.gmra.mrb[0].mxu0 %v2760
    %v3179 = vpop.f32.mrb[0].mxu0
    %v3180 = vadd.f32 %v1500, %v3179
    %v3181 = vpop.f32.mrb[0].mxu0
    %3182 = vmatprep.mubr.f32.mxu0 0.0
    %3183 = vmatmul.mubr.f32.gmra.mrb[0].mxu0 %v2762
    %v3184 = vpop.f32.mrb[0].mxu0
    %v3185 = vadd.f32 %v1500, %v3184
    %v3186 = vpop.f32.mrb[0].mxu0
    %3187 = vmatprep.mubr.f32.mxu0 0.0
    %3188 = vmatmul.mubr.f32.gmra.mrb[0].mxu0 %v2764
    %v3189 = vpop.f32.mrb[0].mxu0
    %v3190 = vadd.f32 %v1500, %v3189
    %v3191 = vpop.f32.mrb[0].mxu0
    %3192 = vdwg.mxu0
    %v3193 = vadd.f32 %v3090, %v3175
    %v3194 = vadd.f32 %v3095, %v3180
    %v3195 = vadd.f32 %v3100, %v3185
    %v3196 = vadd.f32 %v3105, %v3190
    %v3197 = vxor.u32 %v3193, 2147483648
    %v3198 = vxor.u32 %v3194, 2147483648
    %v3199 = vxor.u32 %v3195, 2147483648
    %v3200 = vxor.u32 %v3196, 2147483648
    %v3201 = vmul.f32 %v3197, 1.442695
    %v3202 = vpow.pop %v3201
    %v3203 = vmul.f32 %v3198, 1.442695
    %v3204 = vpow.pop %v3203
    %v3205 = vmul.f32 %v3199, 1.442695
    %v3206 = vpow.pop %v3205
    %v3207 = vmul.f32 %v3200, 1.442695
    %v3208 = vpow.pop %v3207
    %v3209 = vadd.f32 %v3202, 1.0
    %v3210 = vadd.f32 %v3204, 1.0
    %v3211 = vadd.f32 %v3206, 1.0
    %v3212 = vadd.f32 %v3208, 1.0
    %v3213 = vrcp.pop %v3209
    %v3214 = vmul.f32 1.0, %v3213
    %v3215 = vrcp.pop %v3210
    %v3216 = vmul.f32 1.0, %v3215
    %v3217 = vrcp.pop %v3211
    %v3218 = vmul.f32 1.0, %v3217
    %v3219 = vrcp.pop %v3212
    %v3220 = vmul.f32 1.0, %v3219
    %3225 = vrot.lane.b32.xlu0 %v3175, 64
    %v3226 = vpop.permute.xlu0 %3225
    %3227 = vrot.lane.b32.xlu0 %v3180, 64
    %v3228 = vpop.permute.xlu0 %3227
    %3229 = vrot.lane.b32.xlu0 %v3185, 64
    %v3230 = vpop.permute.xlu0 %3229
    %3231 = vrot.lane.b32.xlu0 %v3190, 64
    %v3232 = vpop.permute.xlu0 %3231
    %v3237 = vmul.f32 %v3214, %v3226
    %v3238 = vmul.f32 %v3216, %v3228
    %v3239 = vmul.f32 %v3218, %v3230
    %v3240 = vmul.f32 %v3220, %v3232
    %3245 = vrot.lane.b32.xlu0 %v3237, 64
    %v3246 = vpop.permute.xlu0 %3245
    %3247 = vrot.lane.b32.xlu0 %v3238, 64
    %v3248 = vpop.permute.xlu0 %3247
    %3249 = vrot.lane.b32.xlu0 %v3239, 64
    %v3250 = vpop.permute.xlu0 %3249
    %3251 = vrot.lane.b32.xlu0 %v3240, 64
    %v3252 = vpop.permute.xlu0 %3251
    %v3257 = vadd.f32 %v3090, %v3246
    %v3258 = vadd.f32 %v3095, %v3248
    %v3259 = vadd.f32 %v3100, %v3250
    %v3260 = vadd.f32 %v3105, %v3252
    %v3261 = vtanh.pop %v3257
    %v3262 = vtanh.pop %v3258
    %v3263 = vtanh.pop %v3259
    %v3264 = vtanh.pop %v3260
    %v3265 = vsub.f32 1.0, %v3214
    %v3266 = vsub.f32 1.0, %v3216
    %v3267 = vsub.f32 1.0, %v3218
    %v3268 = vsub.f32 1.0, %v3220
    %3273 = vrot.lane.b32.xlu0 %v3261, 96
    %v3274 = vpop.permute.xlu0 %3273
    %3275 = vrot.lane.b32.xlu0 %v3262, 96
    %v3276 = vpop.permute.xlu0 %3275
    %3277 = vrot.lane.b32.xlu0 %v3263, 96
    %v3278 = vpop.permute.xlu0 %3277
    %3279 = vrot.lane.b32.xlu0 %v3264, 96
    %v3280 = vpop.permute.xlu0 %3279
    %v3285 = vmul.f32 %v3265, %v3274
    %v3286 = vmul.f32 %v3266, %v3276
    %v3287 = vmul.f32 %v3267, %v3278
    %v3288 = vmul.f32 %v3268, %v3280
    %v3289 = vmul.f32 %v3214, %v2496
    %v3290 = vmul.f32 %v3216, %v2497
    %v3291 = vmul.f32 %v3218, %v2498
    %v3292 = vmul.f32 %v3220, %v2499
    %v3293 = vadd.f32 %v3285, %v3289
    %v3294 = vadd.f32 %v3286, %v3290
    %v3295 = vadd.f32 %v3287, %v3291
    %v3296 = vadd.f32 %v3288, %v3292
    %v3297 = vpack.c.bf16 %v3294, %v3293
    %v3298 = vpack.c.bf16 %v3296, %v3295
    %3301 = vrot.lane.b32.xlu0 %v3297, 96
    %v3302 = vpop.permute.xlu0 %3301
    %3303 = vrot.lane.b32.xlu0 %v3298, 96
    %v3304 = vpop.permute.xlu0 %3303
    %3307 = vmatprep.subr.bf16.mxu0 0
    %3308 = vmatpush1.bf16.msra.mxu0 %v3302
    %3309 = vmatprep.subr.bf16.mxu0 0
    %3310 = vmatpush1.bf16.msra.mxu0 %v3304
    %3311 = vmatprep.subr.bf16.mxu0 0
    %3312 = vmatpush1.bf16.msra.mxu0 0
    %3313 = vmatprep.subr.bf16.mxu0 0
    %3314 = vmatpush1.bf16.msra.mxu0 0
    %3315 = vmatprep.subr.bf16.mxu0 0
    %3316 = vmatpush1.bf16.msra.mxu0 0
    %3317 = vmatprep.subr.bf16.mxu0 0
    %3318 = vmatpush1.bf16.msra.mxu0 0
    %3319 = vmatprep.subr.bf16.mxu0 0
    %3320 = vmatpush1.bf16.msra.mxu0 0
    %3321 = vmatprep.subr.bf16.mxu0 0
    %3322 = vmatpush1.bf16.msra.mxu0 0
    %3323 = vmatprep.subr.bf16.mxu0 0
    %3324 = vmatpush1.bf16.msra.mxu0 0
    %3325 = vmatprep.subr.bf16.mxu0 0
    %3326 = vmatpush1.bf16.msra.mxu0 0
    %3327 = vmatprep.subr.bf16.mxu0 0
    %3328 = vmatpush1.bf16.msra.mxu0 0
    %3329 = vmatprep.subr.bf16.mxu0 0
    %3330 = vmatpush1.bf16.msra.mxu0 0
    %3331 = vmatprep.subr.bf16.mxu0 0
    %3332 = vmatpush1.bf16.msra.mxu0 0
    %3333 = vmatprep.subr.bf16.mxu0 0
    %3334 = vmatpush1.bf16.msra.mxu0 0
    %3335 = vmatprep.subr.bf16.mxu0 0
    %3336 = vmatpush1.bf16.msra.mxu0 0
    %3337 = vmatprep.subr.bf16.mxu0 0
    %3338 = vmatpush1.bf16.msra.mxu0 0
    %3339 = vmatprep.mubr.bf16.mxu0 0
    %3340 = vmatmul.mubr.bf16.gmra.mrb[0].mxu0 %v691
    %v3341 = vpop.f32.mrb[0].mxu0
    %v3342 = vadd.f32 0.0, %v3341
    %v3343 = vpop.f32.mrb[0].mxu0
    %v3344 = vpop.f32.mrb[0].mxu0
    %v3345 = vadd.f32 0.0, %v3344
    %v3346 = vpop.f32.mrb[0].mxu0
    %3347 = vdwg.mxu0
    %v3349 = vsel %vm689, %v3342, 0
    %v3352 = vsel %vm689, %v3345, 0
    %3354 = vmatprep.subr.mxu0 0.0
    %3355 = vmatpush1.msra.mxu0 %v265
    %3356 = vmatprep.subr.mxu0 0.0
    %3357 = vmatpush1.msra.mxu0 %v266
    %3358 = vmatprep.subr.mxu0 0.0
    %3359 = vmatpush1.msra.mxu0 %v267
    %3360 = vmatprep.subr.mxu0 0.0
    %3361 = vmatpush1.msra.mxu0 %v268
    %3362 = vmatprep.subr.mxu0 0.0
    %3363 = vmatpush1.msra.mxu0 0.0
    %3364 = vmatprep.subr.mxu0 0.0
    %3365 = vmatpush1.msra.mxu0 0.0
    %3366 = vmatprep.subr.mxu0 0.0
    %3367 = vmatpush1.msra.mxu0 0.0
    %3368 = vmatprep.subr.mxu0 0.0
    %3369 = vmatpush1.msra.mxu0 0.0
    %3370 = vmatprep.subr.mxu0 0.0
    %3371 = vmatpush1.msra.mxu0 0.0
    %3372 = vmatprep.subr.mxu0 0.0
    %3373 = vmatpush1.msra.mxu0 0.0
    %3374 = vmatprep.subr.mxu0 0.0
    %3375 = vmatpush1.msra.mxu0 0.0
    %3376 = vmatprep.subr.mxu0 0.0
    %3377 = vmatpush1.msra.mxu0 0.0
    %3378 = vmatprep.subr.mxu0 0.0
    %3379 = vmatpush1.msra.mxu0 0.0
    %3380 = vmatprep.subr.mxu0 0.0
    %3381 = vmatpush1.msra.mxu0 0.0
    %3382 = vmatprep.subr.mxu0 0.0
    %3383 = vmatpush1.msra.mxu0 0.0
    %3384 = vmatprep.subr.mxu0 0.0
    %3385 = vmatpush1.msra.mxu0 0.0
    %3386 = vmatprep.subr.mxu0 0.0
    %3387 = vmatpush1.msra.mxu0 0.0
    %3388 = vmatprep.subr.mxu0 0.0
    %3389 = vmatpush1.msra.mxu0 0.0
    %3390 = vmatprep.subr.mxu0 0.0
    %3391 = vmatpush1.msra.mxu0 0.0
    %3392 = vmatprep.subr.mxu0 0.0
    %3393 = vmatpush1.msra.mxu0 0.0
    %3394 = vmatprep.subr.mxu0 0.0
    %3395 = vmatpush1.msra.mxu0 0.0
    %3396 = vmatprep.subr.mxu0 0.0
    %3397 = vmatpush1.msra.mxu0 0.0
    %3398 = vmatprep.subr.mxu0 0.0
    %3399 = vmatpush1.msra.mxu0 0.0
    %3400 = vmatprep.subr.mxu0 0.0
    %3401 = vmatpush1.msra.mxu0 0.0
    %3402 = vmatprep.subr.mxu0 0.0
    %3403 = vmatpush1.msra.mxu0 0.0
    %3404 = vmatprep.subr.mxu0 0.0
    %3405 = vmatpush1.msra.mxu0 0.0
    %3406 = vmatprep.subr.mxu0 0.0
    %3407 = vmatpush1.msra.mxu0 0.0
    %3408 = vmatprep.subr.mxu0 0.0
    %3409 = vmatpush1.msra.mxu0 0.0
    %3410 = vmatprep.subr.mxu0 0.0
    %3411 = vmatpush1.msra.mxu0 0.0
    %3412 = vmatprep.subr.mxu0 0.0
    %3413 = vmatpush1.msra.mxu0 0.0
    %3414 = vmatprep.subr.mxu0 0.0
    %3415 = vmatpush1.msra.mxu0 0.0
    %3416 = vmatprep.subr.mxu0 0.0
    %3417 = vmatpush1.msra.mxu0 0.0
    %3418 = vmatprep.mubr.f32.mxu0 0.0
    %3419 = vmatmul.mubr.f32.gmra.mrb[0].mxu0 %v3349
    %v3420 = vpop.f32.mrb[0].mxu0
    %v3421 = vadd.f32 %v738, %v3420
    %v3422 = vpop.f32.mrb[0].mxu0
    %3423 = vmatprep.mubr.f32.mxu0 0.0
    %3424 = vmatmul.mubr.f32.gmra.mrb[0].mxu0 %v3352
    %v3425 = vpop.f32.mrb[0].mxu0
    %v3426 = vadd.f32 %v738, %v3425
    %v3427 = vpop.f32.mrb[0].mxu0
    %3428 = vdwg.mxu0
    %v3429 = vmax.f32 %v3421, 0.0
    %v3430 = vmax.f32 %v3426, 0.0
    %v3432 = vsel %vm689, %v3429, 0
    %v3435 = vsel %vm689, %v3430, 0
    %3437 = vmatprep.subr.mxu0 0.0
    %3438 = vmatpush1.msra.mxu0 %v270
    %3439 = vmatprep.subr.mxu0 0.0
    %3440 = vmatpush1.msra.mxu0 %v271
    %3441 = vmatprep.subr.mxu0 0.0
    %3442 = vmatpush1.msra.mxu0 %v272
    %3443 = vmatprep.subr.mxu0 0.0
    %3444 = vmatpush1.msra.mxu0 %v273
    %3445 = vmatprep.subr.mxu0 0.0
    %3446 = vmatpush1.msra.mxu0 0.0
    %3447 = vmatprep.subr.mxu0 0.0
    %3448 = vmatpush1.msra.mxu0 0.0
    %3449 = vmatprep.subr.mxu0 0.0
    %3450 = vmatpush1.msra.mxu0 0.0
    %3451 = vmatprep.subr.mxu0 0.0
    %3452 = vmatpush1.msra.mxu0 0.0
    %3453 = vmatprep.subr.mxu0 0.0
    %3454 = vmatpush1.msra.mxu0 0.0
    %3455 = vmatprep.subr.mxu0 0.0
    %3456 = vmatpush1.msra.mxu0 0.0
    %3457 = vmatprep.subr.mxu0 0.0
    %3458 = vmatpush1.msra.mxu0 0.0
    %3459 = vmatprep.subr.mxu0 0.0
    %3460 = vmatpush1.msra.mxu0 0.0
    %3461 = vmatprep.subr.mxu0 0.0
    %3462 = vmatpush1.msra.mxu0 0.0
    %3463 = vmatprep.subr.mxu0 0.0
    %3464 = vmatpush1.msra.mxu0 0.0
    %3465 = vmatprep.subr.mxu0 0.0
    %3466 = vmatpush1.msra.mxu0 0.0
    %3467 = vmatprep.subr.mxu0 0.0
    %3468 = vmatpush1.msra.mxu0 0.0
    %3469 = vmatprep.subr.mxu0 0.0
    %3470 = vmatpush1.msra.mxu0 0.0
    %3471 = vmatprep.subr.mxu0 0.0
    %3472 = vmatpush1.msra.mxu0 0.0
    %3473 = vmatprep.subr.mxu0 0.0
    %3474 = vmatpush1.msra.mxu0 0.0
    %3475 = vmatprep.subr.mxu0 0.0
    %3476 = vmatpush1.msra.mxu0 0.0
    %3477 = vmatprep.subr.mxu0 0.0
    %3478 = vmatpush1.msra.mxu0 0.0
    %3479 = vmatprep.subr.mxu0 0.0
    %3480 = vmatpush1.msra.mxu0 0.0
    %3481 = vmatprep.subr.mxu0 0.0
    %3482 = vmatpush1.msra.mxu0 0.0
    %3483 = vmatprep.subr.mxu0 0.0
    %3484 = vmatpush1.msra.mxu0 0.0
    %3485 = vmatprep.subr.mxu0 0.0
    %3486 = vmatpush1.msra.mxu0 0.0
    %3487 = vmatprep.subr.mxu0 0.0
    %3488 = vmatpush1.msra.mxu0 0.0
    %3489 = vmatprep.subr.mxu0 0.0
    %3490 = vmatpush1.msra.mxu0 0.0
    %3491 = vmatprep.subr.mxu0 0.0
    %3492 = vmatpush1.msra.mxu0 0.0
    %3493 = vmatprep.subr.mxu0 0.0
    %3494 = vmatpush1.msra.mxu0 0.0
    %3495 = vmatprep.subr.mxu0 0.0
    %3496 = vmatpush1.msra.mxu0 0.0
    %3497 = vmatprep.subr.mxu0 0.0
    %3498 = vmatpush1.msra.mxu0 0.0
    %3499 = vmatprep.subr.mxu0 0.0
    %3500 = vmatpush1.msra.mxu0 0.0
    %3501 = vmatprep.mubr.f32.mxu0 0.0
    %3502 = vmatmul.mubr.f32.gmra.mrb[0].mxu0 %v3432
    %v3503 = vpop.f32.mrb[0].mxu0
    %v3504 = vadd.f32 %v896, %v3503
    %v3505 = vpop.f32.mrb[0].mxu0
    %3506 = vmatprep.mubr.f32.mxu0 0.0
    %3507 = vmatmul.mubr.f32.gmra.mrb[0].mxu0 %v3435
    %v3508 = vpop.f32.mrb[0].mxu0
    %v3509 = vadd.f32 %v901, %v3508
    %v3510 = vpop.f32.mrb[0].mxu0
    %3511 = vdwg.mxu0
    %v3512 = vadd.f32 %v3504, %v989
    %v3513 = vadd.f32 %v3509, %v989
    %v3514 = vmax.f32 %v3512, 0.0
    %v3515 = vmax.f32 %v3513, 0.0
    %v3516 = vsel %vm996, %v3514, -1e+30
    %v3517 = vsel %vm996, %v3515, -1e+30
    %3518 = vmax.xlane.f32.xlu0 %v3516
    %v3519 = vpop.xlane.xlu0 %3518
    %3520 = vmax.xlane.f32.xlu0 %v3517
    %v3521 = vpop.xlane.xlu0 %3520
    %v3522 = vsub.f32 %v3516, %v3519
    %v3523 = vsub.f32 %v3517, %v3521
    %v3524 = vmul.f32 %v3522, 1.442695
    %v3525 = vpow.pop %v3524
    %v3526 = vmul.f32 %v3523, 1.442695
    %v3527 = vpow.pop %v3526
    %3528 = vadd.xlane.f32.xlu0 %v3525
    %v3529 = vpop.xlane.xlu0 %3528
    %3530 = vadd.xlane.f32.xlu0 %v3527
    %v3531 = vpop.xlane.xlu0 %3530
    %v3532 = vlog2.pop %v3529
    %v3533 = vmul.f32 %v3532, 0.6931472
    %v3534 = vlog2.pop %v3531
    %v3535 = vmul.f32 %v3534, 0.6931472
    %v3536 = vadd.f32 %v3533, %v3519
    %v3537 = vadd.f32 %v3535, %v3521
    %v3538 = vsub.f32 %v3516, %v3536
    %v3539 = vsub.f32 %v3517, %v3537
    %s3540 = scalar_lea.vmem [#allocation23], 48
    %3541 = vst [vmem:[%s3540] sm:$0xff] %v3538
    %3542 = vst [vmem:[%s3540 + $0x8] sm:$0xff] %v3539
    // Predicated region
    $region166: #{tpu_custom_call.1} parent=1 // pred_check
      _
    $region167: #{tpu_custom_call.1} parent=1 // pred_check_branch
      %3544 = sbr.rel (0) target = $region169
    $region168: #{tpu_custom_call.1} parent=1 // pred_region
      %s3546 = ssub.s32 1024, 1024
      %3547 = vsyncadd [#allocation4], %s3546
      %s3548 = sshll.u32 [#allocation23], 4
      %s3549 = int_to_ptr.vmem [resolvable:$true] %s3548
      %3554 = dma.vmem_to_hbm [thread:$0]  %s3549, 1024, %s28, [#allocation4], 128, 128, 8
    $region169: #{tpu_custom_call.1} parent=1 // pred_fallthru
      _
    // Predicated region
    $region170: #{tpu_custom_call.1} parent=1 // pred_check
      _
    $region171: #{tpu_custom_call.1} parent=1 // pred_check_branch
      %3556 = sbr.rel (0) target = $region173
    $region172: #{tpu_custom_call.1} parent=1 // pred_region
      %3557 = dma.done [#allocation4], 1024
    $region173: #{tpu_custom_call.1} parent=1 // pred_fallthru
      _
    %3558 = vsyncpa [#allocation3], 1
    %3559 = vsyncpa [#allocation6], 1
    %3560 = vsyncpa [#allocation9], 1
    %3561 = vsyncpa [#allocation12], 1
    %3562 = vsyncpa [#allocation15], 1
    %3563 = vsyncpa [#allocation18], 1
    %3564 = vsyncpa [#allocation21], 1
    %3565 = vsyncpa [#allocation4], 1

</llo_original>
